<compile_context>
chip_gen: v7x
topology: tpu7x:2x2x1
jax: 0.10.0
libtpu: 0.0.40
codegen_flags: <defaults>
</compile_context>

<pallas_src>
import functools

import jax
import jax.numpy as jnp
from jax.experimental import pallas as pl
from jax.experimental.pallas import tpu as pltpu


# ----------------------------------------------------------------------------
# Kernel
# ----------------------------------------------------------------------------
def doc_encoder_kernel(
    mask_ref,               # (S, TB, 1) f32   1.0 where sentence t < doc_len
    docs_ref,               # (TB, S*D)  mm    lane-dense doc tile
    ws_ref, bs_ref,         # (S*D, S*2H) mm, (1, S*2H) f32   block-diag sent encoder
    wih_ref, bih_ref,       # (S*2H, S*8H) mm, (1, S*8H) f32  block-diag input proj
    whh_ref,                # (2H, 8H) mm      block-diag [W_hh_fwd | W_hh_bwd]
    wa_ref, ba_ref, u_ref,  # attention: (2H, 2H) mm, (1, 2H) f32, (1, 2H) f32
    feat_ref,               # out: (TB, 2H) f32
    *scratch,               # with_attention: yf_scr (S,TB,H), yb_scr (S,TB,H)
    with_attention: bool,
):
    S = mask_ref.shape[0]
    TB = docs_ref.shape[0]
    H2, H8 = whh_ref.shape
    H = H2 // 2
    H4 = 4 * H
    mm = ws_ref.dtype                      # matmul dtype (f32 or bf16)

    # ---- hoisted projections (MXU, lane-dense, outside the recurrence) ------
    emb = jnp.tanh(
        jnp.dot(docs_ref[...], ws_ref[...], preferred_element_type=jnp.float32)
        + bs_ref[...])                                           # (TB, S*2H) f32
    gates = (jnp.dot(emb.astype(mm), wih_ref[...],
                     preferred_element_type=jnp.float32)
             + bih_ref[...])                                     # (TB, S*8H) f32

    whh = whh_ref[...]                                           # (2H, 8H)

    hf = cf = hb = cb = jnp.zeros((TB, H), jnp.float32)
    h_cat = jnp.zeros((TB, H2), jnp.float32)                     # [hf | hb]
    if with_attention:
        yf_scr, yb_scr = scratch

    # ---- BiLSTM recurrence: fwd & bwd share one block-diag matmul per step --
    for t in range(S):                                           # S is small: unroll
        tb = S - 1 - t
        gi_f = gates[:, t * H8: t * H8 + H4]                     # 128-lane aligned
        gi_b = gates[:, tb * H8 + H4: (tb + 1) * H8]             # 128-lane aligned
        if t == 0:
            pre_f, pre_b = gi_f, gi_b                            # h == 0: skip matmul
        else:
            rec = jnp.dot(h_cat.astype(mm), whh,
                          preferred_element_type=jnp.float32)    # (TB, 8H)
            pre_f = gi_f + rec[:, :H4]
            pre_b = gi_b + rec[:, H4:]

        # full-vreg nonlinearities (1 sigmoid + 1 tanh per direction per step)
        sf = jax.nn.sigmoid(pre_f)
        gf = jnp.tanh(pre_f)
        sb = jax.nn.sigmoid(pre_b)
        gb = jnp.tanh(pre_b)

        # gate order i | f | g | o  (PyTorch).  NOTE: 32-lane sub-slices; free
        # once H >= 128 in production.
        cf_new = sf[:, H:2 * H] * cf + sf[:, :H] * gf[:, 2 * H:3 * H]
        hf_new = sf[:, 3 * H:] * jnp.tanh(cf_new)
        cb_new = sb[:, H:2 * H] * cb + sb[:, :H] * gb[:, 2 * H:3 * H]
        hb_new = sb[:, 3 * H:] * jnp.tanh(cb_new)

        # one broadcast per direction per step, reused by h, c and y
        vf = jnp.broadcast_to(mask_ref[t], (TB, H)) > 0.5
        vb = jnp.broadcast_to(mask_ref[tb], (TB, H)) > 0.5
        hf = jnp.where(vf, hf_new, hf)                           # packed-seq: hold
        cf = jnp.where(vf, cf_new, cf)
        hb = jnp.where(vb, hb_new, hb)
        cb = jnp.where(vb, cb_new, cb)
        h_cat = jnp.concatenate([hf, hb], axis=-1)               # next-step matmul input

        if with_attention:
            yf_scr[t] = jnp.where(vf, hf_new, 0.0)               # pad_packed: zeros
            yb_scr[tb] = jnp.where(vb, hb_new, 0.0)

    if not with_attention:
        # torch: h (2,B,H) -> transpose -> view(B,2H) == [h_fwd_final | h_bwd_final]
        feat_ref[...] = h_cat
        return

    # ---- vectorized AttentionLayer over sentences ----------------------------
    y = jnp.concatenate([yf_scr[...], yb_scr[...]], axis=-1)     # (S, TB, 2H)
    h_att = jnp.tanh(
        jnp.dot(y.reshape(S * TB, H2).astype(mm), wa_ref[...],
                preferred_element_type=jnp.float32) + ba_ref[...])   # (S*TB, 2H)
    scores = jnp.sum(h_att * u_ref[...], axis=-1,
                     keepdims=True).reshape(S, TB, 1)                # (S, TB, 1)
    scores = jnp.where(mask_ref[...] > 0.5, scores, -1e32)          # f32 mask fill
    m = jnp.max(scores, axis=0, keepdims=True)
    e = jnp.exp(scores - m)
    denom = jnp.sum(e, axis=0, keepdims=True)
    r = pl.reciprocal(denom, approx=True)
    r = r * (2.0 - denom * r)                 # one Newton step -> f32 accuracy
    alpha = e * r                                                    # softmax over S
    feat_ref[...] = jnp.sum(y * alpha, axis=0)                       # (TB, 2H)


# ----------------------------------------------------------------------------
# Wrapper helpers
# ----------------------------------------------------------------------------
def _doc_lens(docs):
    """torch: doc.nonzero()[:, 0].max() + 1, per doc.  Returns int32 (B, 1)."""
    _, S, _ = docs.shape
    row_nz = jnp.any(docs != 0.0, axis=-1)                          # (B, S)
    sidx = jnp.arange(S, dtype=jnp.int32)[None, :]
    return (jnp.max(jnp.where(row_nz, sidx, -1), axis=1) + 1).astype(jnp.int32)[:, None]


def _pick_batch_block(B, S, D, H, target_bytes=4 << 20):
    """Largest multiple-of-8 divisor of B whose per-tile activation working set
    stays around `target_bytes` (keeps tiles comfortably inside VMEM on v5e/v7x
    while amortizing per-grid-step overhead on v6e)."""
    per_row = 4 * S * (D + 14 * H) + 64
    cap = int(max(8, min(512, target_bytes // per_row)))
    if B <= cap:
        # prefer >= 2 grid steps (pipelining / megacore) when it splits cleanly
        return B // 2 if (B % 16 == 0) else B
    best = None
    for t in range(8, cap + 1, 8):
        if B % t == 0:
            best = t
    return best if best is not None else B


def _vmem_limit_bytes(TB, S, D, H, mm_bytes):
    w = (mm_bytes * (S * D * S * 2 * H + S * 2 * H * S * 8 * H
                     + 2 * H * 8 * H + 2 * H * 2 * H)
         + 4 * (S * 2 * H + S * 8 * H + 4 * H))
    tiles = TB * (S * D * mm_bytes + S * 4 + 2 * H * 4)
    interm = 4 * TB * S * (2 * H + 8 * H + 2 * H + 2 * H) + 4 * 2 * S * TB * H
    est = 2 * (w + tiles) + interm
    return int(min(64 * 2 ** 20, max(32 * 2 ** 20, 2 * est)))


def _cost_estimate(B, S, D, H, mm_bytes):
    flops = 2 * B * ((S * D) * (S * 2 * H)            # block-diag sentence encoder
                     + (S * 2 * H) * (S * 8 * H)      # block-diag input projection
                     + S * (2 * H) * (8 * H)          # recurrence
                     + S * (2 * H) * (2 * H))         # attention fc
    transcendentals = B * S * (2 * H + 4 * (4 * H) + 2 * H + 2 * H + 2 * H)
    weight_bytes = mm_bytes * ((S * D) * (S * 2 * H) + (S * 2 * H) * (S * 8 * H)
                               + (2 * H) * (8 * H) + (2 * H) * (2 * H))
    bytes_accessed = B * S * D * mm_bytes + S * B * 4 + B * 2 * H * 4 + weight_bytes
    return pl.CostEstimate(flops=flops, transcendentals=transcendentals,
                           bytes_accessed=bytes_accessed)


def pack_params(params, S, matmul_dtype):
    """Pack natural (torch-layout, pre-transposed) params into the kernel's
    block-diagonal / fused layouts.  Biases stay f32 (added post-accumulation)."""
    D, H2 = params["ws"].shape
    H = H2 // 2
    eye = jnp.eye(S, dtype=jnp.float32)
    wih_fused = jnp.concatenate([params["wih_f"], params["wih_b"]], axis=1)   # (2H, 8H)
    bih_fused = jnp.concatenate([params["b_f"], params["b_b"]])[None, :]      # (1, 8H)
    z = jnp.zeros((H, 4 * H), jnp.float32)
    whh_bd = jnp.concatenate(
        [jnp.concatenate([params["whh_f"], z], axis=1),
         jnp.concatenate([z, params["whh_b"]], axis=1)], axis=0)              # (2H, 8H)
    return dict(
        ws_bd=jnp.kron(eye, params["ws"]).astype(matmul_dtype),     # (S*D, S*2H)
        bs_bd=jnp.tile(params["bs"], (1, S)),                       # (1, S*2H) f32
        wih_bd=jnp.kron(eye, wih_fused).astype(matmul_dtype),       # (S*2H, S*8H)
        bih_bd=jnp.tile(bih_fused, (1, S)),                         # (1, S*8H) f32
        whh_bd=whh_bd.astype(matmul_dtype),                         # (2H, 8H)
        wa=params["wa"].astype(matmul_dtype),
        ba=params["ba"], u=params["u"],
    )


def doc_encoder_forward(docs, params, *, with_attention=True, batch_block=None,
                        matmul_dtype=jnp.float32):
    B, S, D = docs.shape
    H = params["whh_f"].shape[0]
    H2 = 2 * H
    mm_bytes = jnp.dtype(matmul_dtype).itemsize

    # Length mask (t < len) precomputed outside the kernel; (S, B, 1) so that
    # mask[t] is directly the per-step (TB, 1) batch mask and mask[...] is the
    # attention mask, with no in-kernel transpose.
    lens = _doc_lens(docs)                                               # (B, 1)
    mask_t = (jnp.arange(S, dtype=jnp.int32)[:, None] < lens.T
              ).astype(jnp.float32)[:, :, None]                          # (S, B, 1)

    # Lane-dense docs (minor dim S*D, not D); cast once for the bf16 MXU path.
    docs_flat = docs.reshape(B, S * D).astype(matmul_dtype)

    packed = pack_params(params, S, matmul_dtype)

    TB = _pick_batch_block(B, S, D, H) if batch_block is None else batch_block
    assert B % TB == 0 and (TB == B or TB % 8 == 0), \
        "batch tile must divide B and be a multiple of 8 (or equal B)"

    kernel = functools.partial(doc_encoder_kernel, with_attention=with_attention)

    def full2d(arr):   # whole-weight block, constant index -> fetched once
        return pl.BlockSpec(arr.shape, lambda i: (0, 0))

    in_specs = [
        pl.BlockSpec((S, TB, 1), lambda i: (0, i, 0)),        # mask_t
        pl.BlockSpec((TB, S * D), lambda i: (i, 0)),          # docs (lane-dense)
        full2d(packed["ws_bd"]), full2d(packed["bs_bd"]),
        full2d(packed["wih_bd"]), full2d(packed["bih_bd"]),
        full2d(packed["whh_bd"]),
        full2d(packed["wa"]), full2d(packed["ba"]), full2d(packed["u"]),
    ]
    scratch_shapes = ([pltpu.VMEM((S, TB, H), jnp.float32),
                       pltpu.VMEM((S, TB, H), jnp.float32)]
                      if with_attention else [])

    grid_spec = pltpu.PrefetchScalarGridSpec(
        num_scalar_prefetch=0,
        grid=(B // TB,),
        in_specs=in_specs,
        out_specs=pl.BlockSpec((TB, H2), lambda i: (i, 0)),
        scratch_shapes=scratch_shapes,
    )
    return pl.pallas_call(
        kernel,
        out_shape=jax.ShapeDtypeStruct((B, H2), jnp.float32),
        grid_spec=grid_spec,
        compiler_params=pltpu.CompilerParams(
            dimension_semantics=("parallel",),
            vmem_limit_bytes=_vmem_limit_bytes(TB, S, D, H, mm_bytes)),
        cost_estimate=_cost_estimate(B, S, D, H, mm_bytes),
    )(mask_t, docs_flat,
      packed["ws_bd"], packed["bs_bd"], packed["wih_bd"], packed["bih_bd"],
      packed["whh_bd"], packed["wa"], packed["ba"], packed["u"])


# ----------------------------------------------------------------------------
# Parameters (natural layout) and pure-JAX reference
# ----------------------------------------------------------------------------
def init_params(key, d_in, hid_dim):
    """Deterministic synthetic parameters in natural (pre-transposed) layout:
      ws/bs     : sentence encoder Linear(D, 2H)      (torch: abstract submodule)
      wih_*     : (2H, 4H) = torch weight_ih_l0(_reverse).T, gate order i|f|g|o
      whh_*     : (H, 4H)  = torch weight_hh.T
      b_*       : (4H,)    = torch bias_ih + bias_hh (summed when loading ckpts)
      wa/ba/u   : AttentionLayer fc + context vector
    """
    H = hid_dim
    h2, h4 = 2 * H, 4 * H
    keys = jax.random.split(key, 11)

    def rn(k, shape, scale=0.1):
        return scale * jax.random.normal(k, shape, dtype=jnp.float32)

    return dict(
        # TODO(synk): sent_encoder is an abstract submodule in the torch code;
        # instantiated here as tanh(Linear(D, 2*hid)).
        ws=rn(keys[0], (d_in, h2)), bs=rn(keys[1], (1, h2)),
        wih_f=rn(keys[2], (h2, h4)), whh_f=rn(keys[3], (H, h4)), b_f=rn(keys[4], (h4,)),
        wih_b=rn(keys[5], (h2, h4)), whh_b=rn(keys[6], (H, h4)), b_b=rn(keys[7], (h4,)),
        wa=rn(keys[8], (h2, h2)), ba=rn(keys[9], (1, h2)), u=rn(keys[10], (1, h2)),
    )


def doc_encoder_reference(docs, params, *, with_attention):
    """Pure-JAX reference (same math as the torch module) for validation."""
    B, S, D = docs.shape
    H = params["whh_f"].shape[0]
    lens = _doc_lens(docs)                                               # (B, 1)
    emb = jnp.tanh(docs.reshape(B * S, D) @ params["ws"]
                   + params["bs"]).reshape(B, S, 2 * H)

    def cell(x_t, h, c, wih, whh, b):
        pre = x_t @ wih + h @ whh + b
        i_g = jax.nn.sigmoid(pre[:, :H])
        f_g = jax.nn.sigmoid(pre[:, H:2 * H])
        g_g = jnp.tanh(pre[:, 2 * H:3 * H])
        o_g = jax.nn.sigmoid(pre[:, 3 * H:])
        c2 = f_g * c + i_g * g_g
        return o_g * jnp.tanh(c2), c2

    hf = cf = hb = cb = jnp.zeros((B, H), jnp.float32)
    yf = [None] * S
    yb = [None] * S
    for t in range(S):
        tb = S - 1 - t
        hfn, cfn = cell(emb[:, t], hf, cf, params["wih_f"], params["whh_f"], params["b_f"])
        hbn, cbn = cell(emb[:, tb], hb, cb, params["wih_b"], params["whh_b"], params["b_b"])
        vf, vb = t < lens, tb < lens
        hf, cf = jnp.where(vf, hfn, hf), jnp.where(vf, cfn, cf)
        hb, cb = jnp.where(vb, hbn, hb), jnp.where(vb, cbn, cb)
        yf[t] = jnp.where(vf, hfn, 0.0)
        yb[tb] = jnp.where(vb, hbn, 0.0)

    if not with_attention:
        return jnp.concatenate([hf, hb], axis=-1)
    y = jnp.concatenate([jnp.stack(yf, 1), jnp.stack(yb, 1)], axis=-1)   # (B, S, 2H)
    h_att = jnp.tanh(y.reshape(B * S, 2 * H) @ params["wa"] + params["ba"])
    scores = (h_att * params["u"]).sum(-1).reshape(B, S)
    scores = jnp.where(jnp.arange(S)[None, :] < lens, scores, -1e32)
    alpha = jax.nn.softmax(scores, axis=1)[:, :, None]
    return (y * alpha).sum(axis=1)


# ----------------------------------------------------------------------------
if __name__ == "__main__":
    B, S, D, H = 2, 8, 16, 32          # batch, max sentences, sent feature, hid_dim
    key = jax.random.PRNGKey(0)
    k_doc, k_par = jax.random.split(key)

    docs = jax.random.normal(k_doc, (B, S, D), dtype=jnp.float32)
    # doc 0 has 8 valid sentences, doc 1 has 5 (rows >= 5 are zero padding)
    doc_lens = jnp.array([8, 5])
    pad = (jnp.arange(S)[None, :] < doc_lens[:, None]).astype(jnp.float32)[:, :, None]
    docs = docs * pad

    params = init_params(k_par, D, H)

    feat_attn = doc_encoder_forward(docs, params, with_attention=True)
    feat_last = doc_encoder_forward(docs, params, with_attention=False)
    feat_bf16 = doc_encoder_forward(docs, params, with_attention=True,
                                    matmul_dtype=jnp.bfloat16)
    jax.block_until_ready((feat_attn, feat_last, feat_bf16))

    ref_attn = doc_encoder_reference(docs, params, with_attention=True)
    ref_last = doc_encoder_reference(docs, params, with_attention=False)

    assert feat_attn.shape == (B, 2 * H) and feat_last.shape == (B, 2 * H)
    assert bool(jnp.all(jnp.isfinite(feat_attn)))
    assert bool(jnp.all(jnp.isfinite(feat_last)))
    assert bool(jnp.all(jnp.isfinite(feat_bf16)))
    assert float(jnp.max(jnp.abs(feat_attn - ref_attn))) < 5e-3
    assert float(jnp.max(jnp.abs(feat_last - ref_last))) < 5e-3
    assert float(jnp.max(jnp.abs(feat_bf16 - ref_attn))) < 3e-2   # bf16 MXU path
    print("KERNEL_OK")
</pallas_src>

<mosaic_0001>
module attributes {stable_mosaic.version = 11 : i64} {
  func.func @doc_encoder_kernel(%arg0: i32, %arg1: memref<8x2x1xf32, #tpu.memory_space<vmem>>, %arg2: memref<2x128xf32, #tpu.memory_space<vmem>>, %arg3: memref<128x512xf32, #tpu.memory_space<vmem>>, %arg4: memref<1x512xf32, #tpu.memory_space<vmem>>, %arg5: memref<512x2048xf32, #tpu.memory_space<vmem>>, %arg6: memref<1x2048xf32, #tpu.memory_space<vmem>>, %arg7: memref<64x256xf32, #tpu.memory_space<vmem>>, %arg8: memref<64x64xf32, #tpu.memory_space<vmem>>, %arg9: memref<1x64xf32, #tpu.memory_space<vmem>>, %arg10: memref<1x64xf32, #tpu.memory_space<vmem>>, %arg11: memref<2x64xf32, #tpu.memory_space<vmem>>, %arg12: memref<8x2x32xf32, #tpu.memory_space<vmem>>, %arg13: memref<8x2x32xf32, #tpu.memory_space<vmem>>) attributes {dimension_semantics = [#tpu.dimension_semantics<parallel>], iteration_bounds = array<i64: 1>, scalar_prefetch = 0 : i64, scratch_operands = 2 : i64, tpu.core_type = #tpu.core_type<tc>, window_params = [{transform_indices = @transform_0, window_bounds = array<i64: 8, 2, 1>}, {transform_indices = @transform_1, window_bounds = array<i64: 2, 128>}, {pipeline_mode = #tpu.pipeline_mode<synchronous>, transform_indices = @transform_2, window_bounds = array<i64: 128, 512>}, {pipeline_mode = #tpu.pipeline_mode<synchronous>, transform_indices = @transform_3, window_bounds = array<i64: 1, 512>}, {pipeline_mode = #tpu.pipeline_mode<synchronous>, transform_indices = @transform_4, window_bounds = array<i64: 512, 2048>}, {pipeline_mode = #tpu.pipeline_mode<synchronous>, transform_indices = @transform_5, window_bounds = array<i64: 1, 2048>}, {pipeline_mode = #tpu.pipeline_mode<synchronous>, transform_indices = @transform_6, window_bounds = array<i64: 64, 256>}, {pipeline_mode = #tpu.pipeline_mode<synchronous>, transform_indices = @transform_7, window_bounds = array<i64: 64, 64>}, {pipeline_mode = #tpu.pipeline_mode<synchronous>, transform_indices = @transform_8, window_bounds = array<i64: 1, 64>}, {pipeline_mode = #tpu.pipeline_mode<synchronous>, transform_indices = @transform_9, window_bounds = array<i64: 1, 64>}, {transform_indices = @transform_10, window_bounds = array<i64: 2, 64>}]} {
    %c0 = arith.constant 0 : index
    %c0_0 = arith.constant 0 : index
    %0 = vector.load %arg2[%c0, %c0_0] : memref<2x128xf32, #tpu.memory_space<vmem>>, vector<2x128xf32>
    %c0_1 = arith.constant 0 : index
    %c0_2 = arith.constant 0 : index
    %1 = vector.load %arg3[%c0_1, %c0_2] : memref<128x512xf32, #tpu.memory_space<vmem>>, vector<128x512xf32>
    %cst = arith.constant dense<0.000000e+00> : vector<2x512xf32>
    %2 = tpu.matmul %0, %1, %cst {dimension_numbers = #tpu.dot_dimension_numbers<[1], [0], [0], [1], [0, 0, 1, 1], [], []>} : vector<2x128xf32>, vector<128x512xf32>, vector<2x512xf32> -> vector<2x512xf32>
    %c0_3 = arith.constant 0 : index
    %c0_4 = arith.constant 0 : index
    %3 = vector.load %arg4[%c0_3, %c0_4] : memref<1x512xf32, #tpu.memory_space<vmem>>, vector<1x512xf32>
    %4 = vector.broadcast %3 : vector<1x512xf32> to vector<2x512xf32>
    %5 = arith.addf %2, %4 : vector<2x512xf32>
    %6 = math.tanh %5 : vector<2x512xf32>
    %c0_5 = arith.constant 0 : index
    %c0_6 = arith.constant 0 : index
    %7 = vector.load %arg5[%c0_5, %c0_6] : memref<512x2048xf32, #tpu.memory_space<vmem>>, vector<512x2048xf32>
    %cst_7 = arith.constant dense<0.000000e+00> : vector<2x2048xf32>
    %8 = tpu.matmul %6, %7, %cst_7 {dimension_numbers = #tpu.dot_dimension_numbers<[1], [0], [0], [1], [0, 0, 1, 1], [], []>} : vector<2x512xf32>, vector<512x2048xf32>, vector<2x2048xf32> -> vector<2x2048xf32>
    %c0_8 = arith.constant 0 : index
    %c0_9 = arith.constant 0 : index
    %9 = vector.load %arg6[%c0_8, %c0_9] : memref<1x2048xf32, #tpu.memory_space<vmem>>, vector<1x2048xf32>
    %10 = vector.broadcast %9 : vector<1x2048xf32> to vector<2x2048xf32>
    %11 = arith.addf %8, %10 : vector<2x2048xf32>
    %c0_10 = arith.constant 0 : index
    %c0_11 = arith.constant 0 : index
    %12 = vector.load %arg7[%c0_10, %c0_11] : memref<64x256xf32, #tpu.memory_space<vmem>>, vector<64x256xf32>
    %cst_12 = arith.constant 0.000000e+00 : f32
    %13 = vector.broadcast %cst_12 : f32 to vector<2x32xf32>
    %14 = vector.extract_strided_slice %11 {offsets = [0, 0], sizes = [2, 128], strides = [1, 1]} : vector<2x2048xf32> to vector<2x128xf32>
    %15 = vector.extract_strided_slice %11 {offsets = [0, 1920], sizes = [2, 128], strides = [1, 1]} : vector<2x2048xf32> to vector<2x128xf32>
    %16 = arith.negf %14 : vector<2x128xf32>
    %17 = math.exp %16 : vector<2x128xf32>
    %cst_13 = arith.constant 1.000000e+00 : f32
    %18 = vector.broadcast %cst_13 : f32 to vector<2x128xf32>
    %19 = arith.addf %18, %17 : vector<2x128xf32>
    %20 = arith.divf %18, %19 : vector<2x128xf32>
    %21 = math.tanh %14 : vector<2x128xf32>
    %22 = arith.negf %15 : vector<2x128xf32>
    %23 = math.exp %22 : vector<2x128xf32>
    %cst_14 = arith.constant 1.000000e+00 : f32
    %24 = vector.broadcast %cst_14 : f32 to vector<2x128xf32>
    %25 = arith.addf %24, %23 : vector<2x128xf32>
    %26 = arith.divf %24, %25 : vector<2x128xf32>
    %27 = math.tanh %15 : vector<2x128xf32>
    %28 = vector.extract_strided_slice %20 {offsets = [0, 32], sizes = [2, 32], strides = [1, 1]} : vector<2x128xf32> to vector<2x32xf32>
    %29 = arith.mulf %28, %13 : vector<2x32xf32>
    %30 = vector.extract_strided_slice %20 {offsets = [0, 0], sizes = [2, 32], strides = [1, 1]} : vector<2x128xf32> to vector<2x32xf32>
    %31 = vector.extract_strided_slice %21 {offsets = [0, 64], sizes = [2, 32], strides = [1, 1]} : vector<2x128xf32> to vector<2x32xf32>
    %32 = arith.mulf %30, %31 : vector<2x32xf32>
    %33 = arith.addf %29, %32 : vector<2x32xf32>
    %34 = vector.extract_strided_slice %20 {offsets = [0, 96], sizes = [2, 32], strides = [1, 1]} : vector<2x128xf32> to vector<2x32xf32>
    %35 = math.tanh %33 : vector<2x32xf32>
    %36 = arith.mulf %34, %35 : vector<2x32xf32>
    %37 = vector.extract_strided_slice %26 {offsets = [0, 32], sizes = [2, 32], strides = [1, 1]} : vector<2x128xf32> to vector<2x32xf32>
    %38 = arith.mulf %37, %13 : vector<2x32xf32>
    %39 = vector.extract_strided_slice %26 {offsets = [0, 0], sizes = [2, 32], strides = [1, 1]} : vector<2x128xf32> to vector<2x32xf32>
    %40 = vector.extract_strided_slice %27 {offsets = [0, 64], sizes = [2, 32], strides = [1, 1]} : vector<2x128xf32> to vector<2x32xf32>
    %41 = arith.mulf %39, %40 : vector<2x32xf32>
    %42 = arith.addf %38, %41 : vector<2x32xf32>
    %43 = vector.extract_strided_slice %26 {offsets = [0, 96], sizes = [2, 32], strides = [1, 1]} : vector<2x128xf32> to vector<2x32xf32>
    %44 = math.tanh %42 : vector<2x32xf32>
    %45 = arith.mulf %43, %44 : vector<2x32xf32>
    %c0_15 = arith.constant 0 : index
    %c0_16 = arith.constant 0 : index
    %c0_17 = arith.constant 0 : index
    %46 = vector.load %arg1[%c0_15, %c0_16, %c0_17] : memref<8x2x1xf32, #tpu.memory_space<vmem>>, vector<1x2x1xf32>
    %47 = vector.shape_cast %46 : vector<1x2x1xf32> to vector<2x1xf32>
    %48 = vector.shape_cast %47 : vector<2x1xf32> to vector<2x1xf32>
    %49 = vector.broadcast %48 : vector<2x1xf32> to vector<2x32xf32>
    %cst_18 = arith.constant 5.000000e-01 : f32
    %50 = vector.broadcast %cst_18 : f32 to vector<2x32xf32>
    %51 = arith.cmpf ogt, %49, %50 : vector<2x32xf32>
    %c7 = arith.constant 7 : index
    %c0_19 = arith.constant 0 : index
    %c0_20 = arith.constant 0 : index
    %52 = vector.load %arg1[%c7, %c0_19, %c0_20] : memref<8x2x1xf32, #tpu.memory_space<vmem>>, vector<1x2x1xf32>
    %53 = vector.shape_cast %52 : vector<1x2x1xf32> to vector<2x1xf32>
    %54 = vector.shape_cast %53 : vector<2x1xf32> to vector<2x1xf32>
    %55 = vector.broadcast %54 : vector<2x1xf32> to vector<2x32xf32>
    %cst_21 = arith.constant 5.000000e-01 : f32
    %56 = vector.broadcast %cst_21 : f32 to vector<2x32xf32>
    %57 = arith.cmpf ogt, %55, %56 : vector<2x32xf32>
    %58 = arith.select %51, %36, %13 : vector<2x32xi1>, vector<2x32xf32>
    %59 = arith.select %51, %33, %13 : vector<2x32xi1>, vector<2x32xf32>
    %60 = arith.select %57, %45, %13 : vector<2x32xi1>, vector<2x32xf32>
    %61 = arith.select %57, %42, %13 : vector<2x32xi1>, vector<2x32xf32>
    %62 = tpu.concatenate %58, %60 in 1 : vector<2x32xf32>, vector<2x32xf32> -> vector<2x64xf32>
    %cst_22 = arith.constant 0.000000e+00 : f32
    %63 = vector.broadcast %cst_22 : f32 to vector<2x32xf32>
    %64 = arith.select %51, %36, %63 : vector<2x32xi1>, vector<2x32xf32>
    %c0_23 = arith.constant 0 : index
    %c0_24 = arith.constant 0 : index
    %c0_25 = arith.constant 0 : index
    %65 = vector.load %arg12[%c0_23, %c0_24, %c0_25] : memref<8x2x32xf32, #tpu.memory_space<vmem>>, vector<1x2x32xf32>
    %66 = vector.shape_cast %65 : vector<1x2x32xf32> to vector<2x32xf32>
    %67 = vector.shape_cast %64 : vector<2x32xf32> to vector<1x2x32xf32>
    tpu.vector_store %arg12[%c0_23, %c0_24, %c0_25], %67 {strides = array<i32>} : memref<8x2x32xf32, #tpu.memory_space<vmem>>, vector<1x2x32xf32>,
    %cst_26 = arith.constant 0.000000e+00 : f32
    %68 = vector.broadcast %cst_26 : f32 to vector<2x32xf32>
    %69 = arith.select %57, %45, %68 : vector<2x32xi1>, vector<2x32xf32>
    %c7_27 = arith.constant 7 : index
    %c0_28 = arith.constant 0 : index
    %c0_29 = arith.constant 0 : index
    %70 = vector.load %arg13[%c7_27, %c0_28, %c0_29] : memref<8x2x32xf32, #tpu.memory_space<vmem>>, vector<1x2x32xf32>
    %71 = vector.shape_cast %70 : vector<1x2x32xf32> to vector<2x32xf32>
    %72 = vector.shape_cast %69 : vector<2x32xf32> to vector<1x2x32xf32>
    tpu.vector_store %arg13[%c7_27, %c0_28, %c0_29], %72 {strides = array<i32>} : memref<8x2x32xf32, #tpu.memory_space<vmem>>, vector<1x2x32xf32>,
    %73 = vector.extract_strided_slice %11 {offsets = [0, 256], sizes = [2, 128], strides = [1, 1]} : vector<2x2048xf32> to vector<2x128xf32>
    %74 = vector.extract_strided_slice %11 {offsets = [0, 1664], sizes = [2, 128], strides = [1, 1]} : vector<2x2048xf32> to vector<2x128xf32>
    %cst_30 = arith.constant dense<0.000000e+00> : vector<2x256xf32>
    %75 = tpu.matmul %62, %12, %cst_30 {dimension_numbers = #tpu.dot_dimension_numbers<[1], [0], [0], [1], [0, 0, 1, 1], [], []>} : vector<2x64xf32>, vector<64x256xf32>, vector<2x256xf32> -> vector<2x256xf32>
    %76 = vector.extract_strided_slice %75 {offsets = [0, 0], sizes = [2, 128], strides = [1, 1]} : vector<2x256xf32> to vector<2x128xf32>
    %77 = arith.addf %73, %76 : vector<2x128xf32>
    %78 = vector.extract_strided_slice %75 {offsets = [0, 128], sizes = [2, 128], strides = [1, 1]} : vector<2x256xf32> to vector<2x128xf32>
    %79 = arith.addf %74, %78 : vector<2x128xf32>
    %80 = arith.negf %77 : vector<2x128xf32>
    %81 = math.exp %80 : vector<2x128xf32>
    %cst_31 = arith.constant 1.000000e+00 : f32
    %82 = vector.broadcast %cst_31 : f32 to vector<2x128xf32>
    %83 = arith.addf %82, %81 : vector<2x128xf32>
    %84 = arith.divf %82, %83 : vector<2x128xf32>
    %85 = math.tanh %77 : vector<2x128xf32>
    %86 = arith.negf %79 : vector<2x128xf32>
    %87 = math.exp %86 : vector<2x128xf32>
    %cst_32 = arith.constant 1.000000e+00 : f32
    %88 = vector.broadcast %cst_32 : f32 to vector<2x128xf32>
    %89 = arith.addf %88, %87 : vector<2x128xf32>
    %90 = arith.divf %88, %89 : vector<2x128xf32>
    %91 = math.tanh %79 : vector<2x128xf32>
    %92 = vector.extract_strided_slice %84 {offsets = [0, 32], sizes = [2, 32], strides = [1, 1]} : vector<2x128xf32> to vector<2x32xf32>
    %93 = arith.mulf %92, %59 : vector<2x32xf32>
    %94 = vector.extract_strided_slice %84 {offsets = [0, 0], sizes = [2, 32], strides = [1, 1]} : vector<2x128xf32> to vector<2x32xf32>
    %95 = vector.extract_strided_slice %85 {offsets = [0, 64], sizes = [2, 32], strides = [1, 1]} : vector<2x128xf32> to vector<2x32xf32>
    %96 = arith.mulf %94, %95 : vector<2x32xf32>
    %97 = arith.addf %93, %96 : vector<2x32xf32>
    %98 = vector.extract_strided_slice %84 {offsets = [0, 96], sizes = [2, 32], strides = [1, 1]} : vector<2x128xf32> to vector<2x32xf32>
    %99 = math.tanh %97 : vector<2x32xf32>
    %100 = arith.mulf %98, %99 : vector<2x32xf32>
    %101 = vector.extract_strided_slice %90 {offsets = [0, 32], sizes = [2, 32], strides = [1, 1]} : vector<2x128xf32> to vector<2x32xf32>
    %102 = arith.mulf %101, %61 : vector<2x32xf32>
    %103 = vector.extract_strided_slice %90 {offsets = [0, 0], sizes = [2, 32], strides = [1, 1]} : vector<2x128xf32> to vector<2x32xf32>
    %104 = vector.extract_strided_slice %91 {offsets = [0, 64], sizes = [2, 32], strides = [1, 1]} : vector<2x128xf32> to vector<2x32xf32>
    %105 = arith.mulf %103, %104 : vector<2x32xf32>
    %106 = arith.addf %102, %105 : vector<2x32xf32>
    %107 = vector.extract_strided_slice %90 {offsets = [0, 96], sizes = [2, 32], strides = [1, 1]} : vector<2x128xf32> to vector<2x32xf32>
    %108 = math.tanh %106 : vector<2x32xf32>
    %109 = arith.mulf %107, %108 : vector<2x32xf32>
    %c1 = arith.constant 1 : index
    %c0_33 = arith.constant 0 : index
    %c0_34 = arith.constant 0 : index
    %110 = vector.load %arg1[%c1, %c0_33, %c0_34] : memref<8x2x1xf32, #tpu.memory_space<vmem>>, vector<1x2x1xf32>
    %111 = vector.shape_cast %110 : vector<1x2x1xf32> to vector<2x1xf32>
    %112 = vector.shape_cast %111 : vector<2x1xf32> to vector<2x1xf32>
    %113 = vector.broadcast %112 : vector<2x1xf32> to vector<2x32xf32>
    %cst_35 = arith.constant 5.000000e-01 : f32
    %114 = vector.broadcast %cst_35 : f32 to vector<2x32xf32>
    %115 = arith.cmpf ogt, %113, %114 : vector<2x32xf32>
    %c6 = arith.constant 6 : index
    %c0_36 = arith.constant 0 : index
    %c0_37 = arith.constant 0 : index
    %116 = vector.load %arg1[%c6, %c0_36, %c0_37] : memref<8x2x1xf32, #tpu.memory_space<vmem>>, vector<1x2x1xf32>
    %117 = vector.shape_cast %116 : vector<1x2x1xf32> to vector<2x1xf32>
    %118 = vector.shape_cast %117 : vector<2x1xf32> to vector<2x1xf32>
    %119 = vector.broadcast %118 : vector<2x1xf32> to vector<2x32xf32>
    %cst_38 = arith.constant 5.000000e-01 : f32
    %120 = vector.broadcast %cst_38 : f32 to vector<2x32xf32>
    %121 = arith.cmpf ogt, %119, %120 : vector<2x32xf32>
    %122 = arith.select %115, %100, %58 : vector<2x32xi1>, vector<2x32xf32>
    %123 = arith.select %115, %97, %59 : vector<2x32xi1>, vector<2x32xf32>
    %124 = arith.select %121, %109, %60 : vector<2x32xi1>, vector<2x32xf32>
    %125 = arith.select %121, %106, %61 : vector<2x32xi1>, vector<2x32xf32>
    %126 = tpu.concatenate %122, %124 in 1 : vector<2x32xf32>, vector<2x32xf32> -> vector<2x64xf32>
    %cst_39 = arith.constant 0.000000e+00 : f32
    %127 = vector.broadcast %cst_39 : f32 to vector<2x32xf32>
    %128 = arith.select %115, %100, %127 : vector<2x32xi1>, vector<2x32xf32>
    %c1_40 = arith.constant 1 : index
    %c0_41 = arith.constant 0 : index
    %c0_42 = arith.constant 0 : index
    %129 = vector.load %arg12[%c1_40, %c0_41, %c0_42] : memref<8x2x32xf32, #tpu.memory_space<vmem>>, vector<1x2x32xf32>
    %130 = vector.shape_cast %129 : vector<1x2x32xf32> to vector<2x32xf32>
    %131 = vector.shape_cast %128 : vector<2x32xf32> to vector<1x2x32xf32>
    tpu.vector_store %arg12[%c1_40, %c0_41, %c0_42], %131 {strides = array<i32>} : memref<8x2x32xf32, #tpu.memory_space<vmem>>, vector<1x2x32xf32>,
    %cst_43 = arith.constant 0.000000e+00 : f32
    %132 = vector.broadcast %cst_43 : f32 to vector<2x32xf32>
    %133 = arith.select %121, %109, %132 : vector<2x32xi1>, vector<2x32xf32>
    %c6_44 = arith.constant 6 : index
    %c0_45 = arith.constant 0 : index
    %c0_46 = arith.constant 0 : index
    %134 = vector.load %arg13[%c6_44, %c0_45, %c0_46] : memref<8x2x32xf32, #tpu.memory_space<vmem>>, vector<1x2x32xf32>
    %135 = vector.shape_cast %134 : vector<1x2x32xf32> to vector<2x32xf32>
    %136 = vector.shape_cast %133 : vector<2x32xf32> to vector<1x2x32xf32>
    tpu.vector_store %arg13[%c6_44, %c0_45, %c0_46], %136 {strides = array<i32>} : memref<8x2x32xf32, #tpu.memory_space<vmem>>, vector<1x2x32xf32>,
    %137 = vector.extract_strided_slice %11 {offsets = [0, 512], sizes = [2, 128], strides = [1, 1]} : vector<2x2048xf32> to vector<2x128xf32>
    %138 = vector.extract_strided_slice %11 {offsets = [0, 1408], sizes = [2, 128], strides = [1, 1]} : vector<2x2048xf32> to vector<2x128xf32>
    %cst_47 = arith.constant dense<0.000000e+00> : vector<2x256xf32>
    %139 = tpu.matmul %126, %12, %cst_47 {dimension_numbers = #tpu.dot_dimension_numbers<[1], [0], [0], [1], [0, 0, 1, 1], [], []>} : vector<2x64xf32>, vector<64x256xf32>, vector<2x256xf32> -> vector<2x256xf32>
    %140 = vector.extract_strided_slice %139 {offsets = [0, 0], sizes = [2, 128], strides = [1, 1]} : vector<2x256xf32> to vector<2x128xf32>
    %141 = arith.addf %137, %140 : vector<2x128xf32>
    %142 = vector.extract_strided_slice %139 {offsets = [0, 128], sizes = [2, 128], strides = [1, 1]} : vector<2x256xf32> to vector<2x128xf32>
    %143 = arith.addf %138, %142 : vector<2x128xf32>
    %144 = arith.negf %141 : vector<2x128xf32>
    %145 = math.exp %144 : vector<2x128xf32>
    %cst_48 = arith.constant 1.000000e+00 : f32
    %146 = vector.broadcast %cst_48 : f32 to vector<2x128xf32>
    %147 = arith.addf %146, %145 : vector<2x128xf32>
    %148 = arith.divf %146, %147 : vector<2x128xf32>
    %149 = math.tanh %141 : vector<2x128xf32>
    %150 = arith.negf %143 : vector<2x128xf32>
    %151 = math.exp %150 : vector<2x128xf32>
    %cst_49 = arith.constant 1.000000e+00 : f32
    %152 = vector.broadcast %cst_49 : f32 to vector<2x128xf32>
    %153 = arith.addf %152, %151 : vector<2x128xf32>
    %154 = arith.divf %152, %153 : vector<2x128xf32>
    %155 = math.tanh %143 : vector<2x128xf32>
    %156 = vector.extract_strided_slice %148 {offsets = [0, 32], sizes = [2, 32], strides = [1, 1]} : vector<2x128xf32> to vector<2x32xf32>
    %157 = arith.mulf %156, %123 : vector<2x32xf32>
    %158 = vector.extract_strided_slice %148 {offsets = [0, 0], sizes = [2, 32], strides = [1, 1]} : vector<2x128xf32> to vector<2x32xf32>
    %159 = vector.extract_strided_slice %149 {offsets = [0, 64], sizes = [2, 32], strides = [1, 1]} : vector<2x128xf32> to vector<2x32xf32>
    %160 = arith.mulf %158, %159 : vector<2x32xf32>
    %161 = arith.addf %157, %160 : vector<2x32xf32>
    %162 = vector.extract_strided_slice %148 {offsets = [0, 96], sizes = [2, 32], strides = [1, 1]} : vector<2x128xf32> to vector<2x32xf32>
    %163 = math.tanh %161 : vector<2x32xf32>
    %164 = arith.mulf %162, %163 : vector<2x32xf32>
    %165 = vector.extract_strided_slice %154 {offsets = [0, 32], sizes = [2, 32], strides = [1, 1]} : vector<2x128xf32> to vector<2x32xf32>
    %166 = arith.mulf %165, %125 : vector<2x32xf32>
    %167 = vector.extract_strided_slice %154 {offsets = [0, 0], sizes = [2, 32], strides = [1, 1]} : vector<2x128xf32> to vector<2x32xf32>
    %168 = vector.extract_strided_slice %155 {offsets = [0, 64], sizes = [2, 32], strides = [1, 1]} : vector<2x128xf32> to vector<2x32xf32>
    %169 = arith.mulf %167, %168 : vector<2x32xf32>
    %170 = arith.addf %166, %169 : vector<2x32xf32>
    %171 = vector.extract_strided_slice %154 {offsets = [0, 96], sizes = [2, 32], strides = [1, 1]} : vector<2x128xf32> to vector<2x32xf32>
    %172 = math.tanh %170 : vector<2x32xf32>
    %173 = arith.mulf %171, %172 : vector<2x32xf32>
    %c2 = arith.constant 2 : index
    %c0_50 = arith.constant 0 : index
    %c0_51 = arith.constant 0 : index
    %174 = vector.load %arg1[%c2, %c0_50, %c0_51] : memref<8x2x1xf32, #tpu.memory_space<vmem>>, vector<1x2x1xf32>
    %175 = vector.shape_cast %174 : vector<1x2x1xf32> to vector<2x1xf32>
    %176 = vector.shape_cast %175 : vector<2x1xf32> to vector<2x1xf32>
    %177 = vector.broadcast %176 : vector<2x1xf32> to vector<2x32xf32>
    %cst_52 = arith.constant 5.000000e-01 : f32
    %178 = vector.broadcast %cst_52 : f32 to vector<2x32xf32>
    %179 = arith.cmpf ogt, %177, %178 : vector<2x32xf32>
    %c5 = arith.constant 5 : index
    %c0_53 = arith.constant 0 : index
    %c0_54 = arith.constant 0 : index
    %180 = vector.load %arg1[%c5, %c0_53, %c0_54] : memref<8x2x1xf32, #tpu.memory_space<vmem>>, vector<1x2x1xf32>
    %181 = vector.shape_cast %180 : vector<1x2x1xf32> to vector<2x1xf32>
    %182 = vector.shape_cast %181 : vector<2x1xf32> to vector<2x1xf32>
    %183 = vector.broadcast %182 : vector<2x1xf32> to vector<2x32xf32>
    %cst_55 = arith.constant 5.000000e-01 : f32
    %184 = vector.broadcast %cst_55 : f32 to vector<2x32xf32>
    %185 = arith.cmpf ogt, %183, %184 : vector<2x32xf32>
    %186 = arith.select %179, %164, %122 : vector<2x32xi1>, vector<2x32xf32>
    %187 = arith.select %179, %161, %123 : vector<2x32xi1>, vector<2x32xf32>
    %188 = arith.select %185, %173, %124 : vector<2x32xi1>, vector<2x32xf32>
    %189 = arith.select %185, %170, %125 : vector<2x32xi1>, vector<2x32xf32>
    %190 = tpu.concatenate %186, %188 in 1 : vector<2x32xf32>, vector<2x32xf32> -> vector<2x64xf32>
    %cst_56 = arith.constant 0.000000e+00 : f32
    %191 = vector.broadcast %cst_56 : f32 to vector<2x32xf32>
    %192 = arith.select %179, %164, %191 : vector<2x32xi1>, vector<2x32xf32>
    %c2_57 = arith.constant 2 : index
    %c0_58 = arith.constant 0 : index
    %c0_59 = arith.constant 0 : index
    %193 = vector.load %arg12[%c2_57, %c0_58, %c0_59] : memref<8x2x32xf32, #tpu.memory_space<vmem>>, vector<1x2x32xf32>
    %194 = vector.shape_cast %193 : vector<1x2x32xf32> to vector<2x32xf32>
    %195 = vector.shape_cast %192 : vector<2x32xf32> to vector<1x2x32xf32>
    tpu.vector_store %arg12[%c2_57, %c0_58, %c0_59], %195 {strides = array<i32>} : memref<8x2x32xf32, #tpu.memory_space<vmem>>, vector<1x2x32xf32>,
    %cst_60 = arith.constant 0.000000e+00 : f32
    %196 = vector.broadcast %cst_60 : f32 to vector<2x32xf32>
    %197 = arith.select %185, %173, %196 : vector<2x32xi1>, vector<2x32xf32>
    %c5_61 = arith.constant 5 : index
    %c0_62 = arith.constant 0 : index
    %c0_63 = arith.constant 0 : index
    %198 = vector.load %arg13[%c5_61, %c0_62, %c0_63] : memref<8x2x32xf32, #tpu.memory_space<vmem>>, vector<1x2x32xf32>
    %199 = vector.shape_cast %198 : vector<1x2x32xf32> to vector<2x32xf32>
    %200 = vector.shape_cast %197 : vector<2x32xf32> to vector<1x2x32xf32>
    tpu.vector_store %arg13[%c5_61, %c0_62, %c0_63], %200 {strides = array<i32>} : memref<8x2x32xf32, #tpu.memory_space<vmem>>, vector<1x2x32xf32>,
    %201 = vector.extract_strided_slice %11 {offsets = [0, 768], sizes = [2, 128], strides = [1, 1]} : vector<2x2048xf32> to vector<2x128xf32>
    %202 = vector.extract_strided_slice %11 {offsets = [0, 1152], sizes = [2, 128], strides = [1, 1]} : vector<2x2048xf32> to vector<2x128xf32>
    %cst_64 = arith.constant dense<0.000000e+00> : vector<2x256xf32>
    %203 = tpu.matmul %190, %12, %cst_64 {dimension_numbers = #tpu.dot_dimension_numbers<[1], [0], [0], [1], [0, 0, 1, 1], [], []>} : vector<2x64xf32>, vector<64x256xf32>, vector<2x256xf32> -> vector<2x256xf32>
    %204 = vector.extract_strided_slice %203 {offsets = [0, 0], sizes = [2, 128], strides = [1, 1]} : vector<2x256xf32> to vector<2x128xf32>
    %205 = arith.addf %201, %204 : vector<2x128xf32>
    %206 = vector.extract_strided_slice %203 {offsets = [0, 128], sizes = [2, 128], strides = [1, 1]} : vector<2x256xf32> to vector<2x128xf32>
    %207 = arith.addf %202, %206 : vector<2x128xf32>
    %208 = arith.negf %205 : vector<2x128xf32>
    %209 = math.exp %208 : vector<2x128xf32>
    %cst_65 = arith.constant 1.000000e+00 : f32
    %210 = vector.broadcast %cst_65 : f32 to vector<2x128xf32>
    %211 = arith.addf %210, %209 : vector<2x128xf32>
    %212 = arith.divf %210, %211 : vector<2x128xf32>
    %213 = math.tanh %205 : vector<2x128xf32>
    %214 = arith.negf %207 : vector<2x128xf32>
    %215 = math.exp %214 : vector<2x128xf32>
    %cst_66 = arith.constant 1.000000e+00 : f32
    %216 = vector.broadcast %cst_66 : f32 to vector<2x128xf32>
    %217 = arith.addf %216, %215 : vector<2x128xf32>
    %218 = arith.divf %216, %217 : vector<2x128xf32>
    %219 = math.tanh %207 : vector<2x128xf32>
    %220 = vector.extract_strided_slice %212 {offsets = [0, 32], sizes = [2, 32], strides = [1, 1]} : vector<2x128xf32> to vector<2x32xf32>
    %221 = arith.mulf %220, %187 : vector<2x32xf32>
    %222 = vector.extract_strided_slice %212 {offsets = [0, 0], sizes = [2, 32], strides = [1, 1]} : vector<2x128xf32> to vector<2x32xf32>
    %223 = vector.extract_strided_slice %213 {offsets = [0, 64], sizes = [2, 32], strides = [1, 1]} : vector<2x128xf32> to vector<2x32xf32>
    %224 = arith.mulf %222, %223 : vector<2x32xf32>
    %225 = arith.addf %221, %224 : vector<2x32xf32>
    %226 = vector.extract_strided_slice %212 {offsets = [0, 96], sizes = [2, 32], strides = [1, 1]} : vector<2x128xf32> to vector<2x32xf32>
    %227 = math.tanh %225 : vector<2x32xf32>
    %228 = arith.mulf %226, %227 : vector<2x32xf32>
    %229 = vector.extract_strided_slice %218 {offsets = [0, 32], sizes = [2, 32], strides = [1, 1]} : vector<2x128xf32> to vector<2x32xf32>
    %230 = arith.mulf %229, %189 : vector<2x32xf32>
    %231 = vector.extract_strided_slice %218 {offsets = [0, 0], sizes = [2, 32], strides = [1, 1]} : vector<2x128xf32> to vector<2x32xf32>
    %232 = vector.extract_strided_slice %219 {offsets = [0, 64], sizes = [2, 32], strides = [1, 1]} : vector<2x128xf32> to vector<2x32xf32>
    %233 = arith.mulf %231, %232 : vector<2x32xf32>
    %234 = arith.addf %230, %233 : vector<2x32xf32>
    %235 = vector.extract_strided_slice %218 {offsets = [0, 96], sizes = [2, 32], strides = [1, 1]} : vector<2x128xf32> to vector<2x32xf32>
    %236 = math.tanh %234 : vector<2x32xf32>
    %237 = arith.mulf %235, %236 : vector<2x32xf32>
    %c3 = arith.constant 3 : index
    %c0_67 = arith.constant 0 : index
    %c0_68 = arith.constant 0 : index
    %238 = vector.load %arg1[%c3, %c0_67, %c0_68] : memref<8x2x1xf32, #tpu.memory_space<vmem>>, vector<1x2x1xf32>
    %239 = vector.shape_cast %238 : vector<1x2x1xf32> to vector<2x1xf32>
    %240 = vector.shape_cast %239 : vector<2x1xf32> to vector<2x1xf32>
    %241 = vector.broadcast %240 : vector<2x1xf32> to vector<2x32xf32>
    %cst_69 = arith.constant 5.000000e-01 : f32
    %242 = vector.broadcast %cst_69 : f32 to vector<2x32xf32>
    %243 = arith.cmpf ogt, %241, %242 : vector<2x32xf32>
    %c4 = arith.constant 4 : index
    %c0_70 = arith.constant 0 : index
    %c0_71 = arith.constant 0 : index
    %244 = vector.load %arg1[%c4, %c0_70, %c0_71] : memref<8x2x1xf32, #tpu.memory_space<vmem>>, vector<1x2x1xf32>
    %245 = vector.shape_cast %244 : vector<1x2x1xf32> to vector<2x1xf32>
    %246 = vector.shape_cast %245 : vector<2x1xf32> to vector<2x1xf32>
    %247 = vector.broadcast %246 : vector<2x1xf32> to vector<2x32xf32>
    %cst_72 = arith.constant 5.000000e-01 : f32
    %248 = vector.broadcast %cst_72 : f32 to vector<2x32xf32>
    %249 = arith.cmpf ogt, %247, %248 : vector<2x32xf32>
    %250 = arith.select %243, %228, %186 : vector<2x32xi1>, vector<2x32xf32>
    %251 = arith.select %243, %225, %187 : vector<2x32xi1>, vector<2x32xf32>
    %252 = arith.select %249, %237, %188 : vector<2x32xi1>, vector<2x32xf32>
    %253 = arith.select %249, %234, %189 : vector<2x32xi1>, vector<2x32xf32>
    %254 = tpu.concatenate %250, %252 in 1 : vector<2x32xf32>, vector<2x32xf32> -> vector<2x64xf32>
    %cst_73 = arith.constant 0.000000e+00 : f32
    %255 = vector.broadcast %cst_73 : f32 to vector<2x32xf32>
    %256 = arith.select %243, %228, %255 : vector<2x32xi1>, vector<2x32xf32>
    %c3_74 = arith.constant 3 : index
    %c0_75 = arith.constant 0 : index
    %c0_76 = arith.constant 0 : index
    %257 = vector.load %arg12[%c3_74, %c0_75, %c0_76] : memref<8x2x32xf32, #tpu.memory_space<vmem>>, vector<1x2x32xf32>
    %258 = vector.shape_cast %257 : vector<1x2x32xf32> to vector<2x32xf32>
    %259 = vector.shape_cast %256 : vector<2x32xf32> to vector<1x2x32xf32>
    tpu.vector_store %arg12[%c3_74, %c0_75, %c0_76], %259 {strides = array<i32>} : memref<8x2x32xf32, #tpu.memory_space<vmem>>, vector<1x2x32xf32>,
    %cst_77 = arith.constant 0.000000e+00 : f32
    %260 = vector.broadcast %cst_77 : f32 to vector<2x32xf32>
    %261 = arith.select %249, %237, %260 : vector<2x32xi1>, vector<2x32xf32>
    %c4_78 = arith.constant 4 : index
    %c0_79 = arith.constant 0 : index
    %c0_80 = arith.constant 0 : index
    %262 = vector.load %arg13[%c4_78, %c0_79, %c0_80] : memref<8x2x32xf32, #tpu.memory_space<vmem>>, vector<1x2x32xf32>
    %263 = vector.shape_cast %262 : vector<1x2x32xf32> to vector<2x32xf32>
    %264 = vector.shape_cast %261 : vector<2x32xf32> to vector<1x2x32xf32>
    tpu.vector_store %arg13[%c4_78, %c0_79, %c0_80], %264 {strides = array<i32>} : memref<8x2x32xf32, #tpu.memory_space<vmem>>, vector<1x2x32xf32>,
    %265 = vector.extract_strided_slice %11 {offsets = [0, 1024], sizes = [2, 128], strides = [1, 1]} : vector<2x2048xf32> to vector<2x128xf32>
    %266 = vector.extract_strided_slice %11 {offsets = [0, 896], sizes = [2, 128], strides = [1, 1]} : vector<2x2048xf32> to vector<2x128xf32>
    %cst_81 = arith.constant dense<0.000000e+00> : vector<2x256xf32>
    %267 = tpu.matmul %254, %12, %cst_81 {dimension_numbers = #tpu.dot_dimension_numbers<[1], [0], [0], [1], [0, 0, 1, 1], [], []>} : vector<2x64xf32>, vector<64x256xf32>, vector<2x256xf32> -> vector<2x256xf32>
    %268 = vector.extract_strided_slice %267 {offsets = [0, 0], sizes = [2, 128], strides = [1, 1]} : vector<2x256xf32> to vector<2x128xf32>
    %269 = arith.addf %265, %268 : vector<2x128xf32>
    %270 = vector.extract_strided_slice %267 {offsets = [0, 128], sizes = [2, 128], strides = [1, 1]} : vector<2x256xf32> to vector<2x128xf32>
    %271 = arith.addf %266, %270 : vector<2x128xf32>
    %272 = arith.negf %269 : vector<2x128xf32>
    %273 = math.exp %272 : vector<2x128xf32>
    %cst_82 = arith.constant 1.000000e+00 : f32
    %274 = vector.broadcast %cst_82 : f32 to vector<2x128xf32>
    %275 = arith.addf %274, %273 : vector<2x128xf32>
    %276 = arith.divf %274, %275 : vector<2x128xf32>
    %277 = math.tanh %269 : vector<2x128xf32>
    %278 = arith.negf %271 : vector<2x128xf32>
    %279 = math.exp %278 : vector<2x128xf32>
    %cst_83 = arith.constant 1.000000e+00 : f32
    %280 = vector.broadcast %cst_83 : f32 to vector<2x128xf32>
    %281 = arith.addf %280, %279 : vector<2x128xf32>
    %282 = arith.divf %280, %281 : vector<2x128xf32>
    %283 = math.tanh %271 : vector<2x128xf32>
    %284 = vector.extract_strided_slice %276 {offsets = [0, 32], sizes = [2, 32], strides = [1, 1]} : vector<2x128xf32> to vector<2x32xf32>
    %285 = arith.mulf %284, %251 : vector<2x32xf32>
    %286 = vector.extract_strided_slice %276 {offsets = [0, 0], sizes = [2, 32], strides = [1, 1]} : vector<2x128xf32> to vector<2x32xf32>
    %287 = vector.extract_strided_slice %277 {offsets = [0, 64], sizes = [2, 32], strides = [1, 1]} : vector<2x128xf32> to vector<2x32xf32>
    %288 = arith.mulf %286, %287 : vector<2x32xf32>
    %289 = arith.addf %285, %288 : vector<2x32xf32>
    %290 = vector.extract_strided_slice %276 {offsets = [0, 96], sizes = [2, 32], strides = [1, 1]} : vector<2x128xf32> to vector<2x32xf32>
    %291 = math.tanh %289 : vector<2x32xf32>
    %292 = arith.mulf %290, %291 : vector<2x32xf32>
    %293 = vector.extract_strided_slice %282 {offsets = [0, 32], sizes = [2, 32], strides = [1, 1]} : vector<2x128xf32> to vector<2x32xf32>
    %294 = arith.mulf %293, %253 : vector<2x32xf32>
    %295 = vector.extract_strided_slice %282 {offsets = [0, 0], sizes = [2, 32], strides = [1, 1]} : vector<2x128xf32> to vector<2x32xf32>
    %296 = vector.extract_strided_slice %283 {offsets = [0, 64], sizes = [2, 32], strides = [1, 1]} : vector<2x128xf32> to vector<2x32xf32>
    %297 = arith.mulf %295, %296 : vector<2x32xf32>
    %298 = arith.addf %294, %297 : vector<2x32xf32>
    %299 = vector.extract_strided_slice %282 {offsets = [0, 96], sizes = [2, 32], strides = [1, 1]} : vector<2x128xf32> to vector<2x32xf32>
    %300 = math.tanh %298 : vector<2x32xf32>
    %301 = arith.mulf %299, %300 : vector<2x32xf32>
    %c4_84 = arith.constant 4 : index
    %c0_85 = arith.constant 0 : index
    %c0_86 = arith.constant 0 : index
    %302 = vector.load %arg1[%c4_84, %c0_85, %c0_86] : memref<8x2x1xf32, #tpu.memory_space<vmem>>, vector<1x2x1xf32>
    %303 = vector.shape_cast %302 : vector<1x2x1xf32> to vector<2x1xf32>
    %304 = vector.shape_cast %303 : vector<2x1xf32> to vector<2x1xf32>
    %305 = vector.broadcast %304 : vector<2x1xf32> to vector<2x32xf32>
    %cst_87 = arith.constant 5.000000e-01 : f32
    %306 = vector.broadcast %cst_87 : f32 to vector<2x32xf32>
    %307 = arith.cmpf ogt, %305, %306 : vector<2x32xf32>
    %c3_88 = arith.constant 3 : index
    %c0_89 = arith.constant 0 : index
    %c0_90 = arith.constant 0 : index
    %308 = vector.load %arg1[%c3_88, %c0_89, %c0_90] : memref<8x2x1xf32, #tpu.memory_space<vmem>>, vector<1x2x1xf32>
    %309 = vector.shape_cast %308 : vector<1x2x1xf32> to vector<2x1xf32>
    %310 = vector.shape_cast %309 : vector<2x1xf32> to vector<2x1xf32>
    %311 = vector.broadcast %310 : vector<2x1xf32> to vector<2x32xf32>
    %cst_91 = arith.constant 5.000000e-01 : f32
    %312 = vector.broadcast %cst_91 : f32 to vector<2x32xf32>
    %313 = arith.cmpf ogt, %311, %312 : vector<2x32xf32>
    %314 = arith.select %307, %292, %250 : vector<2x32xi1>, vector<2x32xf32>
    %315 = arith.select %307, %289, %251 : vector<2x32xi1>, vector<2x32xf32>
    %316 = arith.select %313, %301, %252 : vector<2x32xi1>, vector<2x32xf32>
    %317 = arith.select %313, %298, %253 : vector<2x32xi1>, vector<2x32xf32>
    %318 = tpu.concatenate %314, %316 in 1 : vector<2x32xf32>, vector<2x32xf32> -> vector<2x64xf32>
    %cst_92 = arith.constant 0.000000e+00 : f32
    %319 = vector.broadcast %cst_92 : f32 to vector<2x32xf32>
    %320 = arith.select %307, %292, %319 : vector<2x32xi1>, vector<2x32xf32>
    %c4_93 = arith.constant 4 : index
    %c0_94 = arith.constant 0 : index
    %c0_95 = arith.constant 0 : index
    %321 = vector.load %arg12[%c4_93, %c0_94, %c0_95] : memref<8x2x32xf32, #tpu.memory_space<vmem>>, vector<1x2x32xf32>
    %322 = vector.shape_cast %321 : vector<1x2x32xf32> to vector<2x32xf32>
    %323 = vector.shape_cast %320 : vector<2x32xf32> to vector<1x2x32xf32>
    tpu.vector_store %arg12[%c4_93, %c0_94, %c0_95], %323 {strides = array<i32>} : memref<8x2x32xf32, #tpu.memory_space<vmem>>, vector<1x2x32xf32>,
    %cst_96 = arith.constant 0.000000e+00 : f32
    %324 = vector.broadcast %cst_96 : f32 to vector<2x32xf32>
    %325 = arith.select %313, %301, %324 : vector<2x32xi1>, vector<2x32xf32>
    %c3_97 = arith.constant 3 : index
    %c0_98 = arith.constant 0 : index
    %c0_99 = arith.constant 0 : index
    %326 = vector.load %arg13[%c3_97, %c0_98, %c0_99] : memref<8x2x32xf32, #tpu.memory_space<vmem>>, vector<1x2x32xf32>
    %327 = vector.shape_cast %326 : vector<1x2x32xf32> to vector<2x32xf32>
    %328 = vector.shape_cast %325 : vector<2x32xf32> to vector<1x2x32xf32>
    tpu.vector_store %arg13[%c3_97, %c0_98, %c0_99], %328 {strides = array<i32>} : memref<8x2x32xf32, #tpu.memory_space<vmem>>, vector<1x2x32xf32>,
    %329 = vector.extract_strided_slice %11 {offsets = [0, 1280], sizes = [2, 128], strides = [1, 1]} : vector<2x2048xf32> to vector<2x128xf32>
    %330 = vector.extract_strided_slice %11 {offsets = [0, 640], sizes = [2, 128], strides = [1, 1]} : vector<2x2048xf32> to vector<2x128xf32>
    %cst_100 = arith.constant dense<0.000000e+00> : vector<2x256xf32>
    %331 = tpu.matmul %318, %12, %cst_100 {dimension_numbers = #tpu.dot_dimension_numbers<[1], [0], [0], [1], [0, 0, 1, 1], [], []>} : vector<2x64xf32>, vector<64x256xf32>, vector<2x256xf32> -> vector<2x256xf32>
    %332 = vector.extract_strided_slice %331 {offsets = [0, 0], sizes = [2, 128], strides = [1, 1]} : vector<2x256xf32> to vector<2x128xf32>
    %333 = arith.addf %329, %332 : vector<2x128xf32>
    %334 = vector.extract_strided_slice %331 {offsets = [0, 128], sizes = [2, 128], strides = [1, 1]} : vector<2x256xf32> to vector<2x128xf32>
    %335 = arith.addf %330, %334 : vector<2x128xf32>
    %336 = arith.negf %333 : vector<2x128xf32>
    %337 = math.exp %336 : vector<2x128xf32>
    %cst_101 = arith.constant 1.000000e+00 : f32
    %338 = vector.broadcast %cst_101 : f32 to vector<2x128xf32>
    %339 = arith.addf %338, %337 : vector<2x128xf32>
    %340 = arith.divf %338, %339 : vector<2x128xf32>
    %341 = math.tanh %333 : vector<2x128xf32>
    %342 = arith.negf %335 : vector<2x128xf32>
    %343 = math.exp %342 : vector<2x128xf32>
    %cst_102 = arith.constant 1.000000e+00 : f32
    %344 = vector.broadcast %cst_102 : f32 to vector<2x128xf32>
    %345 = arith.addf %344, %343 : vector<2x128xf32>
    %346 = arith.divf %344, %345 : vector<2x128xf32>
    %347 = math.tanh %335 : vector<2x128xf32>
    %348 = vector.extract_strided_slice %340 {offsets = [0, 32], sizes = [2, 32], strides = [1, 1]} : vector<2x128xf32> to vector<2x32xf32>
    %349 = arith.mulf %348, %315 : vector<2x32xf32>
    %350 = vector.extract_strided_slice %340 {offsets = [0, 0], sizes = [2, 32], strides = [1, 1]} : vector<2x128xf32> to vector<2x32xf32>
    %351 = vector.extract_strided_slice %341 {offsets = [0, 64], sizes = [2, 32], strides = [1, 1]} : vector<2x128xf32> to vector<2x32xf32>
    %352 = arith.mulf %350, %351 : vector<2x32xf32>
    %353 = arith.addf %349, %352 : vector<2x32xf32>
    %354 = vector.extract_strided_slice %340 {offsets = [0, 96], sizes = [2, 32], strides = [1, 1]} : vector<2x128xf32> to vector<2x32xf32>
    %355 = math.tanh %353 : vector<2x32xf32>
    %356 = arith.mulf %354, %355 : vector<2x32xf32>
    %357 = vector.extract_strided_slice %346 {offsets = [0, 32], sizes = [2, 32], strides = [1, 1]} : vector<2x128xf32> to vector<2x32xf32>
    %358 = arith.mulf %357, %317 : vector<2x32xf32>
    %359 = vector.extract_strided_slice %346 {offsets = [0, 0], sizes = [2, 32], strides = [1, 1]} : vector<2x128xf32> to vector<2x32xf32>
    %360 = vector.extract_strided_slice %347 {offsets = [0, 64], sizes = [2, 32], strides = [1, 1]} : vector<2x128xf32> to vector<2x32xf32>
    %361 = arith.mulf %359, %360 : vector<2x32xf32>
    %362 = arith.addf %358, %361 : vector<2x32xf32>
    %363 = vector.extract_strided_slice %346 {offsets = [0, 96], sizes = [2, 32], strides = [1, 1]} : vector<2x128xf32> to vector<2x32xf32>
    %364 = math.tanh %362 : vector<2x32xf32>
    %365 = arith.mulf %363, %364 : vector<2x32xf32>
    %c5_103 = arith.constant 5 : index
    %c0_104 = arith.constant 0 : index
    %c0_105 = arith.constant 0 : index
    %366 = vector.load %arg1[%c5_103, %c0_104, %c0_105] : memref<8x2x1xf32, #tpu.memory_space<vmem>>, vector<1x2x1xf32>
    %367 = vector.shape_cast %366 : vector<1x2x1xf32> to vector<2x1xf32>
    %368 = vector.shape_cast %367 : vector<2x1xf32> to vector<2x1xf32>
    %369 = vector.broadcast %368 : vector<2x1xf32> to vector<2x32xf32>
    %cst_106 = arith.constant 5.000000e-01 : f32
    %370 = vector.broadcast %cst_106 : f32 to vector<2x32xf32>
    %371 = arith.cmpf ogt, %369, %370 : vector<2x32xf32>
    %c2_107 = arith.constant 2 : index
    %c0_108 = arith.constant 0 : index
    %c0_109 = arith.constant 0 : index
    %372 = vector.load %arg1[%c2_107, %c0_108, %c0_109] : memref<8x2x1xf32, #tpu.memory_space<vmem>>, vector<1x2x1xf32>
    %373 = vector.shape_cast %372 : vector<1x2x1xf32> to vector<2x1xf32>
    %374 = vector.shape_cast %373 : vector<2x1xf32> to vector<2x1xf32>
    %375 = vector.broadcast %374 : vector<2x1xf32> to vector<2x32xf32>
    %cst_110 = arith.constant 5.000000e-01 : f32
    %376 = vector.broadcast %cst_110 : f32 to vector<2x32xf32>
    %377 = arith.cmpf ogt, %375, %376 : vector<2x32xf32>
    %378 = arith.select %371, %356, %314 : vector<2x32xi1>, vector<2x32xf32>
    %379 = arith.select %371, %353, %315 : vector<2x32xi1>, vector<2x32xf32>
    %380 = arith.select %377, %365, %316 : vector<2x32xi1>, vector<2x32xf32>
    %381 = arith.select %377, %362, %317 : vector<2x32xi1>, vector<2x32xf32>
    %382 = tpu.concatenate %378, %380 in 1 : vector<2x32xf32>, vector<2x32xf32> -> vector<2x64xf32>
    %cst_111 = arith.constant 0.000000e+00 : f32
    %383 = vector.broadcast %cst_111 : f32 to vector<2x32xf32>
    %384 = arith.select %371, %356, %383 : vector<2x32xi1>, vector<2x32xf32>
    %c5_112 = arith.constant 5 : index
    %c0_113 = arith.constant 0 : index
    %c0_114 = arith.constant 0 : index
    %385 = vector.load %arg12[%c5_112, %c0_113, %c0_114] : memref<8x2x32xf32, #tpu.memory_space<vmem>>, vector<1x2x32xf32>
    %386 = vector.shape_cast %385 : vector<1x2x32xf32> to vector<2x32xf32>
    %387 = vector.shape_cast %384 : vector<2x32xf32> to vector<1x2x32xf32>
    tpu.vector_store %arg12[%c5_112, %c0_113, %c0_114], %387 {strides = array<i32>} : memref<8x2x32xf32, #tpu.memory_space<vmem>>, vector<1x2x32xf32>,
    %cst_115 = arith.constant 0.000000e+00 : f32
    %388 = vector.broadcast %cst_115 : f32 to vector<2x32xf32>
    %389 = arith.select %377, %365, %388 : vector<2x32xi1>, vector<2x32xf32>
    %c2_116 = arith.constant 2 : index
    %c0_117 = arith.constant 0 : index
    %c0_118 = arith.constant 0 : index
    %390 = vector.load %arg13[%c2_116, %c0_117, %c0_118] : memref<8x2x32xf32, #tpu.memory_space<vmem>>, vector<1x2x32xf32>
    %391 = vector.shape_cast %390 : vector<1x2x32xf32> to vector<2x32xf32>
    %392 = vector.shape_cast %389 : vector<2x32xf32> to vector<1x2x32xf32>
    tpu.vector_store %arg13[%c2_116, %c0_117, %c0_118], %392 {strides = array<i32>} : memref<8x2x32xf32, #tpu.memory_space<vmem>>, vector<1x2x32xf32>,
    %393 = vector.extract_strided_slice %11 {offsets = [0, 1536], sizes = [2, 128], strides = [1, 1]} : vector<2x2048xf32> to vector<2x128xf32>
    %394 = vector.extract_strided_slice %11 {offsets = [0, 384], sizes = [2, 128], strides = [1, 1]} : vector<2x2048xf32> to vector<2x128xf32>
    %cst_119 = arith.constant dense<0.000000e+00> : vector<2x256xf32>
    %395 = tpu.matmul %382, %12, %cst_119 {dimension_numbers = #tpu.dot_dimension_numbers<[1], [0], [0], [1], [0, 0, 1, 1], [], []>} : vector<2x64xf32>, vector<64x256xf32>, vector<2x256xf32> -> vector<2x256xf32>
    %396 = vector.extract_strided_slice %395 {offsets = [0, 0], sizes = [2, 128], strides = [1, 1]} : vector<2x256xf32> to vector<2x128xf32>
    %397 = arith.addf %393, %396 : vector<2x128xf32>
    %398 = vector.extract_strided_slice %395 {offsets = [0, 128], sizes = [2, 128], strides = [1, 1]} : vector<2x256xf32> to vector<2x128xf32>
    %399 = arith.addf %394, %398 : vector<2x128xf32>
    %400 = arith.negf %397 : vector<2x128xf32>
    %401 = math.exp %400 : vector<2x128xf32>
    %cst_120 = arith.constant 1.000000e+00 : f32
    %402 = vector.broadcast %cst_120 : f32 to vector<2x128xf32>
    %403 = arith.addf %402, %401 : vector<2x128xf32>
    %404 = arith.divf %402, %403 : vector<2x128xf32>
    %405 = math.tanh %397 : vector<2x128xf32>
    %406 = arith.negf %399 : vector<2x128xf32>
    %407 = math.exp %406 : vector<2x128xf32>
    %cst_121 = arith.constant 1.000000e+00 : f32
    %408 = vector.broadcast %cst_121 : f32 to vector<2x128xf32>
    %409 = arith.addf %408, %407 : vector<2x128xf32>
    %410 = arith.divf %408, %409 : vector<2x128xf32>
    %411 = math.tanh %399 : vector<2x128xf32>
    %412 = vector.extract_strided_slice %404 {offsets = [0, 32], sizes = [2, 32], strides = [1, 1]} : vector<2x128xf32> to vector<2x32xf32>
    %413 = arith.mulf %412, %379 : vector<2x32xf32>
    %414 = vector.extract_strided_slice %404 {offsets = [0, 0], sizes = [2, 32], strides = [1, 1]} : vector<2x128xf32> to vector<2x32xf32>
    %415 = vector.extract_strided_slice %405 {offsets = [0, 64], sizes = [2, 32], strides = [1, 1]} : vector<2x128xf32> to vector<2x32xf32>
    %416 = arith.mulf %414, %415 : vector<2x32xf32>
    %417 = arith.addf %413, %416 : vector<2x32xf32>
    %418 = vector.extract_strided_slice %404 {offsets = [0, 96], sizes = [2, 32], strides = [1, 1]} : vector<2x128xf32> to vector<2x32xf32>
    %419 = math.tanh %417 : vector<2x32xf32>
    %420 = arith.mulf %418, %419 : vector<2x32xf32>
    %421 = vector.extract_strided_slice %410 {offsets = [0, 32], sizes = [2, 32], strides = [1, 1]} : vector<2x128xf32> to vector<2x32xf32>
    %422 = arith.mulf %421, %381 : vector<2x32xf32>
    %423 = vector.extract_strided_slice %410 {offsets = [0, 0], sizes = [2, 32], strides = [1, 1]} : vector<2x128xf32> to vector<2x32xf32>
    %424 = vector.extract_strided_slice %411 {offsets = [0, 64], sizes = [2, 32], strides = [1, 1]} : vector<2x128xf32> to vector<2x32xf32>
    %425 = arith.mulf %423, %424 : vector<2x32xf32>
    %426 = arith.addf %422, %425 : vector<2x32xf32>
    %427 = vector.extract_strided_slice %410 {offsets = [0, 96], sizes = [2, 32], strides = [1, 1]} : vector<2x128xf32> to vector<2x32xf32>
    %428 = math.tanh %426 : vector<2x32xf32>
    %429 = arith.mulf %427, %428 : vector<2x32xf32>
    %c6_122 = arith.constant 6 : index
    %c0_123 = arith.constant 0 : index
    %c0_124 = arith.constant 0 : index
    %430 = vector.load %arg1[%c6_122, %c0_123, %c0_124] : memref<8x2x1xf32, #tpu.memory_space<vmem>>, vector<1x2x1xf32>
    %431 = vector.shape_cast %430 : vector<1x2x1xf32> to vector<2x1xf32>
    %432 = vector.shape_cast %431 : vector<2x1xf32> to vector<2x1xf32>
    %433 = vector.broadcast %432 : vector<2x1xf32> to vector<2x32xf32>
    %cst_125 = arith.constant 5.000000e-01 : f32
    %434 = vector.broadcast %cst_125 : f32 to vector<2x32xf32>
    %435 = arith.cmpf ogt, %433, %434 : vector<2x32xf32>
    %c1_126 = arith.constant 1 : index
    %c0_127 = arith.constant 0 : index
    %c0_128 = arith.constant 0 : index
    %436 = vector.load %arg1[%c1_126, %c0_127, %c0_128] : memref<8x2x1xf32, #tpu.memory_space<vmem>>, vector<1x2x1xf32>
    %437 = vector.shape_cast %436 : vector<1x2x1xf32> to vector<2x1xf32>
    %438 = vector.shape_cast %437 : vector<2x1xf32> to vector<2x1xf32>
    %439 = vector.broadcast %438 : vector<2x1xf32> to vector<2x32xf32>
    %cst_129 = arith.constant 5.000000e-01 : f32
    %440 = vector.broadcast %cst_129 : f32 to vector<2x32xf32>
    %441 = arith.cmpf ogt, %439, %440 : vector<2x32xf32>
    %442 = arith.select %435, %420, %378 : vector<2x32xi1>, vector<2x32xf32>
    %443 = arith.select %435, %417, %379 : vector<2x32xi1>, vector<2x32xf32>
    %444 = arith.select %441, %429, %380 : vector<2x32xi1>, vector<2x32xf32>
    %445 = arith.select %441, %426, %381 : vector<2x32xi1>, vector<2x32xf32>
    %446 = tpu.concatenate %442, %444 in 1 : vector<2x32xf32>, vector<2x32xf32> -> vector<2x64xf32>
    %cst_130 = arith.constant 0.000000e+00 : f32
    %447 = vector.broadcast %cst_130 : f32 to vector<2x32xf32>
    %448 = arith.select %435, %420, %447 : vector<2x32xi1>, vector<2x32xf32>
    %c6_131 = arith.constant 6 : index
    %c0_132 = arith.constant 0 : index
    %c0_133 = arith.constant 0 : index
    %449 = vector.load %arg12[%c6_131, %c0_132, %c0_133] : memref<8x2x32xf32, #tpu.memory_space<vmem>>, vector<1x2x32xf32>
    %450 = vector.shape_cast %449 : vector<1x2x32xf32> to vector<2x32xf32>
    %451 = vector.shape_cast %448 : vector<2x32xf32> to vector<1x2x32xf32>
    tpu.vector_store %arg12[%c6_131, %c0_132, %c0_133], %451 {strides = array<i32>} : memref<8x2x32xf32, #tpu.memory_space<vmem>>, vector<1x2x32xf32>,
    %cst_134 = arith.constant 0.000000e+00 : f32
    %452 = vector.broadcast %cst_134 : f32 to vector<2x32xf32>
    %453 = arith.select %441, %429, %452 : vector<2x32xi1>, vector<2x32xf32>
    %c1_135 = arith.constant 1 : index
    %c0_136 = arith.constant 0 : index
    %c0_137 = arith.constant 0 : index
    %454 = vector.load %arg13[%c1_135, %c0_136, %c0_137] : memref<8x2x32xf32, #tpu.memory_space<vmem>>, vector<1x2x32xf32>
    %455 = vector.shape_cast %454 : vector<1x2x32xf32> to vector<2x32xf32>
    %456 = vector.shape_cast %453 : vector<2x32xf32> to vector<1x2x32xf32>
    tpu.vector_store %arg13[%c1_135, %c0_136, %c0_137], %456 {strides = array<i32>} : memref<8x2x32xf32, #tpu.memory_space<vmem>>, vector<1x2x32xf32>,
    %457 = vector.extract_strided_slice %11 {offsets = [0, 1792], sizes = [2, 128], strides = [1, 1]} : vector<2x2048xf32> to vector<2x128xf32>
    %458 = vector.extract_strided_slice %11 {offsets = [0, 128], sizes = [2, 128], strides = [1, 1]} : vector<2x2048xf32> to vector<2x128xf32>
    %cst_138 = arith.constant dense<0.000000e+00> : vector<2x256xf32>
    %459 = tpu.matmul %446, %12, %cst_138 {dimension_numbers = #tpu.dot_dimension_numbers<[1], [0], [0], [1], [0, 0, 1, 1], [], []>} : vector<2x64xf32>, vector<64x256xf32>, vector<2x256xf32> -> vector<2x256xf32>
    %460 = vector.extract_strided_slice %459 {offsets = [0, 0], sizes = [2, 128], strides = [1, 1]} : vector<2x256xf32> to vector<2x128xf32>
    %461 = arith.addf %457, %460 : vector<2x128xf32>
    %462 = vector.extract_strided_slice %459 {offsets = [0, 128], sizes = [2, 128], strides = [1, 1]} : vector<2x256xf32> to vector<2x128xf32>
    %463 = arith.addf %458, %462 : vector<2x128xf32>
    %464 = arith.negf %461 : vector<2x128xf32>
    %465 = math.exp %464 : vector<2x128xf32>
    %cst_139 = arith.constant 1.000000e+00 : f32
    %466 = vector.broadcast %cst_139 : f32 to vector<2x128xf32>
    %467 = arith.addf %466, %465 : vector<2x128xf32>
    %468 = arith.divf %466, %467 : vector<2x128xf32>
    %469 = math.tanh %461 : vector<2x128xf32>
    %470 = arith.negf %463 : vector<2x128xf32>
    %471 = math.exp %470 : vector<2x128xf32>
    %cst_140 = arith.constant 1.000000e+00 : f32
    %472 = vector.broadcast %cst_140 : f32 to vector<2x128xf32>
    %473 = arith.addf %472, %471 : vector<2x128xf32>
    %474 = arith.divf %472, %473 : vector<2x128xf32>
    %475 = math.tanh %463 : vector<2x128xf32>
    %476 = vector.extract_strided_slice %468 {offsets = [0, 32], sizes = [2, 32], strides = [1, 1]} : vector<2x128xf32> to vector<2x32xf32>
    %477 = arith.mulf %476, %443 : vector<2x32xf32>
    %478 = vector.extract_strided_slice %468 {offsets = [0, 0], sizes = [2, 32], strides = [1, 1]} : vector<2x128xf32> to vector<2x32xf32>
    %479 = vector.extract_strided_slice %469 {offsets = [0, 64], sizes = [2, 32], strides = [1, 1]} : vector<2x128xf32> to vector<2x32xf32>
    %480 = arith.mulf %478, %479 : vector<2x32xf32>
    %481 = arith.addf %477, %480 : vector<2x32xf32>
    %482 = vector.extract_strided_slice %468 {offsets = [0, 96], sizes = [2, 32], strides = [1, 1]} : vector<2x128xf32> to vector<2x32xf32>
    %483 = math.tanh %481 : vector<2x32xf32>
    %484 = arith.mulf %482, %483 : vector<2x32xf32>
    %485 = vector.extract_strided_slice %474 {offsets = [0, 32], sizes = [2, 32], strides = [1, 1]} : vector<2x128xf32> to vector<2x32xf32>
    %486 = arith.mulf %485, %445 : vector<2x32xf32>
    %487 = vector.extract_strided_slice %474 {offsets = [0, 0], sizes = [2, 32], strides = [1, 1]} : vector<2x128xf32> to vector<2x32xf32>
    %488 = vector.extract_strided_slice %475 {offsets = [0, 64], sizes = [2, 32], strides = [1, 1]} : vector<2x128xf32> to vector<2x32xf32>
    %489 = arith.mulf %487, %488 : vector<2x32xf32>
    %490 = arith.addf %486, %489 : vector<2x32xf32>
    %491 = vector.extract_strided_slice %474 {offsets = [0, 96], sizes = [2, 32], strides = [1, 1]} : vector<2x128xf32> to vector<2x32xf32>
    %492 = math.tanh %490 : vector<2x32xf32>
    %493 = arith.mulf %491, %492 : vector<2x32xf32>
    %c7_141 = arith.constant 7 : index
    %c0_142 = arith.constant 0 : index
    %c0_143 = arith.constant 0 : index
    %494 = vector.load %arg1[%c7_141, %c0_142, %c0_143] : memref<8x2x1xf32, #tpu.memory_space<vmem>>, vector<1x2x1xf32>
    %495 = vector.shape_cast %494 : vector<1x2x1xf32> to vector<2x1xf32>
    %496 = vector.shape_cast %495 : vector<2x1xf32> to vector<2x1xf32>
    %497 = vector.broadcast %496 : vector<2x1xf32> to vector<2x32xf32>
    %cst_144 = arith.constant 5.000000e-01 : f32
    %498 = vector.broadcast %cst_144 : f32 to vector<2x32xf32>
    %499 = arith.cmpf ogt, %497, %498 : vector<2x32xf32>
    %c0_145 = arith.constant 0 : index
    %c0_146 = arith.constant 0 : index
    %c0_147 = arith.constant 0 : index
    %500 = vector.load %arg1[%c0_145, %c0_146, %c0_147] : memref<8x2x1xf32, #tpu.memory_space<vmem>>, vector<1x2x1xf32>
    %501 = vector.shape_cast %500 : vector<1x2x1xf32> to vector<2x1xf32>
    %502 = vector.shape_cast %501 : vector<2x1xf32> to vector<2x1xf32>
    %503 = vector.broadcast %502 : vector<2x1xf32> to vector<2x32xf32>
    %cst_148 = arith.constant 5.000000e-01 : f32
    %504 = vector.broadcast %cst_148 : f32 to vector<2x32xf32>
    %505 = arith.cmpf ogt, %503, %504 : vector<2x32xf32>
    %cst_149 = arith.constant 0.000000e+00 : f32
    %506 = vector.broadcast %cst_149 : f32 to vector<2x32xf32>
    %507 = arith.select %499, %484, %506 : vector<2x32xi1>, vector<2x32xf32>
    %c7_150 = arith.constant 7 : index
    %c0_151 = arith.constant 0 : index
    %c0_152 = arith.constant 0 : index
    %508 = vector.load %arg12[%c7_150, %c0_151, %c0_152] : memref<8x2x32xf32, #tpu.memory_space<vmem>>, vector<1x2x32xf32>
    %509 = vector.shape_cast %508 : vector<1x2x32xf32> to vector<2x32xf32>
    %510 = vector.shape_cast %507 : vector<2x32xf32> to vector<1x2x32xf32>
    tpu.vector_store %arg12[%c7_150, %c0_151, %c0_152], %510 {strides = array<i32>} : memref<8x2x32xf32, #tpu.memory_space<vmem>>, vector<1x2x32xf32>,
    %cst_153 = arith.constant 0.000000e+00 : f32
    %511 = vector.broadcast %cst_153 : f32 to vector<2x32xf32>
    %512 = arith.select %505, %493, %511 : vector<2x32xi1>, vector<2x32xf32>
    %c0_154 = arith.constant 0 : index
    %c0_155 = arith.constant 0 : index
    %c0_156 = arith.constant 0 : index
    %513 = vector.load %arg13[%c0_154, %c0_155, %c0_156] : memref<8x2x32xf32, #tpu.memory_space<vmem>>, vector<1x2x32xf32>
    %514 = vector.shape_cast %513 : vector<1x2x32xf32> to vector<2x32xf32>
    %515 = vector.shape_cast %512 : vector<2x32xf32> to vector<1x2x32xf32>
    tpu.vector_store %arg13[%c0_154, %c0_155, %c0_156], %515 {strides = array<i32>} : memref<8x2x32xf32, #tpu.memory_space<vmem>>, vector<1x2x32xf32>,
    %c0_157 = arith.constant 0 : index
    %c0_158 = arith.constant 0 : index
    %c0_159 = arith.constant 0 : index
    %516 = vector.load %arg12[%c0_157, %c0_158, %c0_159] : memref<8x2x32xf32, #tpu.memory_space<vmem>>, vector<8x2x32xf32>
    %c0_160 = arith.constant 0 : index
    %c0_161 = arith.constant 0 : index
    %c0_162 = arith.constant 0 : index
    %517 = vector.load %arg13[%c0_160, %c0_161, %c0_162] : memref<8x2x32xf32, #tpu.memory_space<vmem>>, vector<8x2x32xf32>
    %518 = tpu.concatenate %516, %517 in 2 : vector<8x2x32xf32>, vector<8x2x32xf32> -> vector<8x2x64xf32>
    %519 = vector.shape_cast %518 : vector<8x2x64xf32> to vector<16x64xf32>
    %c0_163 = arith.constant 0 : index
    %c0_164 = arith.constant 0 : index
    %520 = vector.load %arg8[%c0_163, %c0_164] : memref<64x64xf32, #tpu.memory_space<vmem>>, vector<64x64xf32>
    %cst_165 = arith.constant dense<0.000000e+00> : vector<16x64xf32>
    %521 = tpu.matmul %519, %520, %cst_165 {dimension_numbers = #tpu.dot_dimension_numbers<[1], [0], [0], [1], [0, 0, 1, 1], [], []>} : vector<16x64xf32>, vector<64x64xf32>, vector<16x64xf32> -> vector<16x64xf32>
    %c0_166 = arith.constant 0 : index
    %c0_167 = arith.constant 0 : index
    %522 = vector.load %arg9[%c0_166, %c0_167] : memref<1x64xf32, #tpu.memory_space<vmem>>, vector<1x64xf32>
    %523 = vector.broadcast %522 : vector<1x64xf32> to vector<16x64xf32>
    %524 = arith.addf %521, %523 : vector<16x64xf32>
    %525 = math.tanh %524 : vector<16x64xf32>
    %c0_168 = arith.constant 0 : index
    %c0_169 = arith.constant 0 : index
    %526 = vector.load %arg10[%c0_168, %c0_169] : memref<1x64xf32, #tpu.memory_space<vmem>>, vector<1x64xf32>
    %527 = vector.broadcast %526 : vector<1x64xf32> to vector<16x64xf32>
    %528 = arith.mulf %525, %527 : vector<16x64xf32>
    %cst_170 = arith.constant dense<0.000000e+00> : vector<16xf32>
    %529 = vector.multi_reduction <add>, %528, %cst_170 [1] : vector<16x64xf32> to vector<16xf32>
    %530 = vector.shape_cast %529 : vector<16xf32> to vector<16x1xf32>
    %531 = vector.shape_cast %530 : vector<16x1xf32> to vector<8x2x1xf32>
    %c0_171 = arith.constant 0 : index
    %c0_172 = arith.constant 0 : index
    %c0_173 = arith.constant 0 : index
    %532 = vector.load %arg1[%c0_171, %c0_172, %c0_173] : memref<8x2x1xf32, #tpu.memory_space<vmem>>, vector<8x2x1xf32>
    %cst_174 = arith.constant 5.000000e-01 : f32
    %533 = vector.broadcast %cst_174 : f32 to vector<8x2x1xf32>
    %534 = arith.cmpf ogt, %532, %533 : vector<8x2x1xf32>
    %cst_175 = arith.constant -1.000000e+32 : f32
    %535 = vector.broadcast %cst_175 : f32 to vector<8x2x1xf32>
    %536 = arith.select %534, %531, %535 : vector<8x2x1xi1>, vector<8x2x1xf32>
    %cst_176 = arith.constant dense<0xFF800000> : vector<2x1xf32>
    %537 = vector.multi_reduction <maximumf>, %536, %cst_176 [0] : vector<8x2x1xf32> to vector<2x1xf32>
    %538 = vector.shape_cast %537 : vector<2x1xf32> to vector<1x2x1xf32>
    %539 = vector.broadcast %538 : vector<1x2x1xf32> to vector<8x2x1xf32>
    %540 = arith.subf %536, %539 : vector<8x2x1xf32>
    %541 = math.exp %540 : vector<8x2x1xf32>
    %cst_177 = arith.constant dense<0.000000e+00> : vector<2x1xf32>
    %542 = vector.multi_reduction <add>, %541, %cst_177 [0] : vector<8x2x1xf32> to vector<2x1xf32>
    %543 = vector.shape_cast %542 : vector<2x1xf32> to vector<1x2x1xf32>
    %544 = tpu.reciprocal %543 {approx = true} : vector<1x2x1xf32> -> vector<1x2x1xf32>
    %545 = arith.mulf %543, %544 : vector<1x2x1xf32>
    %cst_178 = arith.constant 2.000000e+00 : f32
    %546 = vector.broadcast %cst_178 : f32 to vector<1x2x1xf32>
    %547 = arith.subf %546, %545 : vector<1x2x1xf32>
    %548 = arith.mulf %544, %547 : vector<1x2x1xf32>
    %549 = vector.broadcast %548 : vector<1x2x1xf32> to vector<8x2x1xf32>
    %550 = arith.mulf %541, %549 : vector<8x2x1xf32>
    %551 = vector.broadcast %550 : vector<8x2x1xf32> to vector<8x2x64xf32>
    %552 = arith.mulf %518, %551 : vector<8x2x64xf32>
    %cst_179 = arith.constant dense<0.000000e+00> : vector<2x64xf32>
    %553 = vector.multi_reduction <add>, %552, %cst_179 [0] : vector<8x2x64xf32> to vector<2x64xf32>
    %c0_180 = arith.constant 0 : index
    %c0_181 = arith.constant 0 : index
    %554 = vector.load %arg11[%c0_180, %c0_181] : memref<2x64xf32, #tpu.memory_space<vmem>>, vector<2x64xf32>
    tpu.vector_store %arg11[%c0_180, %c0_181], %553 {strides = array<i32>} : memref<2x64xf32, #tpu.memory_space<vmem>>, vector<2x64xf32>,
    return
  }
  func.func @transform_0(%arg0: i32) -> (i32, i32, i32) {
    %c0_i32 = arith.constant 0 : i32
    %c0_i32_0 = arith.constant 0 : i32
    %c0_i32_1 = arith.constant 0 : i32
    return %c0_i32, %arg0, %c0_i32_0 : i32, i32, i32
  }
  func.func @transform_1(%arg0: i32) -> (i32, i32) {
    %c0_i32 = arith.constant 0 : i32
    %c0_i32_0 = arith.constant 0 : i32
    return %arg0, %c0_i32 : i32, i32
  }
  func.func @transform_2(%arg0: i32) -> (i32, i32) {
    %c0_i32 = arith.constant 0 : i32
    %c0_i32_0 = arith.constant 0 : i32
    %c0_i32_1 = arith.constant 0 : i32
    return %c0_i32, %c0_i32_0 : i32, i32
  }
  func.func @transform_3(%arg0: i32) -> (i32, i32) {
    %c0_i32 = arith.constant 0 : i32
    %c0_i32_0 = arith.constant 0 : i32
    %c0_i32_1 = arith.constant 0 : i32
    return %c0_i32, %c0_i32_0 : i32, i32
  }
  func.func @transform_4(%arg0: i32) -> (i32, i32) {
    %c0_i32 = arith.constant 0 : i32
    %c0_i32_0 = arith.constant 0 : i32
    %c0_i32_1 = arith.constant 0 : i32
    return %c0_i32, %c0_i32_0 : i32, i32
  }
  func.func @transform_5(%arg0: i32) -> (i32, i32) {
    %c0_i32 = arith.constant 0 : i32
    %c0_i32_0 = arith.constant 0 : i32
    %c0_i32_1 = arith.constant 0 : i32
    return %c0_i32, %c0_i32_0 : i32, i32
  }
  func.func @transform_6(%arg0: i32) -> (i32, i32) {
    %c0_i32 = arith.constant 0 : i32
    %c0_i32_0 = arith.constant 0 : i32
    %c0_i32_1 = arith.constant 0 : i32
    return %c0_i32, %c0_i32_0 : i32, i32
  }
  func.func @transform_7(%arg0: i32) -> (i32, i32) {
    %c0_i32 = arith.constant 0 : i32
    %c0_i32_0 = arith.constant 0 : i32
    %c0_i32_1 = arith.constant 0 : i32
    return %c0_i32, %c0_i32_0 : i32, i32
  }
  func.func @transform_8(%arg0: i32) -> (i32, i32) {
    %c0_i32 = arith.constant 0 : i32
    %c0_i32_0 = arith.constant 0 : i32
    %c0_i32_1 = arith.constant 0 : i32
    return %c0_i32, %c0_i32_0 : i32, i32
  }
  func.func @transform_9(%arg0: i32) -> (i32, i32) {
    %c0_i32 = arith.constant 0 : i32
    %c0_i32_0 = arith.constant 0 : i32
    %c0_i32_1 = arith.constant 0 : i32
    return %c0_i32, %c0_i32_0 : i32, i32
  }
  func.func @transform_10(%arg0: i32) -> (i32, i32) {
    %c0_i32 = arith.constant 0 : i32
    %c0_i32_0 = arith.constant 0 : i32
    return %arg0, %c0_i32 : i32, i32
  }
}

</mosaic_0001>

<llo_original>
// kernel: tpu_custom_call.1
$region0: #{tpu_custom_call.1}
  #allocation0 [shape = 'u32[]', space=smem, size = 0x4, offset = 0x4, fixed_abs, tag = 'smem constant byte address 0x4 - core index']
  #allocation1 [shape = 'u32[144,128]{1,0:T(1,128)}', space=vmem, size = 0x12000, scoped, tag = 'internal scratch']
  #allocation2 [shape = 'f32[8,2,32]{2,1,0:T(2,128)}', space=vmem, size = 0x2000, scoped, tag = 'scratch operand']
  #allocation3 [shape = 'f32[8,2,32]{2,1,0:T(2,128)}', space=vmem, size = 0x2000, scoped, tag = 'scratch operand']
  %s0 = inlined_call_operand.vmem [shape: f32[8,2,1], index: 0, kind: input, shape index: {}]
  %s1 = inlined_call_operand.hbm [shape: f32[2,128], index: 1, kind: input, shape index: {}]
  %s2 = inlined_call_operand.hbm [shape: f32[128,512], index: 2, kind: input, shape index: {}]
  %s3 = inlined_call_operand.hbm [shape: f32[1,512], index: 3, kind: input, shape index: {}]
  %s4 = inlined_call_operand.hbm [shape: f32[512,2048], index: 4, kind: input, shape index: {}]
  %s5 = inlined_call_operand.hbm [shape: f32[1,2048], index: 5, kind: input, shape index: {}]
  %s6 = inlined_call_operand.hbm [shape: f32[64,256], index: 6, kind: input, shape index: {}]
  %s7 = inlined_call_operand.hbm [shape: f32[64,64], index: 7, kind: input, shape index: {}]
  %s8 = inlined_call_operand.hbm [shape: f32[1,64], index: 8, kind: input, shape index: {}]
  %s9 = inlined_call_operand.hbm [shape: f32[1,64], index: 9, kind: input, shape index: {}]
  %s10 = inlined_call_operand.hbm [shape: f32[2,64], index: 10, kind: output, shape index: {}]
  %s11 = sld [smem:[#allocation0]]
  $region86: #{tpu_custom_call.1} parent=0
    _
  %s13 = ssub.s32 1, %s11
  %s14 = scalar_select 0, %s13, %s11
  $region1: #{tpu_custom_call.1} parent=0
    #allocation4 [shape = 'u8[1024]{0}', space=vmem, size = 0x400, scoped, tag = 'input window, operand 1, single buffered']
    #allocation5 [shape = 's32[1]{0}', space=sflag, size = 0x4, scoped, tag = 'scoped memory for tpu_custom_call.1']
    #allocation6 [shape = 's32[1]{0}', space=sflag, size = 0x4, scoped, tag = 'scoped memory for tpu_custom_call.1']
    #allocation7 [shape = 'u8[262144]{0}', space=vmem, size = 0x40000, scoped, tag = 'input window, operand 2, single buffered']
    #allocation8 [shape = 's32[1]{0}', space=sflag, size = 0x4, scoped, tag = 'scoped memory for tpu_custom_call.1']
    #allocation9 [shape = 'u8[2048]{0}', space=vmem, size = 0x800, scoped, tag = 'input window, operand 3, single buffered']
    #allocation10 [shape = 'u8[4194304]{0}', space=vmem, size = 0x400000, scoped, tag = 'input window, operand 4, single buffered']
    #allocation11 [shape = 's32[1]{0}', space=sflag, size = 0x4, scoped, tag = 'scoped memory for tpu_custom_call.1']
    #allocation12 [shape = 'u8[8192]{0}', space=vmem, size = 0x2000, scoped, tag = 'input window, operand 5, single buffered']
    #allocation13 [shape = 'u8[65536]{0}', space=vmem, size = 0x10000, scoped, tag = 'input window, operand 6, single buffered']
    #allocation14 [shape = 's32[1]{0}', space=sflag, size = 0x4, scoped, tag = 'scoped memory for tpu_custom_call.1']
    #allocation15 [shape = 'u8[32768]{0}', space=vmem, size = 0x8000, scoped, tag = 'input window, operand 7, single buffered']
    #allocation16 [shape = 'u8[512]{0}', space=vmem, size = 0x400, scoped, tag = 'input window, operand 8, single buffered']
    #allocation17 [shape = 's32[1]{0}', space=sflag, size = 0x4, scoped, tag = 'scoped memory for tpu_custom_call.1']
    #allocation18 [shape = 'u8[512]{0}', space=vmem, size = 0x400, scoped, tag = 'input window, operand 9, single buffered']
    #allocation19 [shape = 'u8[1024]{0}', space=vmem, size = 0x400, scoped, tag = 'output window, operand 0, single buffered']
    %15 = vsyncpa [#allocation5], 0
    %16 = vsyncpa [#allocation8], 0
    %17 = vsyncpa [#allocation11], 0
    %18 = vsyncpa [#allocation14], 0
    %19 = vsyncpa [#allocation17], 0
    %20 = vsyncpa [#allocation6], 0
    // Predicated region
    $region2: #{tpu_custom_call.1} parent=1 // pred_check
      _
    $region3: #{tpu_custom_call.1} parent=1 // pred_check_branch
      %22 = sbr.rel (0) target = $region5
    $region4: #{tpu_custom_call.1} parent=1 // pred_region
      _
    $region5: #{tpu_custom_call.1} parent=1 // pred_fallthru
      _
    // Predicated region
    $region6: #{tpu_custom_call.1} parent=1 // pred_check
      _
    $region7: #{tpu_custom_call.1} parent=1 // pred_check_branch
      %24 = sbr.rel (0) target = $region9
    $region8: #{tpu_custom_call.1} parent=1 // pred_region
      %s26 = ssub.s32 32, 32
      %27 = vsyncadd [#allocation5], %s26
      %s29 = sshll.u32 [#allocation4], 4
      %s30 = int_to_ptr.vmem [resolvable:$true] %s29
      %32 = dma.hbm_to_vmem [thread:$0]  %s1, 32, %s30, [#allocation5]
    $region9: #{tpu_custom_call.1} parent=1 // pred_fallthru
      _
    // Predicated region
    $region10: #{tpu_custom_call.1} parent=1 // pred_check
      _
    $region11: #{tpu_custom_call.1} parent=1 // pred_check_branch
      %34 = sbr.rel (0) target = $region13
    $region12: #{tpu_custom_call.1} parent=1 // pred_region
      %s36 = ssub.s32 8192, 8192
      %37 = vsyncadd [#allocation8], %s36
      %s38 = sshll.u32 [#allocation7], 4
      %s39 = int_to_ptr.vmem [resolvable:$true] %s38
      %44 = dma.hbm_to_vmem [thread:$0]  %s2, 8192, %s39, [#allocation8], 512, 512, 32
    $region13: #{tpu_custom_call.1} parent=1 // pred_fallthru
      _
    // Predicated region
    $region14: #{tpu_custom_call.1} parent=1 // pred_check
      _
    $region15: #{tpu_custom_call.1} parent=1 // pred_check_branch
      %46 = sbr.rel (0) target = $region17
    $region16: #{tpu_custom_call.1} parent=1 // pred_region
      %s48 = ssub.s32 64, 64
      %49 = vsyncadd [#allocation8], %s48
      %s51 = sshll.u32 [#allocation9], 4
      %s52 = int_to_ptr.vmem [resolvable:$true] %s51
      %54 = dma.hbm_to_vmem [thread:$0]  %s3, 64, %s52, [#allocation8]
    $region17: #{tpu_custom_call.1} parent=1 // pred_fallthru
      _
    // Predicated region
    $region18: #{tpu_custom_call.1} parent=1 // pred_check
      _
    $region19: #{tpu_custom_call.1} parent=1 // pred_check_branch
      %56 = sbr.rel (0) target = $region21
    $region20: #{tpu_custom_call.1} parent=1 // pred_region
      %s58 = ssub.s32 131072, 131072
      %59 = vsyncadd [#allocation11], %s58
      %s60 = sshll.u32 [#allocation10], 4
      %s61 = int_to_ptr.vmem [resolvable:$true] %s60
      %66 = dma.hbm_to_vmem [thread:$0]  %s4, 131072, %s61, [#allocation11], 2048, 2048, 128
    $region21: #{tpu_custom_call.1} parent=1 // pred_fallthru
      _
    // Predicated region
    $region22: #{tpu_custom_call.1} parent=1 // pred_check
      _
    $region23: #{tpu_custom_call.1} parent=1 // pred_check_branch
      %68 = sbr.rel (0) target = $region25
    $region24: #{tpu_custom_call.1} parent=1 // pred_region
      %s70 = ssub.s32 256, 256
      %71 = vsyncadd [#allocation11], %s70
      %s73 = sshll.u32 [#allocation12], 4
      %s74 = int_to_ptr.vmem [resolvable:$true] %s73
      %76 = dma.hbm_to_vmem [thread:$0]  %s5, 256, %s74, [#allocation11]
    $region25: #{tpu_custom_call.1} parent=1 // pred_fallthru
      _
    // Predicated region
    $region26: #{tpu_custom_call.1} parent=1 // pred_check
      _
    $region27: #{tpu_custom_call.1} parent=1 // pred_check_branch
      %78 = sbr.rel (0) target = $region29
    $region28: #{tpu_custom_call.1} parent=1 // pred_region
      %s80 = ssub.s32 2048, 2048
      %81 = vsyncadd [#allocation14], %s80
      %s82 = sshll.u32 [#allocation13], 4
      %s83 = int_to_ptr.vmem [resolvable:$true] %s82
      %88 = dma.hbm_to_vmem [thread:$0]  %s6, 2048, %s83, [#allocation14], 256, 256, 16
    $region29: #{tpu_custom_call.1} parent=1 // pred_fallthru
      _
    // Predicated region
    $region30: #{tpu_custom_call.1} parent=1 // pred_check
      _
    $region31: #{tpu_custom_call.1} parent=1 // pred_check_branch
      %90 = sbr.rel (0) target = $region33
    $region32: #{tpu_custom_call.1} parent=1 // pred_region
      %s92 = ssub.s32 1024, 1024
      %93 = vsyncadd [#allocation14], %s92
      %s94 = sshll.u32 [#allocation15], 4
      %s95 = int_to_ptr.vmem [resolvable:$true] %s94
      %100 = dma.hbm_to_vmem [thread:$0]  %s7, 1024, %s95, [#allocation14], 128, 128, 8
    $region33: #{tpu_custom_call.1} parent=1 // pred_fallthru
      _
    // Predicated region
    $region34: #{tpu_custom_call.1} parent=1 // pred_check
      _
    $region35: #{tpu_custom_call.1} parent=1 // pred_check_branch
      %102 = sbr.rel (0) target = $region37
    $region36: #{tpu_custom_call.1} parent=1 // pred_region
      %s104 = ssub.s32 16, 16
      %105 = vsyncadd [#allocation17], %s104
      %s107 = sshll.u32 [#allocation16], 4
      %s108 = int_to_ptr.vmem [resolvable:$true] %s107
      %110 = dma.hbm_to_vmem [thread:$0]  %s8, 16, %s108, [#allocation17]
    $region37: #{tpu_custom_call.1} parent=1 // pred_fallthru
      _
    // Predicated region
    $region38: #{tpu_custom_call.1} parent=1 // pred_check
      _
    $region39: #{tpu_custom_call.1} parent=1 // pred_check_branch
      %112 = sbr.rel (0) target = $region41
    $region40: #{tpu_custom_call.1} parent=1 // pred_region
      %s114 = ssub.s32 16, 16
      %115 = vsyncadd [#allocation17], %s114
      %s117 = sshll.u32 [#allocation18], 4
      %s118 = int_to_ptr.vmem [resolvable:$true] %s117
      %120 = dma.hbm_to_vmem [thread:$0]  %s9, 16, %s118, [#allocation17]
    $region41: #{tpu_custom_call.1} parent=1 // pred_fallthru
      _
    // Predicated region
    $region42: #{tpu_custom_call.1} parent=1 // pred_check
      _
    $region43: #{tpu_custom_call.1} parent=1 // pred_check_branch
      %122 = sbr.rel (0) target = $region45
    $region44: #{tpu_custom_call.1} parent=1 // pred_region
      %123 = dma.done [#allocation5], 32
    $region45: #{tpu_custom_call.1} parent=1 // pred_fallthru
      _
    // Predicated region
    $region46: #{tpu_custom_call.1} parent=1 // pred_check
      _
    $region47: #{tpu_custom_call.1} parent=1 // pred_check_branch
      %125 = sbr.rel (0) target = $region49
    $region48: #{tpu_custom_call.1} parent=1 // pred_region
      %126 = dma.done [#allocation8], 8192
    $region49: #{tpu_custom_call.1} parent=1 // pred_fallthru
      _
    // Predicated region
    $region50: #{tpu_custom_call.1} parent=1 // pred_check
      _
    $region51: #{tpu_custom_call.1} parent=1 // pred_check_branch
      %128 = sbr.rel (0) target = $region53
    $region52: #{tpu_custom_call.1} parent=1 // pred_region
      %129 = dma.done [#allocation8], 64
    $region53: #{tpu_custom_call.1} parent=1 // pred_fallthru
      _
    // Predicated region
    $region54: #{tpu_custom_call.1} parent=1 // pred_check
      _
    $region55: #{tpu_custom_call.1} parent=1 // pred_check_branch
      %131 = sbr.rel (0) target = $region57
    $region56: #{tpu_custom_call.1} parent=1 // pred_region
      %132 = dma.done [#allocation11], 131072
    $region57: #{tpu_custom_call.1} parent=1 // pred_fallthru
      _
    // Predicated region
    $region58: #{tpu_custom_call.1} parent=1 // pred_check
      _
    $region59: #{tpu_custom_call.1} parent=1 // pred_check_branch
      %134 = sbr.rel (0) target = $region61
    $region60: #{tpu_custom_call.1} parent=1 // pred_region
      %135 = dma.done [#allocation11], 256
    $region61: #{tpu_custom_call.1} parent=1 // pred_fallthru
      _
    // Predicated region
    $region62: #{tpu_custom_call.1} parent=1 // pred_check
      _
    $region63: #{tpu_custom_call.1} parent=1 // pred_check_branch
      %137 = sbr.rel (0) target = $region65
    $region64: #{tpu_custom_call.1} parent=1 // pred_region
      %138 = dma.done [#allocation14], 2048
    $region65: #{tpu_custom_call.1} parent=1 // pred_fallthru
      _
    // Predicated region
    $region66: #{tpu_custom_call.1} parent=1 // pred_check
      _
    $region67: #{tpu_custom_call.1} parent=1 // pred_check_branch
      %140 = sbr.rel (0) target = $region69
    $region68: #{tpu_custom_call.1} parent=1 // pred_region
      %141 = dma.done [#allocation14], 1024
    $region69: #{tpu_custom_call.1} parent=1 // pred_fallthru
      _
    // Predicated region
    $region70: #{tpu_custom_call.1} parent=1 // pred_check
      _
    $region71: #{tpu_custom_call.1} parent=1 // pred_check_branch
      %143 = sbr.rel (0) target = $region73
    $region72: #{tpu_custom_call.1} parent=1 // pred_region
      %144 = dma.done [#allocation17], 16
    $region73: #{tpu_custom_call.1} parent=1 // pred_fallthru
      _
    // Predicated region
    $region74: #{tpu_custom_call.1} parent=1 // pred_check
      _
    $region75: #{tpu_custom_call.1} parent=1 // pred_check_branch
      %146 = sbr.rel (0) target = $region77
    $region76: #{tpu_custom_call.1} parent=1 // pred_region
      %147 = dma.done [#allocation17], 16
    $region77: #{tpu_custom_call.1} parent=1 // pred_fallthru
      _
    %v148 = vld [vmem:[#allocation4] sm:$0x3]
    %v149 = vld [vmem:[#allocation7] sm:$0xff]
    %v150 = vld [vmem:[#allocation7 + $0x8] sm:$0xff]
    %v151 = vld [vmem:[#allocation7 + $0x10] sm:$0xff]
    %v152 = vld [vmem:[#allocation7 + $0x18] sm:$0xff]
    %v153 = vld [vmem:[#allocation7 + $0x20] sm:$0xff]
    %v154 = vld [vmem:[#allocation7 + $0x28] sm:$0xff]
    %v155 = vld [vmem:[#allocation7 + $0x30] sm:$0xff]
    %v156 = vld [vmem:[#allocation7 + $0x38] sm:$0xff]
    %v157 = vld [vmem:[#allocation7 + $0x40] sm:$0xff]
    %v158 = vld [vmem:[#allocation7 + $0x48] sm:$0xff]
    %v159 = vld [vmem:[#allocation7 + $0x50] sm:$0xff]
    %v160 = vld [vmem:[#allocation7 + $0x58] sm:$0xff]
    %v161 = vld [vmem:[#allocation7 + $0x60] sm:$0xff]
    %v162 = vld [vmem:[#allocation7 + $0x68] sm:$0xff]
    %v163 = vld [vmem:[#allocation7 + $0x70] sm:$0xff]
    %v164 = vld [vmem:[#allocation7 + $0x78] sm:$0xff]
    %v165 = vld [vmem:[#allocation7 + $0x80] sm:$0xff]
    %v166 = vld [vmem:[#allocation7 + $0x88] sm:$0xff]
    %v167 = vld [vmem:[#allocation7 + $0x90] sm:$0xff]
    %v168 = vld [vmem:[#allocation7 + $0x98] sm:$0xff]
    %v169 = vld [vmem:[#allocation7 + $0xa0] sm:$0xff]
    %v170 = vld [vmem:[#allocation7 + $0xa8] sm:$0xff]
    %v171 = vld [vmem:[#allocation7 + $0xb0] sm:$0xff]
    %v172 = vld [vmem:[#allocation7 + $0xb8] sm:$0xff]
    %v173 = vld [vmem:[#allocation7 + $0xc0] sm:$0xff]
    %v174 = vld [vmem:[#allocation7 + $0xc8] sm:$0xff]
    %v175 = vld [vmem:[#allocation7 + $0xd0] sm:$0xff]
    %v176 = vld [vmem:[#allocation7 + $0xd8] sm:$0xff]
    %v177 = vld [vmem:[#allocation7 + $0xe0] sm:$0xff]
    %v178 = vld [vmem:[#allocation7 + $0xe8] sm:$0xff]
    %v179 = vld [vmem:[#allocation7 + $0xf0] sm:$0xff]
    %v180 = vld [vmem:[#allocation7 + $0xf8] sm:$0xff]
    %v181 = vld [vmem:[#allocation7 + $0x100] sm:$0xff]
    %v182 = vld [vmem:[#allocation7 + $0x108] sm:$0xff]
    %v183 = vld [vmem:[#allocation7 + $0x110] sm:$0xff]
    %v184 = vld [vmem:[#allocation7 + $0x118] sm:$0xff]
    %v185 = vld [vmem:[#allocation7 + $0x120] sm:$0xff]
    %v186 = vld [vmem:[#allocation7 + $0x128] sm:$0xff]
    %v187 = vld [vmem:[#allocation7 + $0x130] sm:$0xff]
    %v188 = vld [vmem:[#allocation7 + $0x138] sm:$0xff]
    %v189 = vld [vmem:[#allocation7 + $0x140] sm:$0xff]
    %v190 = vld [vmem:[#allocation7 + $0x148] sm:$0xff]
    %v191 = vld [vmem:[#allocation7 + $0x150] sm:$0xff]
    %v192 = vld [vmem:[#allocation7 + $0x158] sm:$0xff]
    %v193 = vld [vmem:[#allocation7 + $0x160] sm:$0xff]
    %v194 = vld [vmem:[#allocation7 + $0x168] sm:$0xff]
    %v195 = vld [vmem:[#allocation7 + $0x170] sm:$0xff]
    %v196 = vld [vmem:[#allocation7 + $0x178] sm:$0xff]
    %v197 = vld [vmem:[#allocation7 + $0x180] sm:$0xff]
    %v198 = vld [vmem:[#allocation7 + $0x188] sm:$0xff]
    %v199 = vld [vmem:[#allocation7 + $0x190] sm:$0xff]
    %v200 = vld [vmem:[#allocation7 + $0x198] sm:$0xff]
    %v201 = vld [vmem:[#allocation7 + $0x1a0] sm:$0xff]
    %v202 = vld [vmem:[#allocation7 + $0x1a8] sm:$0xff]
    %v203 = vld [vmem:[#allocation7 + $0x1b0] sm:$0xff]
    %v204 = vld [vmem:[#allocation7 + $0x1b8] sm:$0xff]
    %v205 = vld [vmem:[#allocation7 + $0x1c0] sm:$0xff]
    %v206 = vld [vmem:[#allocation7 + $0x1c8] sm:$0xff]
    %v207 = vld [vmem:[#allocation7 + $0x1d0] sm:$0xff]
    %v208 = vld [vmem:[#allocation7 + $0x1d8] sm:$0xff]
    %v209 = vld [vmem:[#allocation7 + $0x1e0] sm:$0xff]
    %v210 = vld [vmem:[#allocation7 + $0x1e8] sm:$0xff]
    %v211 = vld [vmem:[#allocation7 + $0x1f0] sm:$0xff]
    %v212 = vld [vmem:[#allocation7 + $0x1f8] sm:$0xff]
    %v213 = vld [vmem:[#allocation9] sm:$0xf]
    %v215 = vlaneseq
    %v216 = vshrl.u32 %v215, 7
    %v217 = vsub.s32 0, %v216
    %v218 = vrot.slane %v213, %v217
    %v219 = vlaneseq
    %v220 = vshrl.u32 %v219, 7
    %v221 = vsub.s32 1, %v220
    %v222 = vrot.slane %v213, %v221
    %v223 = vlaneseq
    %v224 = vshrl.u32 %v223, 7
    %v225 = vsub.s32 2, %v224
    %v226 = vrot.slane %v213, %v225
    %v227 = vlaneseq
    %v228 = vshrl.u32 %v227, 7
    %v229 = vsub.s32 3, %v228
    %v230 = vrot.slane %v213, %v229
    %235 = vmatprep.subr.mxu0 %v150
    %236 = vmatpush1.msra.mxu0 %v149
    %237 = vmatprep.subr.mxu0 %v154
    %238 = vmatpush1.msra.mxu0 %v153
    %239 = vmatprep.subr.mxu0 %v158
    %240 = vmatpush1.msra.mxu0 %v157
    %241 = vmatprep.subr.mxu0 %v162
    %242 = vmatpush1.msra.mxu0 %v161
    %243 = vmatprep.subr.mxu0 %v166
    %244 = vmatpush1.msra.mxu0 %v165
    %245 = vmatprep.subr.mxu0 %v170
    %246 = vmatpush1.msra.mxu0 %v169
    %247 = vmatprep.subr.mxu0 %v174
    %248 = vmatpush1.msra.mxu0 %v173
    %249 = vmatprep.subr.mxu0 %v178
    %250 = vmatpush1.msra.mxu0 %v177
    %251 = vmatprep.subr.mxu0 %v182
    %252 = vmatpush1.msra.mxu0 %v181
    %253 = vmatprep.subr.mxu0 %v186
    %254 = vmatpush1.msra.mxu0 %v185
    %255 = vmatprep.subr.mxu0 %v190
    %256 = vmatpush1.msra.mxu0 %v189
    %257 = vmatprep.subr.mxu0 %v194
    %258 = vmatpush1.msra.mxu0 %v193
    %259 = vmatprep.subr.mxu0 %v198
    %260 = vmatpush1.msra.mxu0 %v197
    %261 = vmatprep.subr.mxu0 %v202
    %262 = vmatpush1.msra.mxu0 %v201
    %263 = vmatprep.subr.mxu0 %v206
    %264 = vmatpush1.msra.mxu0 %v205
    %265 = vmatprep.subr.mxu0 %v210
    %266 = vmatpush1.msra.mxu0 %v209
    %267 = vmatprep.subr.mxu0 0.0
    %268 = vmatpush1.msra.mxu0 0.0
    %269 = vmatprep.subr.mxu0 0.0
    %270 = vmatpush1.msra.mxu0 0.0
    %271 = vmatprep.subr.mxu0 0.0
    %272 = vmatpush1.msra.mxu0 0.0
    %273 = vmatprep.subr.mxu0 0.0
    %274 = vmatpush1.msra.mxu0 0.0
    %275 = vmatprep.subr.mxu0 0.0
    %276 = vmatpush1.msra.mxu0 0.0
    %277 = vmatprep.subr.mxu0 0.0
    %278 = vmatpush1.msra.mxu0 0.0
    %279 = vmatprep.subr.mxu0 0.0
    %280 = vmatpush1.msra.mxu0 0.0
    %281 = vmatprep.subr.mxu0 0.0
    %282 = vmatpush1.msra.mxu0 0.0
    %283 = vmatprep.subr.mxu0 0.0
    %284 = vmatpush1.msra.mxu0 0.0
    %285 = vmatprep.subr.mxu0 0.0
    %286 = vmatpush1.msra.mxu0 0.0
    %287 = vmatprep.subr.mxu0 0.0
    %288 = vmatpush1.msra.mxu0 0.0
    %289 = vmatprep.subr.mxu0 0.0
    %290 = vmatpush1.msra.mxu0 0.0
    %291 = vmatprep.subr.mxu0 0.0
    %292 = vmatpush1.msra.mxu0 0.0
    %293 = vmatprep.subr.mxu0 0.0
    %294 = vmatpush1.msra.mxu0 0.0
    %295 = vmatprep.subr.mxu0 0.0
    %296 = vmatpush1.msra.mxu0 0.0
    %297 = vmatprep.subr.mxu0 0.0
    %298 = vmatpush1.msra.mxu0 0.0
    %299 = vmatprep.mubr.f32.mxu0 0.0
    %300 = vmatmul.mubr.f32.gmra.mrb[0].mxu0 %v148
    %v301 = vpop.f32.mrb[0].mxu0
    %v302 = vadd.f32 %v218, %v301
    %v303 = vpop.f32.mrb[0].mxu0
    %v304 = vadd.f32 %v222, %v303
    %305 = vdwg.mxu0
    %306 = vmatprep.subr.mxu0 %v152
    %307 = vmatpush1.msra.mxu0 %v151
    %308 = vmatprep.subr.mxu0 %v156
    %309 = vmatpush1.msra.mxu0 %v155
    %310 = vmatprep.subr.mxu0 %v160
    %311 = vmatpush1.msra.mxu0 %v159
    %312 = vmatprep.subr.mxu0 %v164
    %313 = vmatpush1.msra.mxu0 %v163
    %314 = vmatprep.subr.mxu0 %v168
    %315 = vmatpush1.msra.mxu0 %v167
    %316 = vmatprep.subr.mxu0 %v172
    %317 = vmatpush1.msra.mxu0 %v171
    %318 = vmatprep.subr.mxu0 %v176
    %319 = vmatpush1.msra.mxu0 %v175
    %320 = vmatprep.subr.mxu0 %v180
    %321 = vmatpush1.msra.mxu0 %v179
    %322 = vmatprep.subr.mxu0 %v184
    %323 = vmatpush1.msra.mxu0 %v183
    %324 = vmatprep.subr.mxu0 %v188
    %325 = vmatpush1.msra.mxu0 %v187
    %326 = vmatprep.subr.mxu0 %v192
    %327 = vmatpush1.msra.mxu0 %v191
    %328 = vmatprep.subr.mxu0 %v196
    %329 = vmatpush1.msra.mxu0 %v195
    %330 = vmatprep.subr.mxu0 %v200
    %331 = vmatpush1.msra.mxu0 %v199
    %332 = vmatprep.subr.mxu0 %v204
    %333 = vmatpush1.msra.mxu0 %v203
    %334 = vmatprep.subr.mxu0 %v208
    %335 = vmatpush1.msra.mxu0 %v207
    %336 = vmatprep.subr.mxu0 %v212
    %337 = vmatpush1.msra.mxu0 %v211
    %338 = vmatprep.subr.mxu0 0.0
    %339 = vmatpush1.msra.mxu0 0.0
    %340 = vmatprep.subr.mxu0 0.0
    %341 = vmatpush1.msra.mxu0 0.0
    %342 = vmatprep.subr.mxu0 0.0
    %343 = vmatpush1.msra.mxu0 0.0
    %344 = vmatprep.subr.mxu0 0.0
    %345 = vmatpush1.msra.mxu0 0.0
    %346 = vmatprep.subr.mxu0 0.0
    %347 = vmatpush1.msra.mxu0 0.0
    %348 = vmatprep.subr.mxu0 0.0
    %349 = vmatpush1.msra.mxu0 0.0
    %350 = vmatprep.subr.mxu0 0.0
    %351 = vmatpush1.msra.mxu0 0.0
    %352 = vmatprep.subr.mxu0 0.0
    %353 = vmatpush1.msra.mxu0 0.0
    %354 = vmatprep.subr.mxu0 0.0
    %355 = vmatpush1.msra.mxu0 0.0
    %356 = vmatprep.subr.mxu0 0.0
    %357 = vmatpush1.msra.mxu0 0.0
    %358 = vmatprep.subr.mxu0 0.0
    %359 = vmatpush1.msra.mxu0 0.0
    %360 = vmatprep.subr.mxu0 0.0
    %361 = vmatpush1.msra.mxu0 0.0
    %362 = vmatprep.subr.mxu0 0.0
    %363 = vmatpush1.msra.mxu0 0.0
    %364 = vmatprep.subr.mxu0 0.0
    %365 = vmatpush1.msra.mxu0 0.0
    %366 = vmatprep.subr.mxu0 0.0
    %367 = vmatpush1.msra.mxu0 0.0
    %368 = vmatprep.subr.mxu0 0.0
    %369 = vmatpush1.msra.mxu0 0.0
    %370 = vmatprep.mubr.f32.mxu0 0.0
    %371 = vmatmul.mubr.f32.gmra.mrb[0].mxu0 %v148
    %v372 = vpop.f32.mrb[0].mxu0
    %v373 = vadd.f32 %v226, %v372
    %v374 = vpop.f32.mrb[0].mxu0
    %v375 = vadd.f32 %v230, %v374
    %376 = vdwg.mxu0
    %v377 = vtanh.pop %v302
    %v378 = vtanh.pop %v304
    %v379 = vtanh.pop %v373
    %v380 = vtanh.pop %v375
    %v381 = vld [vmem:[#allocation10] sm:$0xff]
    %v382 = vld [vmem:[#allocation10 + $0x8] sm:$0xff]
    %v383 = vld [vmem:[#allocation10 + $0x10] sm:$0xff]
    %v384 = vld [vmem:[#allocation10 + $0x18] sm:$0xff]
    %v385 = vld [vmem:[#allocation10 + $0x20] sm:$0xff]
    %v386 = vld [vmem:[#allocation10 + $0x28] sm:$0xff]
    %v387 = vld [vmem:[#allocation10 + $0x30] sm:$0xff]
    %v388 = vld [vmem:[#allocation10 + $0x38] sm:$0xff]
    %v389 = vld [vmem:[#allocation10 + $0x40] sm:$0xff]
    %v390 = vld [vmem:[#allocation10 + $0x48] sm:$0xff]
    %v391 = vld [vmem:[#allocation10 + $0x50] sm:$0xff]
    %v392 = vld [vmem:[#allocation10 + $0x58] sm:$0xff]
    %v393 = vld [vmem:[#allocation10 + $0x60] sm:$0xff]
    %v394 = vld [vmem:[#allocation10 + $0x68] sm:$0xff]
    %v395 = vld [vmem:[#allocation10 + $0x70] sm:$0xff]
    %v396 = vld [vmem:[#allocation10 + $0x78] sm:$0xff]
    %v397 = vld [vmem:[#allocation10 + $0x80] sm:$0xff]
    %v398 = vld [vmem:[#allocation10 + $0x88] sm:$0xff]
    %v399 = vld [vmem:[#allocation10 + $0x90] sm:$0xff]
    %v400 = vld [vmem:[#allocation10 + $0x98] sm:$0xff]
    %v401 = vld [vmem:[#allocation10 + $0xa0] sm:$0xff]
    %v402 = vld [vmem:[#allocation10 + $0xa8] sm:$0xff]
    %v403 = vld [vmem:[#allocation10 + $0xb0] sm:$0xff]
    %v404 = vld [vmem:[#allocation10 + $0xb8] sm:$0xff]
    %v405 = vld [vmem:[#allocation10 + $0xc0] sm:$0xff]
    %v406 = vld [vmem:[#allocation10 + $0xc8] sm:$0xff]
    %v407 = vld [vmem:[#allocation10 + $0xd0] sm:$0xff]
    %v408 = vld [vmem:[#allocation10 + $0xd8] sm:$0xff]
    %v409 = vld [vmem:[#allocation10 + $0xe0] sm:$0xff]
    %v410 = vld [vmem:[#allocation10 + $0xe8] sm:$0xff]
    %v411 = vld [vmem:[#allocation10 + $0xf0] sm:$0xff]
    %v412 = vld [vmem:[#allocation10 + $0xf8] sm:$0xff]
    %v413 = vld [vmem:[#allocation10 + $0x100] sm:$0xff]
    %v414 = vld [vmem:[#allocation10 + $0x108] sm:$0xff]
    %v415 = vld [vmem:[#allocation10 + $0x110] sm:$0xff]
    %v416 = vld [vmem:[#allocation10 + $0x118] sm:$0xff]
    %v417 = vld [vmem:[#allocation10 + $0x120] sm:$0xff]
    %v418 = vld [vmem:[#allocation10 + $0x128] sm:$0xff]
    %v419 = vld [vmem:[#allocation10 + $0x130] sm:$0xff]
    %v420 = vld [vmem:[#allocation10 + $0x138] sm:$0xff]
    %v421 = vld [vmem:[#allocation10 + $0x140] sm:$0xff]
    %v422 = vld [vmem:[#allocation10 + $0x148] sm:$0xff]
    %v423 = vld [vmem:[#allocation10 + $0x150] sm:$0xff]
    %v424 = vld [vmem:[#allocation10 + $0x158] sm:$0xff]
    %v425 = vld [vmem:[#allocation10 + $0x160] sm:$0xff]
    %v426 = vld [vmem:[#allocation10 + $0x168] sm:$0xff]
    %v427 = vld [vmem:[#allocation10 + $0x170] sm:$0xff]
    %v428 = vld [vmem:[#allocation10 + $0x178] sm:$0xff]
    %v429 = vld [vmem:[#allocation10 + $0x180] sm:$0xff]
    %v430 = vld [vmem:[#allocation10 + $0x188] sm:$0xff]
    %v431 = vld [vmem:[#allocation10 + $0x190] sm:$0xff]
    %v432 = vld [vmem:[#allocation10 + $0x198] sm:$0xff]
    %v433 = vld [vmem:[#allocation10 + $0x1a0] sm:$0xff]
    %v434 = vld [vmem:[#allocation10 + $0x1a8] sm:$0xff]
    %v435 = vld [vmem:[#allocation10 + $0x1b0] sm:$0xff]
    %v436 = vld [vmem:[#allocation10 + $0x1b8] sm:$0xff]
    %v437 = vld [vmem:[#allocation10 + $0x1c0] sm:$0xff]
    %v438 = vld [vmem:[#allocation10 + $0x1c8] sm:$0xff]
    %v439 = vld [vmem:[#allocation10 + $0x1d0] sm:$0xff]
    %v440 = vld [vmem:[#allocation10 + $0x1d8] sm:$0xff]
    %v441 = vld [vmem:[#allocation10 + $0x1e0] sm:$0xff]
    %v442 = vld [vmem:[#allocation10 + $0x1e8] sm:$0xff]
    %v443 = vld [vmem:[#allocation10 + $0x1f0] sm:$0xff]
    %v444 = vld [vmem:[#allocation10 + $0x1f8] sm:$0xff]
    %v445 = vld [vmem:[#allocation10 + $0x200] sm:$0xff]
    %v446 = vld [vmem:[#allocation10 + $0x208] sm:$0xff]
    %v447 = vld [vmem:[#allocation10 + $0x210] sm:$0xff]
    %v448 = vld [vmem:[#allocation10 + $0x218] sm:$0xff]
    %v449 = vld [vmem:[#allocation10 + $0x220] sm:$0xff]
    %v450 = vld [vmem:[#allocation10 + $0x228] sm:$0xff]
    %v451 = vld [vmem:[#allocation10 + $0x230] sm:$0xff]
    %v452 = vld [vmem:[#allocation10 + $0x238] sm:$0xff]
    %v453 = vld [vmem:[#allocation10 + $0x240] sm:$0xff]
    %v454 = vld [vmem:[#allocation10 + $0x248] sm:$0xff]
    %v455 = vld [vmem:[#allocation10 + $0x250] sm:$0xff]
    %v456 = vld [vmem:[#allocation10 + $0x258] sm:$0xff]
    %v457 = vld [vmem:[#allocation10 + $0x260] sm:$0xff]
    %v458 = vld [vmem:[#allocation10 + $0x268] sm:$0xff]
    %v459 = vld [vmem:[#allocation10 + $0x270] sm:$0xff]
    %v460 = vld [vmem:[#allocation10 + $0x278] sm:$0xff]
    %v461 = vld [vmem:[#allocation10 + $0x280] sm:$0xff]
    %v462 = vld [vmem:[#allocation10 + $0x288] sm:$0xff]
    %v463 = vld [vmem:[#allocation10 + $0x290] sm:$0xff]
    %v464 = vld [vmem:[#allocation10 + $0x298] sm:$0xff]
    %v465 = vld [vmem:[#allocation10 + $0x2a0] sm:$0xff]
    %v466 = vld [vmem:[#allocation10 + $0x2a8] sm:$0xff]
    %v467 = vld [vmem:[#allocation10 + $0x2b0] sm:$0xff]
    %v468 = vld [vmem:[#allocation10 + $0x2b8] sm:$0xff]
    %v469 = vld [vmem:[#allocation10 + $0x2c0] sm:$0xff]
    %v470 = vld [vmem:[#allocation10 + $0x2c8] sm:$0xff]
    %v471 = vld [vmem:[#allocation10 + $0x2d0] sm:$0xff]
    %v472 = vld [vmem:[#allocation10 + $0x2d8] sm:$0xff]
    %v473 = vld [vmem:[#allocation10 + $0x2e0] sm:$0xff]
    %v474 = vld [vmem:[#allocation10 + $0x2e8] sm:$0xff]
    %v475 = vld [vmem:[#allocation10 + $0x2f0] sm:$0xff]
    %v476 = vld [vmem:[#allocation10 + $0x2f8] sm:$0xff]
    %v477 = vld [vmem:[#allocation10 + $0x300] sm:$0xff]
    %v478 = vld [vmem:[#allocation10 + $0x308] sm:$0xff]
    %v479 = vld [vmem:[#allocation10 + $0x310] sm:$0xff]
    %v480 = vld [vmem:[#allocation10 + $0x318] sm:$0xff]
    %v481 = vld [vmem:[#allocation10 + $0x320] sm:$0xff]
    %v482 = vld [vmem:[#allocation10 + $0x328] sm:$0xff]
    %v483 = vld [vmem:[#allocation10 + $0x330] sm:$0xff]
    %v484 = vld [vmem:[#allocation10 + $0x338] sm:$0xff]
    %v485 = vld [vmem:[#allocation10 + $0x340] sm:$0xff]
    %v486 = vld [vmem:[#allocation10 + $0x348] sm:$0xff]
    %v487 = vld [vmem:[#allocation10 + $0x350] sm:$0xff]
    %v488 = vld [vmem:[#allocation10 + $0x358] sm:$0xff]
    %v489 = vld [vmem:[#allocation10 + $0x360] sm:$0xff]
    %v490 = vld [vmem:[#allocation10 + $0x368] sm:$0xff]
    %v491 = vld [vmem:[#allocation10 + $0x370] sm:$0xff]
    %v492 = vld [vmem:[#allocation10 + $0x378] sm:$0xff]
    %v493 = vld [vmem:[#allocation10 + $0x380] sm:$0xff]
    %v494 = vld [vmem:[#allocation10 + $0x388] sm:$0xff]
    %v495 = vld [vmem:[#allocation10 + $0x390] sm:$0xff]
    %v496 = vld [vmem:[#allocation10 + $0x398] sm:$0xff]
    %v497 = vld [vmem:[#allocation10 + $0x3a0] sm:$0xff]
    %v498 = vld [vmem:[#allocation10 + $0x3a8] sm:$0xff]
    %v499 = vld [vmem:[#allocation10 + $0x3b0] sm:$0xff]
    %v500 = vld [vmem:[#allocation10 + $0x3b8] sm:$0xff]
    %v501 = vld [vmem:[#allocation10 + $0x3c0] sm:$0xff]
    %v502 = vld [vmem:[#allocation10 + $0x3c8] sm:$0xff]
    %v503 = vld [vmem:[#allocation10 + $0x3d0] sm:$0xff]
    %v504 = vld [vmem:[#allocation10 + $0x3d8] sm:$0xff]
    %v505 = vld [vmem:[#allocation10 + $0x3e0] sm:$0xff]
    %v506 = vld [vmem:[#allocation10 + $0x3e8] sm:$0xff]
    %v507 = vld [vmem:[#allocation10 + $0x3f0] sm:$0xff]
    %v508 = vld [vmem:[#allocation10 + $0x3f8] sm:$0xff]
    %v509 = vld [vmem:[#allocation10 + $0x400] sm:$0xff]
    %v510 = vld [vmem:[#allocation10 + $0x408] sm:$0xff]
    %v511 = vld [vmem:[#allocation10 + $0x410] sm:$0xff]
    %v512 = vld [vmem:[#allocation10 + $0x418] sm:$0xff]
    %v513 = vld [vmem:[#allocation10 + $0x420] sm:$0xff]
    %v514 = vld [vmem:[#allocation10 + $0x428] sm:$0xff]
    %v515 = vld [vmem:[#allocation10 + $0x430] sm:$0xff]
    %v516 = vld [vmem:[#allocation10 + $0x438] sm:$0xff]
    %v517 = vld [vmem:[#allocation10 + $0x440] sm:$0xff]
    %v518 = vld [vmem:[#allocation10 + $0x448] sm:$0xff]
    %v519 = vld [vmem:[#allocation10 + $0x450] sm:$0xff]
    %v520 = vld [vmem:[#allocation10 + $0x458] sm:$0xff]
    %v521 = vld [vmem:[#allocation10 + $0x460] sm:$0xff]
    %v522 = vld [vmem:[#allocation10 + $0x468] sm:$0xff]
    %v523 = vld [vmem:[#allocation10 + $0x470] sm:$0xff]
    %v524 = vld [vmem:[#allocation10 + $0x478] sm:$0xff]
    %v525 = vld [vmem:[#allocation10 + $0x480] sm:$0xff]
    %v526 = vld [vmem:[#allocation10 + $0x488] sm:$0xff]
    %v527 = vld [vmem:[#allocation10 + $0x490] sm:$0xff]
    %v528 = vld [vmem:[#allocation10 + $0x498] sm:$0xff]
    %v529 = vld [vmem:[#allocation10 + $0x4a0] sm:$0xff]
    %v530 = vld [vmem:[#allocation10 + $0x4a8] sm:$0xff]
    %v531 = vld [vmem:[#allocation10 + $0x4b0] sm:$0xff]
    %v532 = vld [vmem:[#allocation10 + $0x4b8] sm:$0xff]
    %v533 = vld [vmem:[#allocation10 + $0x4c0] sm:$0xff]
    %v534 = vld [vmem:[#allocation10 + $0x4c8] sm:$0xff]
    %v535 = vld [vmem:[#allocation10 + $0x4d0] sm:$0xff]
    %v536 = vld [vmem:[#allocation10 + $0x4d8] sm:$0xff]
    %v537 = vld [vmem:[#allocation10 + $0x4e0] sm:$0xff]
    %v538 = vld [vmem:[#allocation10 + $0x4e8] sm:$0xff]
    %v539 = vld [vmem:[#allocation10 + $0x4f0] sm:$0xff]
    %v540 = vld [vmem:[#allocation10 + $0x4f8] sm:$0xff]
    %v541 = vld [vmem:[#allocation10 + $0x500] sm:$0xff]
    %v542 = vld [vmem:[#allocation10 + $0x508] sm:$0xff]
    %v543 = vld [vmem:[#allocation10 + $0x510] sm:$0xff]
    %v544 = vld [vmem:[#allocation10 + $0x518] sm:$0xff]
    %v545 = vld [vmem:[#allocation10 + $0x520] sm:$0xff]
    %v546 = vld [vmem:[#allocation10 + $0x528] sm:$0xff]
    %v547 = vld [vmem:[#allocation10 + $0x530] sm:$0xff]
    %v548 = vld [vmem:[#allocation10 + $0x538] sm:$0xff]
    %v549 = vld [vmem:[#allocation10 + $0x540] sm:$0xff]
    %v550 = vld [vmem:[#allocation10 + $0x548] sm:$0xff]
    %v551 = vld [vmem:[#allocation10 + $0x550] sm:$0xff]
    %v552 = vld [vmem:[#allocation10 + $0x558] sm:$0xff]
    %v553 = vld [vmem:[#allocation10 + $0x560] sm:$0xff]
    %v554 = vld [vmem:[#allocation10 + $0x568] sm:$0xff]
    %v555 = vld [vmem:[#allocation10 + $0x570] sm:$0xff]
    %v556 = vld [vmem:[#allocation10 + $0x578] sm:$0xff]
    %v557 = vld [vmem:[#allocation10 + $0x580] sm:$0xff]
    %v558 = vld [vmem:[#allocation10 + $0x588] sm:$0xff]
    %v559 = vld [vmem:[#allocation10 + $0x590] sm:$0xff]
    %v560 = vld [vmem:[#allocation10 + $0x598] sm:$0xff]
    %v561 = vld [vmem:[#allocation10 + $0x5a0] sm:$0xff]
    %v562 = vld [vmem:[#allocation10 + $0x5a8] sm:$0xff]
    %v563 = vld [vmem:[#allocation10 + $0x5b0] sm:$0xff]
    %v564 = vld [vmem:[#allocation10 + $0x5b8] sm:$0xff]
    %v565 = vld [vmem:[#allocation10 + $0x5c0] sm:$0xff]
    %v566 = vld [vmem:[#allocation10 + $0x5c8] sm:$0xff]
    %v567 = vld [vmem:[#allocation10 + $0x5d0] sm:$0xff]
    %v568 = vld [vmem:[#allocation10 + $0x5d8] sm:$0xff]
    %v569 = vld [vmem:[#allocation10 + $0x5e0] sm:$0xff]
    %v570 = vld [vmem:[#allocation10 + $0x5e8] sm:$0xff]
    %v571 = vld [vmem:[#allocation10 + $0x5f0] sm:$0xff]
    %v572 = vld [vmem:[#allocation10 + $0x5f8] sm:$0xff]
    %v573 = vld [vmem:[#allocation10 + $0x600] sm:$0xff]
    %v574 = vld [vmem:[#allocation10 + $0x608] sm:$0xff]
    %v575 = vld [vmem:[#allocation10 + $0x610] sm:$0xff]
    %v576 = vld [vmem:[#allocation10 + $0x618] sm:$0xff]
    %v577 = vld [vmem:[#allocation10 + $0x620] sm:$0xff]
    %v578 = vld [vmem:[#allocation10 + $0x628] sm:$0xff]
    %v579 = vld [vmem:[#allocation10 + $0x630] sm:$0xff]
    %v580 = vld [vmem:[#allocation10 + $0x638] sm:$0xff]
    %v581 = vld [vmem:[#allocation10 + $0x640] sm:$0xff]
    %v582 = vld [vmem:[#allocation10 + $0x648] sm:$0xff]
    %v583 = vld [vmem:[#allocation10 + $0x650] sm:$0xff]
    %v584 = vld [vmem:[#allocation10 + $0x658] sm:$0xff]
    %v585 = vld [vmem:[#allocation10 + $0x660] sm:$0xff]
    %v586 = vld [vmem:[#allocation10 + $0x668] sm:$0xff]
    %v587 = vld [vmem:[#allocation10 + $0x670] sm:$0xff]
    %v588 = vld [vmem:[#allocation10 + $0x678] sm:$0xff]
    %v589 = vld [vmem:[#allocation10 + $0x680] sm:$0xff]
    %v590 = vld [vmem:[#allocation10 + $0x688] sm:$0xff]
    %v591 = vld [vmem:[#allocation10 + $0x690] sm:$0xff]
    %v592 = vld [vmem:[#allocation10 + $0x698] sm:$0xff]
    %v593 = vld [vmem:[#allocation10 + $0x6a0] sm:$0xff]
    %v594 = vld [vmem:[#allocation10 + $0x6a8] sm:$0xff]
    %v595 = vld [vmem:[#allocation10 + $0x6b0] sm:$0xff]
    %v596 = vld [vmem:[#allocation10 + $0x6b8] sm:$0xff]
    %v597 = vld [vmem:[#allocation10 + $0x6c0] sm:$0xff]
    %v598 = vld [vmem:[#allocation10 + $0x6c8] sm:$0xff]
    %v599 = vld [vmem:[#allocation10 + $0x6d0] sm:$0xff]
    %v600 = vld [vmem:[#allocation10 + $0x6d8] sm:$0xff]
    %v601 = vld [vmem:[#allocation10 + $0x6e0] sm:$0xff]
    %v602 = vld [vmem:[#allocation10 + $0x6e8] sm:$0xff]
    %v603 = vld [vmem:[#allocation10 + $0x6f0] sm:$0xff]
    %v604 = vld [vmem:[#allocation10 + $0x6f8] sm:$0xff]
    %v605 = vld [vmem:[#allocation10 + $0x700] sm:$0xff]
    %v606 = vld [vmem:[#allocation10 + $0x708] sm:$0xff]
    %v607 = vld [vmem:[#allocation10 + $0x710] sm:$0xff]
    %v608 = vld [vmem:[#allocation10 + $0x718] sm:$0xff]
    %v609 = vld [vmem:[#allocation10 + $0x720] sm:$0xff]
    %v610 = vld [vmem:[#allocation10 + $0x728] sm:$0xff]
    %v611 = vld [vmem:[#allocation10 + $0x730] sm:$0xff]
    %v612 = vld [vmem:[#allocation10 + $0x738] sm:$0xff]
    %v613 = vld [vmem:[#allocation10 + $0x740] sm:$0xff]
    %v614 = vld [vmem:[#allocation10 + $0x748] sm:$0xff]
    %v615 = vld [vmem:[#allocation10 + $0x750] sm:$0xff]
    %v616 = vld [vmem:[#allocation10 + $0x758] sm:$0xff]
    %v617 = vld [vmem:[#allocation10 + $0x760] sm:$0xff]
    %v618 = vld [vmem:[#allocation10 + $0x768] sm:$0xff]
    %v619 = vld [vmem:[#allocation10 + $0x770] sm:$0xff]
    %v620 = vld [vmem:[#allocation10 + $0x778] sm:$0xff]
    %v621 = vld [vmem:[#allocation10 + $0x780] sm:$0xff]
    %v622 = vld [vmem:[#allocation10 + $0x788] sm:$0xff]
    %v623 = vld [vmem:[#allocation10 + $0x790] sm:$0xff]
    %v624 = vld [vmem:[#allocation10 + $0x798] sm:$0xff]
    %v625 = vld [vmem:[#allocation10 + $0x7a0] sm:$0xff]
    %v626 = vld [vmem:[#allocation10 + $0x7a8] sm:$0xff]
    %v627 = vld [vmem:[#allocation10 + $0x7b0] sm:$0xff]
    %v628 = vld [vmem:[#allocation10 + $0x7b8] sm:$0xff]
    %v629 = vld [vmem:[#allocation10 + $0x7c0] sm:$0xff]
    %v630 = vld [vmem:[#allocation10 + $0x7c8] sm:$0xff]
    %v631 = vld [vmem:[#allocation10 + $0x7d0] sm:$0xff]
    %v632 = vld [vmem:[#allocation10 + $0x7d8] sm:$0xff]
    %v633 = vld [vmem:[#allocation10 + $0x7e0] sm:$0xff]
    %v634 = vld [vmem:[#allocation10 + $0x7e8] sm:$0xff]
    %v635 = vld [vmem:[#allocation10 + $0x7f0] sm:$0xff]
    %v636 = vld [vmem:[#allocation10 + $0x7f8] sm:$0xff]
    %v637 = vld [vmem:[#allocation10 + $0x800] sm:$0xff]
    %v638 = vld [vmem:[#allocation10 + $0x808] sm:$0xff]
    %v639 = vld [vmem:[#allocation10 + $0x810] sm:$0xff]
    %v640 = vld [vmem:[#allocation10 + $0x818] sm:$0xff]
    %v641 = vld [vmem:[#allocation10 + $0x820] sm:$0xff]
    %v642 = vld [vmem:[#allocation10 + $0x828] sm:$0xff]
    %v643 = vld [vmem:[#allocation10 + $0x830] sm:$0xff]
    %v644 = vld [vmem:[#allocation10 + $0x838] sm:$0xff]
    %v645 = vld [vmem:[#allocation10 + $0x840] sm:$0xff]
    %v646 = vld [vmem:[#allocation10 + $0x848] sm:$0xff]
    %v647 = vld [vmem:[#allocation10 + $0x850] sm:$0xff]
    %v648 = vld [vmem:[#allocation10 + $0x858] sm:$0xff]
    %v649 = vld [vmem:[#allocation10 + $0x860] sm:$0xff]
    %v650 = vld [vmem:[#allocation10 + $0x868] sm:$0xff]
    %v651 = vld [vmem:[#allocation10 + $0x870] sm:$0xff]
    %v652 = vld [vmem:[#allocation10 + $0x878] sm:$0xff]
    %v653 = vld [vmem:[#allocation10 + $0x880] sm:$0xff]
    %v654 = vld [vmem:[#allocation10 + $0x888] sm:$0xff]
    %v655 = vld [vmem:[#allocation10 + $0x890] sm:$0xff]
    %v656 = vld [vmem:[#allocation10 + $0x898] sm:$0xff]
    %v657 = vld [vmem:[#allocation10 + $0x8a0] sm:$0xff]
    %v658 = vld [vmem:[#allocation10 + $0x8a8] sm:$0xff]
    %v659 = vld [vmem:[#allocation10 + $0x8b0] sm:$0xff]
    %v660 = vld [vmem:[#allocation10 + $0x8b8] sm:$0xff]
    %v661 = vld [vmem:[#allocation10 + $0x8c0] sm:$0xff]
    %v662 = vld [vmem:[#allocation10 + $0x8c8] sm:$0xff]
    %v663 = vld [vmem:[#allocation10 + $0x8d0] sm:$0xff]
    %v664 = vld [vmem:[#allocation10 + $0x8d8] sm:$0xff]
    %v665 = vld [vmem:[#allocation10 + $0x8e0] sm:$0xff]
    %v666 = vld [vmem:[#allocation10 + $0x8e8] sm:$0xff]
    %v667 = vld [vmem:[#allocation10 + $0x8f0] sm:$0xff]
    %v668 = vld [vmem:[#allocation10 + $0x8f8] sm:$0xff]
    %v669 = vld [vmem:[#allocation10 + $0x900] sm:$0xff]
    %v670 = vld [vmem:[#allocation10 + $0x908] sm:$0xff]
    %v671 = vld [vmem:[#allocation10 + $0x910] sm:$0xff]
    %v672 = vld [vmem:[#allocation10 + $0x918] sm:$0xff]
    %v673 = vld [vmem:[#allocation10 + $0x920] sm:$0xff]
    %v674 = vld [vmem:[#allocation10 + $0x928] sm:$0xff]
    %v675 = vld [vmem:[#allocation10 + $0x930] sm:$0xff]
    %v676 = vld [vmem:[#allocation10 + $0x938] sm:$0xff]
    %v677 = vld [vmem:[#allocation10 + $0x940] sm:$0xff]
    %v678 = vld [vmem:[#allocation10 + $0x948] sm:$0xff]
    %v679 = vld [vmem:[#allocation10 + $0x950] sm:$0xff]
    %v680 = vld [vmem:[#allocation10 + $0x958] sm:$0xff]
    %v681 = vld [vmem:[#allocation10 + $0x960] sm:$0xff]
    %v682 = vld [vmem:[#allocation10 + $0x968] sm:$0xff]
    %v683 = vld [vmem:[#allocation10 + $0x970] sm:$0xff]
    %v684 = vld [vmem:[#allocation10 + $0x978] sm:$0xff]
    %v685 = vld [vmem:[#allocation10 + $0x980] sm:$0xff]
    %v686 = vld [vmem:[#allocation10 + $0x988] sm:$0xff]
    %v687 = vld [vmem:[#allocation10 + $0x990] sm:$0xff]
    %v688 = vld [vmem:[#allocation10 + $0x998] sm:$0xff]
    %v689 = vld [vmem:[#allocation10 + $0x9a0] sm:$0xff]
    %v690 = vld [vmem:[#allocation10 + $0x9a8] sm:$0xff]
    %v691 = vld [vmem:[#allocation10 + $0x9b0] sm:$0xff]
    %v692 = vld [vmem:[#allocation10 + $0x9b8] sm:$0xff]
    %v693 = vld [vmem:[#allocation10 + $0x9c0] sm:$0xff]
    %v694 = vld [vmem:[#allocation10 + $0x9c8] sm:$0xff]
    %v695 = vld [vmem:[#allocation10 + $0x9d0] sm:$0xff]
    %v696 = vld [vmem:[#allocation10 + $0x9d8] sm:$0xff]
    %v697 = vld [vmem:[#allocation10 + $0x9e0] sm:$0xff]
    %v698 = vld [vmem:[#allocation10 + $0x9e8] sm:$0xff]
    %v699 = vld [vmem:[#allocation10 + $0x9f0] sm:$0xff]
    %v700 = vld [vmem:[#allocation10 + $0x9f8] sm:$0xff]
    %v701 = vld [vmem:[#allocation10 + $0xa00] sm:$0xff]
    %v702 = vld [vmem:[#allocation10 + $0xa08] sm:$0xff]
    %v703 = vld [vmem:[#allocation10 + $0xa10] sm:$0xff]
    %v704 = vld [vmem:[#allocation10 + $0xa18] sm:$0xff]
    %v705 = vld [vmem:[#allocation10 + $0xa20] sm:$0xff]
    %v706 = vld [vmem:[#allocation10 + $0xa28] sm:$0xff]
    %v707 = vld [vmem:[#allocation10 + $0xa30] sm:$0xff]
    %v708 = vld [vmem:[#allocation10 + $0xa38] sm:$0xff]
    %v709 = vld [vmem:[#allocation10 + $0xa40] sm:$0xff]
    %v710 = vld [vmem:[#allocation10 + $0xa48] sm:$0xff]
    %v711 = vld [vmem:[#allocation10 + $0xa50] sm:$0xff]
    %v712 = vld [vmem:[#allocation10 + $0xa58] sm:$0xff]
    %v713 = vld [vmem:[#allocation10 + $0xa60] sm:$0xff]
    %v714 = vld [vmem:[#allocation10 + $0xa68] sm:$0xff]
    %v715 = vld [vmem:[#allocation10 + $0xa70] sm:$0xff]
    %v716 = vld [vmem:[#allocation10 + $0xa78] sm:$0xff]
    %v717 = vld [vmem:[#allocation10 + $0xa80] sm:$0xff]
    %v718 = vld [vmem:[#allocation10 + $0xa88] sm:$0xff]
    %v719 = vld [vmem:[#allocation10 + $0xa90] sm:$0xff]
    %v720 = vld [vmem:[#allocation10 + $0xa98] sm:$0xff]
    %v721 = vld [vmem:[#allocation10 + $0xaa0] sm:$0xff]
    %v722 = vld [vmem:[#allocation10 + $0xaa8] sm:$0xff]
    %v723 = vld [vmem:[#allocation10 + $0xab0] sm:$0xff]
    %v724 = vld [vmem:[#allocation10 + $0xab8] sm:$0xff]
    %v725 = vld [vmem:[#allocation10 + $0xac0] sm:$0xff]
    %v726 = vld [vmem:[#allocation10 + $0xac8] sm:$0xff]
    %v727 = vld [vmem:[#allocation10 + $0xad0] sm:$0xff]
    %v728 = vld [vmem:[#allocation10 + $0xad8] sm:$0xff]
    %v729 = vld [vmem:[#allocation10 + $0xae0] sm:$0xff]
    %v730 = vld [vmem:[#allocation10 + $0xae8] sm:$0xff]
    %v731 = vld [vmem:[#allocation10 + $0xaf0] sm:$0xff]
    %v732 = vld [vmem:[#allocation10 + $0xaf8] sm:$0xff]
    %v733 = vld [vmem:[#allocation10 + $0xb00] sm:$0xff]
    %v734 = vld [vmem:[#allocation10 + $0xb08] sm:$0xff]
    %v735 = vld [vmem:[#allocation10 + $0xb10] sm:$0xff]
    %v736 = vld [vmem:[#allocation10 + $0xb18] sm:$0xff]
    %v737 = vld [vmem:[#allocation10 + $0xb20] sm:$0xff]
    %v738 = vld [vmem:[#allocation10 + $0xb28] sm:$0xff]
    %v739 = vld [vmem:[#allocation10 + $0xb30] sm:$0xff]
    %v740 = vld [vmem:[#allocation10 + $0xb38] sm:$0xff]
    %v741 = vld [vmem:[#allocation10 + $0xb40] sm:$0xff]
    %v742 = vld [vmem:[#allocation10 + $0xb48] sm:$0xff]
    %v743 = vld [vmem:[#allocation10 + $0xb50] sm:$0xff]
    %v744 = vld [vmem:[#allocation10 + $0xb58] sm:$0xff]
    %v745 = vld [vmem:[#allocation10 + $0xb60] sm:$0xff]
    %v746 = vld [vmem:[#allocation10 + $0xb68] sm:$0xff]
    %v747 = vld [vmem:[#allocation10 + $0xb70] sm:$0xff]
    %v748 = vld [vmem:[#allocation10 + $0xb78] sm:$0xff]
    %v749 = vld [vmem:[#allocation10 + $0xb80] sm:$0xff]
    %v750 = vld [vmem:[#allocation10 + $0xb88] sm:$0xff]
    %v751 = vld [vmem:[#allocation10 + $0xb90] sm:$0xff]
    %v752 = vld [vmem:[#allocation10 + $0xb98] sm:$0xff]
    %v753 = vld [vmem:[#allocation10 + $0xba0] sm:$0xff]
    %v754 = vld [vmem:[#allocation10 + $0xba8] sm:$0xff]
    %v755 = vld [vmem:[#allocation10 + $0xbb0] sm:$0xff]
    %v756 = vld [vmem:[#allocation10 + $0xbb8] sm:$0xff]
    %v757 = vld [vmem:[#allocation10 + $0xbc0] sm:$0xff]
    %v758 = vld [vmem:[#allocation10 + $0xbc8] sm:$0xff]
    %v759 = vld [vmem:[#allocation10 + $0xbd0] sm:$0xff]
    %v760 = vld [vmem:[#allocation10 + $0xbd8] sm:$0xff]
    %v761 = vld [vmem:[#allocation10 + $0xbe0] sm:$0xff]
    %v762 = vld [vmem:[#allocation10 + $0xbe8] sm:$0xff]
    %v763 = vld [vmem:[#allocation10 + $0xbf0] sm:$0xff]
    %v764 = vld [vmem:[#allocation10 + $0xbf8] sm:$0xff]
    %v765 = vld [vmem:[#allocation10 + $0xc00] sm:$0xff]
    %v766 = vld [vmem:[#allocation10 + $0xc08] sm:$0xff]
    %v767 = vld [vmem:[#allocation10 + $0xc10] sm:$0xff]
    %v768 = vld [vmem:[#allocation10 + $0xc18] sm:$0xff]
    %v769 = vld [vmem:[#allocation10 + $0xc20] sm:$0xff]
    %v770 = vld [vmem:[#allocation10 + $0xc28] sm:$0xff]
    %v771 = vld [vmem:[#allocation10 + $0xc30] sm:$0xff]
    %v772 = vld [vmem:[#allocation10 + $0xc38] sm:$0xff]
    %v773 = vld [vmem:[#allocation10 + $0xc40] sm:$0xff]
    %v774 = vld [vmem:[#allocation10 + $0xc48] sm:$0xff]
    %v775 = vld [vmem:[#allocation10 + $0xc50] sm:$0xff]
    %v776 = vld [vmem:[#allocation10 + $0xc58] sm:$0xff]
    %v777 = vld [vmem:[#allocation10 + $0xc60] sm:$0xff]
    %v778 = vld [vmem:[#allocation10 + $0xc68] sm:$0xff]
    %v779 = vld [vmem:[#allocation10 + $0xc70] sm:$0xff]
    %v780 = vld [vmem:[#allocation10 + $0xc78] sm:$0xff]
    %v781 = vld [vmem:[#allocation10 + $0xc80] sm:$0xff]
    %v782 = vld [vmem:[#allocation10 + $0xc88] sm:$0xff]
    %v783 = vld [vmem:[#allocation10 + $0xc90] sm:$0xff]
    %v784 = vld [vmem:[#allocation10 + $0xc98] sm:$0xff]
    %v785 = vld [vmem:[#allocation10 + $0xca0] sm:$0xff]
    %v786 = vld [vmem:[#allocation10 + $0xca8] sm:$0xff]
    %v787 = vld [vmem:[#allocation10 + $0xcb0] sm:$0xff]
    %v788 = vld [vmem:[#allocation10 + $0xcb8] sm:$0xff]
    %v789 = vld [vmem:[#allocation10 + $0xcc0] sm:$0xff]
    %v790 = vld [vmem:[#allocation10 + $0xcc8] sm:$0xff]
    %v791 = vld [vmem:[#allocation10 + $0xcd0] sm:$0xff]
    %v792 = vld [vmem:[#allocation10 + $0xcd8] sm:$0xff]
    %v793 = vld [vmem:[#allocation10 + $0xce0] sm:$0xff]
    %v794 = vld [vmem:[#allocation10 + $0xce8] sm:$0xff]
    %v795 = vld [vmem:[#allocation10 + $0xcf0] sm:$0xff]
    %v796 = vld [vmem:[#allocation10 + $0xcf8] sm:$0xff]
    %v797 = vld [vmem:[#allocation10 + $0xd00] sm:$0xff]
    %v798 = vld [vmem:[#allocation10 + $0xd08] sm:$0xff]
    %v799 = vld [vmem:[#allocation10 + $0xd10] sm:$0xff]
    %v800 = vld [vmem:[#allocation10 + $0xd18] sm:$0xff]
    %v801 = vld [vmem:[#allocation10 + $0xd20] sm:$0xff]
    %v802 = vld [vmem:[#allocation10 + $0xd28] sm:$0xff]
    %v803 = vld [vmem:[#allocation10 + $0xd30] sm:$0xff]
    %v804 = vld [vmem:[#allocation10 + $0xd38] sm:$0xff]
    %v805 = vld [vmem:[#allocation10 + $0xd40] sm:$0xff]
    %v806 = vld [vmem:[#allocation10 + $0xd48] sm:$0xff]
    %v807 = vld [vmem:[#allocation10 + $0xd50] sm:$0xff]
    %v808 = vld [vmem:[#allocation10 + $0xd58] sm:$0xff]
    %v809 = vld [vmem:[#allocation10 + $0xd60] sm:$0xff]
    %v810 = vld [vmem:[#allocation10 + $0xd68] sm:$0xff]
    %v811 = vld [vmem:[#allocation10 + $0xd70] sm:$0xff]
    %v812 = vld [vmem:[#allocation10 + $0xd78] sm:$0xff]
    %v813 = vld [vmem:[#allocation10 + $0xd80] sm:$0xff]
    %v814 = vld [vmem:[#allocation10 + $0xd88] sm:$0xff]
    %v815 = vld [vmem:[#allocation10 + $0xd90] sm:$0xff]
    %v816 = vld [vmem:[#allocation10 + $0xd98] sm:$0xff]
    %v817 = vld [vmem:[#allocation10 + $0xda0] sm:$0xff]
    %v818 = vld [vmem:[#allocation10 + $0xda8] sm:$0xff]
    %v819 = vld [vmem:[#allocation10 + $0xdb0] sm:$0xff]
    %v820 = vld [vmem:[#allocation10 + $0xdb8] sm:$0xff]
    %v821 = vld [vmem:[#allocation10 + $0xdc0] sm:$0xff]
    %v822 = vld [vmem:[#allocation10 + $0xdc8] sm:$0xff]
    %v823 = vld [vmem:[#allocation10 + $0xdd0] sm:$0xff]
    %v824 = vld [vmem:[#allocation10 + $0xdd8] sm:$0xff]
    %v825 = vld [vmem:[#allocation10 + $0xde0] sm:$0xff]
    %v826 = vld [vmem:[#allocation10 + $0xde8] sm:$0xff]
    %v827 = vld [vmem:[#allocation10 + $0xdf0] sm:$0xff]
    %v828 = vld [vmem:[#allocation10 + $0xdf8] sm:$0xff]
    %v829 = vld [vmem:[#allocation10 + $0xe00] sm:$0xff]
    %v830 = vld [vmem:[#allocation10 + $0xe08] sm:$0xff]
    %v831 = vld [vmem:[#allocation10 + $0xe10] sm:$0xff]
    %v832 = vld [vmem:[#allocation10 + $0xe18] sm:$0xff]
    %v833 = vld [vmem:[#allocation10 + $0xe20] sm:$0xff]
    %v834 = vld [vmem:[#allocation10 + $0xe28] sm:$0xff]
    %v835 = vld [vmem:[#allocation10 + $0xe30] sm:$0xff]
    %v836 = vld [vmem:[#allocation10 + $0xe38] sm:$0xff]
    %v837 = vld [vmem:[#allocation10 + $0xe40] sm:$0xff]
    %v838 = vld [vmem:[#allocation10 + $0xe48] sm:$0xff]
    %v839 = vld [vmem:[#allocation10 + $0xe50] sm:$0xff]
    %v840 = vld [vmem:[#allocation10 + $0xe58] sm:$0xff]
    %v841 = vld [vmem:[#allocation10 + $0xe60] sm:$0xff]
    %v842 = vld [vmem:[#allocation10 + $0xe68] sm:$0xff]
    %v843 = vld [vmem:[#allocation10 + $0xe70] sm:$0xff]
    %v844 = vld [vmem:[#allocation10 + $0xe78] sm:$0xff]
    %v845 = vld [vmem:[#allocation10 + $0xe80] sm:$0xff]
    %v846 = vld [vmem:[#allocation10 + $0xe88] sm:$0xff]
    %v847 = vld [vmem:[#allocation10 + $0xe90] sm:$0xff]
    %v848 = vld [vmem:[#allocation10 + $0xe98] sm:$0xff]
    %v849 = vld [vmem:[#allocation10 + $0xea0] sm:$0xff]
    %v850 = vld [vmem:[#allocation10 + $0xea8] sm:$0xff]
    %v851 = vld [vmem:[#allocation10 + $0xeb0] sm:$0xff]
    %v852 = vld [vmem:[#allocation10 + $0xeb8] sm:$0xff]
    %v853 = vld [vmem:[#allocation10 + $0xec0] sm:$0xff]
    %v854 = vld [vmem:[#allocation10 + $0xec8] sm:$0xff]
    %v855 = vld [vmem:[#allocation10 + $0xed0] sm:$0xff]
    %v856 = vld [vmem:[#allocation10 + $0xed8] sm:$0xff]
    %v857 = vld [vmem:[#allocation10 + $0xee0] sm:$0xff]
    %v858 = vld [vmem:[#allocation10 + $0xee8] sm:$0xff]
    %v859 = vld [vmem:[#allocation10 + $0xef0] sm:$0xff]
    %v860 = vld [vmem:[#allocation10 + $0xef8] sm:$0xff]
    %v861 = vld [vmem:[#allocation10 + $0xf00] sm:$0xff]
    %v862 = vld [vmem:[#allocation10 + $0xf08] sm:$0xff]
    %v863 = vld [vmem:[#allocation10 + $0xf10] sm:$0xff]
    %v864 = vld [vmem:[#allocation10 + $0xf18] sm:$0xff]
    %v865 = vld [vmem:[#allocation10 + $0xf20] sm:$0xff]
    %v866 = vld [vmem:[#allocation10 + $0xf28] sm:$0xff]
    %v867 = vld [vmem:[#allocation10 + $0xf30] sm:$0xff]
    %v868 = vld [vmem:[#allocation10 + $0xf38] sm:$0xff]
    %v869 = vld [vmem:[#allocation10 + $0xf40] sm:$0xff]
    %v870 = vld [vmem:[#allocation10 + $0xf48] sm:$0xff]
    %v871 = vld [vmem:[#allocation10 + $0xf50] sm:$0xff]
    %v872 = vld [vmem:[#allocation10 + $0xf58] sm:$0xff]
    %v873 = vld [vmem:[#allocation10 + $0xf60] sm:$0xff]
    %v874 = vld [vmem:[#allocation10 + $0xf68] sm:$0xff]
    %v875 = vld [vmem:[#allocation10 + $0xf70] sm:$0xff]
    %v876 = vld [vmem:[#allocation10 + $0xf78] sm:$0xff]
    %v877 = vld [vmem:[#allocation10 + $0xf80] sm:$0xff]
    %v878 = vld [vmem:[#allocation10 + $0xf88] sm:$0xff]
    %v879 = vld [vmem:[#allocation10 + $0xf90] sm:$0xff]
    %v880 = vld [vmem:[#allocation10 + $0xf98] sm:$0xff]
    %v881 = vld [vmem:[#allocation10 + $0xfa0] sm:$0xff]
    %v882 = vld [vmem:[#allocation10 + $0xfa8] sm:$0xff]
    %v883 = vld [vmem:[#allocation10 + $0xfb0] sm:$0xff]
    %v884 = vld [vmem:[#allocation10 + $0xfb8] sm:$0xff]
    %v885 = vld [vmem:[#allocation10 + $0xfc0] sm:$0xff]
    %v886 = vld [vmem:[#allocation10 + $0xfc8] sm:$0xff]
    %v887 = vld [vmem:[#allocation10 + $0xfd0] sm:$0xff]
    %v888 = vld [vmem:[#allocation10 + $0xfd8] sm:$0xff]
    %v889 = vld [vmem:[#allocation10 + $0xfe0] sm:$0xff]
    %v890 = vld [vmem:[#allocation10 + $0xfe8] sm:$0xff]
    %v891 = vld [vmem:[#allocation10 + $0xff0] sm:$0xff]
    %v892 = vld [vmem:[#allocation10 + $0xff8] sm:$0xff]
    %v893 = vld [vmem:[#allocation10 + $0x1000] sm:$0xff]
    %v894 = vld [vmem:[#allocation10 + $0x1008] sm:$0xff]
    %v895 = vld [vmem:[#allocation10 + $0x1010] sm:$0xff]
    %v896 = vld [vmem:[#allocation10 + $0x1018] sm:$0xff]
    %v897 = vld [vmem:[#allocation10 + $0x1020] sm:$0xff]
    %v898 = vld [vmem:[#allocation10 + $0x1028] sm:$0xff]
    %v899 = vld [vmem:[#allocation10 + $0x1030] sm:$0xff]
    %v900 = vld [vmem:[#allocation10 + $0x1038] sm:$0xff]
    %v901 = vld [vmem:[#allocation10 + $0x1040] sm:$0xff]
    %v902 = vld [vmem:[#allocation10 + $0x1048] sm:$0xff]
    %v903 = vld [vmem:[#allocation10 + $0x1050] sm:$0xff]
    %v904 = vld [vmem:[#allocation10 + $0x1058] sm:$0xff]
    %v905 = vld [vmem:[#allocation10 + $0x1060] sm:$0xff]
    %v906 = vld [vmem:[#allocation10 + $0x1068] sm:$0xff]
    %v907 = vld [vmem:[#allocation10 + $0x1070] sm:$0xff]
    %v908 = vld [vmem:[#allocation10 + $0x1078] sm:$0xff]
    %v909 = vld [vmem:[#allocation10 + $0x1080] sm:$0xff]
    %v910 = vld [vmem:[#allocation10 + $0x1088] sm:$0xff]
    %v911 = vld [vmem:[#allocation10 + $0x1090] sm:$0xff]
    %v912 = vld [vmem:[#allocation10 + $0x1098] sm:$0xff]
    %v913 = vld [vmem:[#allocation10 + $0x10a0] sm:$0xff]
    %v914 = vld [vmem:[#allocation10 + $0x10a8] sm:$0xff]
    %v915 = vld [vmem:[#allocation10 + $0x10b0] sm:$0xff]
    %v916 = vld [vmem:[#allocation10 + $0x10b8] sm:$0xff]
    %v917 = vld [vmem:[#allocation10 + $0x10c0] sm:$0xff]
    %v918 = vld [vmem:[#allocation10 + $0x10c8] sm:$0xff]
    %v919 = vld [vmem:[#allocation10 + $0x10d0] sm:$0xff]
    %v920 = vld [vmem:[#allocation10 + $0x10d8] sm:$0xff]
    %v921 = vld [vmem:[#allocation10 + $0x10e0] sm:$0xff]
    %v922 = vld [vmem:[#allocation10 + $0x10e8] sm:$0xff]
    %v923 = vld [vmem:[#allocation10 + $0x10f0] sm:$0xff]
    %v924 = vld [vmem:[#allocation10 + $0x10f8] sm:$0xff]
    %v925 = vld [vmem:[#allocation10 + $0x1100] sm:$0xff]
    %v926 = vld [vmem:[#allocation10 + $0x1108] sm:$0xff]
    %v927 = vld [vmem:[#allocation10 + $0x1110] sm:$0xff]
    %v928 = vld [vmem:[#allocation10 + $0x1118] sm:$0xff]
    %v929 = vld [vmem:[#allocation10 + $0x1120] sm:$0xff]
    %v930 = vld [vmem:[#allocation10 + $0x1128] sm:$0xff]
    %v931 = vld [vmem:[#allocation10 + $0x1130] sm:$0xff]
    %v932 = vld [vmem:[#allocation10 + $0x1138] sm:$0xff]
    %v933 = vld [vmem:[#allocation10 + $0x1140] sm:$0xff]
    %v934 = vld [vmem:[#allocation10 + $0x1148] sm:$0xff]
    %v935 = vld [vmem:[#allocation10 + $0x1150] sm:$0xff]
    %v936 = vld [vmem:[#allocation10 + $0x1158] sm:$0xff]
    %v937 = vld [vmem:[#allocation10 + $0x1160] sm:$0xff]
    %v938 = vld [vmem:[#allocation10 + $0x1168] sm:$0xff]
    %v939 = vld [vmem:[#allocation10 + $0x1170] sm:$0xff]
    %v940 = vld [vmem:[#allocation10 + $0x1178] sm:$0xff]
    %v941 = vld [vmem:[#allocation10 + $0x1180] sm:$0xff]
    %v942 = vld [vmem:[#allocation10 + $0x1188] sm:$0xff]
    %v943 = vld [vmem:[#allocation10 + $0x1190] sm:$0xff]
    %v944 = vld [vmem:[#allocation10 + $0x1198] sm:$0xff]
    %v945 = vld [vmem:[#allocation10 + $0x11a0] sm:$0xff]
    %v946 = vld [vmem:[#allocation10 + $0x11a8] sm:$0xff]
    %v947 = vld [vmem:[#allocation10 + $0x11b0] sm:$0xff]
    %v948 = vld [vmem:[#allocation10 + $0x11b8] sm:$0xff]
    %v949 = vld [vmem:[#allocation10 + $0x11c0] sm:$0xff]
    %v950 = vld [vmem:[#allocation10 + $0x11c8] sm:$0xff]
    %v951 = vld [vmem:[#allocation10 + $0x11d0] sm:$0xff]
    %v952 = vld [vmem:[#allocation10 + $0x11d8] sm:$0xff]
    %v953 = vld [vmem:[#allocation10 + $0x11e0] sm:$0xff]
    %v954 = vld [vmem:[#allocation10 + $0x11e8] sm:$0xff]
    %v955 = vld [vmem:[#allocation10 + $0x11f0] sm:$0xff]
    %v956 = vld [vmem:[#allocation10 + $0x11f8] sm:$0xff]
    %v957 = vld [vmem:[#allocation10 + $0x1200] sm:$0xff]
    %v958 = vld [vmem:[#allocation10 + $0x1208] sm:$0xff]
    %v959 = vld [vmem:[#allocation10 + $0x1210] sm:$0xff]
    %v960 = vld [vmem:[#allocation10 + $0x1218] sm:$0xff]
    %v961 = vld [vmem:[#allocation10 + $0x1220] sm:$0xff]
    %v962 = vld [vmem:[#allocation10 + $0x1228] sm:$0xff]
    %v963 = vld [vmem:[#allocation10 + $0x1230] sm:$0xff]
    %v964 = vld [vmem:[#allocation10 + $0x1238] sm:$0xff]
    %v965 = vld [vmem:[#allocation10 + $0x1240] sm:$0xff]
    %v966 = vld [vmem:[#allocation10 + $0x1248] sm:$0xff]
    %v967 = vld [vmem:[#allocation10 + $0x1250] sm:$0xff]
    %v968 = vld [vmem:[#allocation10 + $0x1258] sm:$0xff]
    %v969 = vld [vmem:[#allocation10 + $0x1260] sm:$0xff]
    %v970 = vld [vmem:[#allocation10 + $0x1268] sm:$0xff]
    %v971 = vld [vmem:[#allocation10 + $0x1270] sm:$0xff]
    %v972 = vld [vmem:[#allocation10 + $0x1278] sm:$0xff]
    %v973 = vld [vmem:[#allocation10 + $0x1280] sm:$0xff]
    %v974 = vld [vmem:[#allocation10 + $0x1288] sm:$0xff]
    %v975 = vld [vmem:[#allocation10 + $0x1290] sm:$0xff]
    %v976 = vld [vmem:[#allocation10 + $0x1298] sm:$0xff]
    %v977 = vld [vmem:[#allocation10 + $0x12a0] sm:$0xff]
    %v978 = vld [vmem:[#allocation10 + $0x12a8] sm:$0xff]
    %v979 = vld [vmem:[#allocation10 + $0x12b0] sm:$0xff]
    %v980 = vld [vmem:[#allocation10 + $0x12b8] sm:$0xff]
    %v981 = vld [vmem:[#allocation10 + $0x12c0] sm:$0xff]
    %v982 = vld [vmem:[#allocation10 + $0x12c8] sm:$0xff]
    %v983 = vld [vmem:[#allocation10 + $0x12d0] sm:$0xff]
    %v984 = vld [vmem:[#allocation10 + $0x12d8] sm:$0xff]
    %v985 = vld [vmem:[#allocation10 + $0x12e0] sm:$0xff]
    %v986 = vld [vmem:[#allocation10 + $0x12e8] sm:$0xff]
    %v987 = vld [vmem:[#allocation10 + $0x12f0] sm:$0xff]
    %v988 = vld [vmem:[#allocation10 + $0x12f8] sm:$0xff]
    %v989 = vld [vmem:[#allocation10 + $0x1300] sm:$0xff]
    %v990 = vld [vmem:[#allocation10 + $0x1308] sm:$0xff]
    %v991 = vld [vmem:[#allocation10 + $0x1310] sm:$0xff]
    %v992 = vld [vmem:[#allocation10 + $0x1318] sm:$0xff]
    %v993 = vld [vmem:[#allocation10 + $0x1320] sm:$0xff]
    %v994 = vld [vmem:[#allocation10 + $0x1328] sm:$0xff]
    %v995 = vld [vmem:[#allocation10 + $0x1330] sm:$0xff]
    %v996 = vld [vmem:[#allocation10 + $0x1338] sm:$0xff]
    %v997 = vld [vmem:[#allocation10 + $0x1340] sm:$0xff]
    %v998 = vld [vmem:[#allocation10 + $0x1348] sm:$0xff]
    %v999 = vld [vmem:[#allocation10 + $0x1350] sm:$0xff]
    %v1000 = vld [vmem:[#allocation10 + $0x1358] sm:$0xff]
    %v1001 = vld [vmem:[#allocation10 + $0x1360] sm:$0xff]
    %v1002 = vld [vmem:[#allocation10 + $0x1368] sm:$0xff]
    %v1003 = vld [vmem:[#allocation10 + $0x1370] sm:$0xff]
    %v1004 = vld [vmem:[#allocation10 + $0x1378] sm:$0xff]
    %v1005 = vld [vmem:[#allocation10 + $0x1380] sm:$0xff]
    %v1006 = vld [vmem:[#allocation10 + $0x1388] sm:$0xff]
    %v1007 = vld [vmem:[#allocation10 + $0x1390] sm:$0xff]
    %v1008 = vld [vmem:[#allocation10 + $0x1398] sm:$0xff]
    %v1009 = vld [vmem:[#allocation10 + $0x13a0] sm:$0xff]
    %v1010 = vld [vmem:[#allocation10 + $0x13a8] sm:$0xff]
    %v1011 = vld [vmem:[#allocation10 + $0x13b0] sm:$0xff]
    %v1012 = vld [vmem:[#allocation10 + $0x13b8] sm:$0xff]
    %v1013 = vld [vmem:[#allocation10 + $0x13c0] sm:$0xff]
    %v1014 = vld [vmem:[#allocation10 + $0x13c8] sm:$0xff]
    %v1015 = vld [vmem:[#allocation10 + $0x13d0] sm:$0xff]
    %v1016 = vld [vmem:[#allocation10 + $0x13d8] sm:$0xff]
    %v1017 = vld [vmem:[#allocation10 + $0x13e0] sm:$0xff]
    %v1018 = vld [vmem:[#allocation10 + $0x13e8] sm:$0xff]
    %v1019 = vld [vmem:[#allocation10 + $0x13f0] sm:$0xff]
    %v1020 = vld [vmem:[#allocation10 + $0x13f8] sm:$0xff]
    %v1021 = vld [vmem:[#allocation10 + $0x1400] sm:$0xff]
    %v1022 = vld [vmem:[#allocation10 + $0x1408] sm:$0xff]
    %v1023 = vld [vmem:[#allocation10 + $0x1410] sm:$0xff]
    %v1024 = vld [vmem:[#allocation10 + $0x1418] sm:$0xff]
    %v1025 = vld [vmem:[#allocation10 + $0x1420] sm:$0xff]
    %v1026 = vld [vmem:[#allocation10 + $0x1428] sm:$0xff]
    %v1027 = vld [vmem:[#allocation10 + $0x1430] sm:$0xff]
    %v1028 = vld [vmem:[#allocation10 + $0x1438] sm:$0xff]
    %v1029 = vld [vmem:[#allocation10 + $0x1440] sm:$0xff]
    %v1030 = vld [vmem:[#allocation10 + $0x1448] sm:$0xff]
    %v1031 = vld [vmem:[#allocation10 + $0x1450] sm:$0xff]
    %v1032 = vld [vmem:[#allocation10 + $0x1458] sm:$0xff]
    %v1033 = vld [vmem:[#allocation10 + $0x1460] sm:$0xff]
    %v1034 = vld [vmem:[#allocation10 + $0x1468] sm:$0xff]
    %v1035 = vld [vmem:[#allocation10 + $0x1470] sm:$0xff]
    %v1036 = vld [vmem:[#allocation10 + $0x1478] sm:$0xff]
    %v1037 = vld [vmem:[#allocation10 + $0x1480] sm:$0xff]
    %v1038 = vld [vmem:[#allocation10 + $0x1488] sm:$0xff]
    %v1039 = vld [vmem:[#allocation10 + $0x1490] sm:$0xff]
    %v1040 = vld [vmem:[#allocation10 + $0x1498] sm:$0xff]
    %v1041 = vld [vmem:[#allocation10 + $0x14a0] sm:$0xff]
    %v1042 = vld [vmem:[#allocation10 + $0x14a8] sm:$0xff]
    %v1043 = vld [vmem:[#allocation10 + $0x14b0] sm:$0xff]
    %v1044 = vld [vmem:[#allocation10 + $0x14b8] sm:$0xff]
    %v1045 = vld [vmem:[#allocation10 + $0x14c0] sm:$0xff]
    %v1046 = vld [vmem:[#allocation10 + $0x14c8] sm:$0xff]
    %v1047 = vld [vmem:[#allocation10 + $0x14d0] sm:$0xff]
    %v1048 = vld [vmem:[#allocation10 + $0x14d8] sm:$0xff]
    %v1049 = vld [vmem:[#allocation10 + $0x14e0] sm:$0xff]
    %v1050 = vld [vmem:[#allocation10 + $0x14e8] sm:$0xff]
    %v1051 = vld [vmem:[#allocation10 + $0x14f0] sm:$0xff]
    %v1052 = vld [vmem:[#allocation10 + $0x14f8] sm:$0xff]
    %v1053 = vld [vmem:[#allocation10 + $0x1500] sm:$0xff]
    %v1054 = vld [vmem:[#allocation10 + $0x1508] sm:$0xff]
    %v1055 = vld [vmem:[#allocation10 + $0x1510] sm:$0xff]
    %v1056 = vld [vmem:[#allocation10 + $0x1518] sm:$0xff]
    %v1057 = vld [vmem:[#allocation10 + $0x1520] sm:$0xff]
    %v1058 = vld [vmem:[#allocation10 + $0x1528] sm:$0xff]
    %v1059 = vld [vmem:[#allocation10 + $0x1530] sm:$0xff]
    %v1060 = vld [vmem:[#allocation10 + $0x1538] sm:$0xff]
    %v1061 = vld [vmem:[#allocation10 + $0x1540] sm:$0xff]
    %v1062 = vld [vmem:[#allocation10 + $0x1548] sm:$0xff]
    %v1063 = vld [vmem:[#allocation10 + $0x1550] sm:$0xff]
    %v1064 = vld [vmem:[#allocation10 + $0x1558] sm:$0xff]
    %v1065 = vld [vmem:[#allocation10 + $0x1560] sm:$0xff]
    %v1066 = vld [vmem:[#allocation10 + $0x1568] sm:$0xff]
    %v1067 = vld [vmem:[#allocation10 + $0x1570] sm:$0xff]
    %v1068 = vld [vmem:[#allocation10 + $0x1578] sm:$0xff]
    %v1069 = vld [vmem:[#allocation10 + $0x1580] sm:$0xff]
    %v1070 = vld [vmem:[#allocation10 + $0x1588] sm:$0xff]
    %v1071 = vld [vmem:[#allocation10 + $0x1590] sm:$0xff]
    %v1072 = vld [vmem:[#allocation10 + $0x1598] sm:$0xff]
    %v1073 = vld [vmem:[#allocation10 + $0x15a0] sm:$0xff]
    %v1074 = vld [vmem:[#allocation10 + $0x15a8] sm:$0xff]
    %v1075 = vld [vmem:[#allocation10 + $0x15b0] sm:$0xff]
    %v1076 = vld [vmem:[#allocation10 + $0x15b8] sm:$0xff]
    %v1077 = vld [vmem:[#allocation10 + $0x15c0] sm:$0xff]
    %v1078 = vld [vmem:[#allocation10 + $0x15c8] sm:$0xff]
    %v1079 = vld [vmem:[#allocation10 + $0x15d0] sm:$0xff]
    %v1080 = vld [vmem:[#allocation10 + $0x15d8] sm:$0xff]
    %v1081 = vld [vmem:[#allocation10 + $0x15e0] sm:$0xff]
    %v1082 = vld [vmem:[#allocation10 + $0x15e8] sm:$0xff]
    %v1083 = vld [vmem:[#allocation10 + $0x15f0] sm:$0xff]
    %v1084 = vld [vmem:[#allocation10 + $0x15f8] sm:$0xff]
    %v1085 = vld [vmem:[#allocation10 + $0x1600] sm:$0xff]
    %v1086 = vld [vmem:[#allocation10 + $0x1608] sm:$0xff]
    %v1087 = vld [vmem:[#allocation10 + $0x1610] sm:$0xff]
    %v1088 = vld [vmem:[#allocation10 + $0x1618] sm:$0xff]
    %v1089 = vld [vmem:[#allocation10 + $0x1620] sm:$0xff]
    %v1090 = vld [vmem:[#allocation10 + $0x1628] sm:$0xff]
    %v1091 = vld [vmem:[#allocation10 + $0x1630] sm:$0xff]
    %v1092 = vld [vmem:[#allocation10 + $0x1638] sm:$0xff]
    %v1093 = vld [vmem:[#allocation10 + $0x1640] sm:$0xff]
    %v1094 = vld [vmem:[#allocation10 + $0x1648] sm:$0xff]
    %v1095 = vld [vmem:[#allocation10 + $0x1650] sm:$0xff]
    %v1096 = vld [vmem:[#allocation10 + $0x1658] sm:$0xff]
    %v1097 = vld [vmem:[#allocation10 + $0x1660] sm:$0xff]
    %v1098 = vld [vmem:[#allocation10 + $0x1668] sm:$0xff]
    %v1099 = vld [vmem:[#allocation10 + $0x1670] sm:$0xff]
    %v1100 = vld [vmem:[#allocation10 + $0x1678] sm:$0xff]
    %v1101 = vld [vmem:[#allocation10 + $0x1680] sm:$0xff]
    %v1102 = vld [vmem:[#allocation10 + $0x1688] sm:$0xff]
    %v1103 = vld [vmem:[#allocation10 + $0x1690] sm:$0xff]
    %v1104 = vld [vmem:[#allocation10 + $0x1698] sm:$0xff]
    %v1105 = vld [vmem:[#allocation10 + $0x16a0] sm:$0xff]
    %v1106 = vld [vmem:[#allocation10 + $0x16a8] sm:$0xff]
    %v1107 = vld [vmem:[#allocation10 + $0x16b0] sm:$0xff]
    %v1108 = vld [vmem:[#allocation10 + $0x16b8] sm:$0xff]
    %v1109 = vld [vmem:[#allocation10 + $0x16c0] sm:$0xff]
    %v1110 = vld [vmem:[#allocation10 + $0x16c8] sm:$0xff]
    %v1111 = vld [vmem:[#allocation10 + $0x16d0] sm:$0xff]
    %v1112 = vld [vmem:[#allocation10 + $0x16d8] sm:$0xff]
    %v1113 = vld [vmem:[#allocation10 + $0x16e0] sm:$0xff]
    %v1114 = vld [vmem:[#allocation10 + $0x16e8] sm:$0xff]
    %v1115 = vld [vmem:[#allocation10 + $0x16f0] sm:$0xff]
    %v1116 = vld [vmem:[#allocation10 + $0x16f8] sm:$0xff]
    %v1117 = vld [vmem:[#allocation10 + $0x1700] sm:$0xff]
    %v1118 = vld [vmem:[#allocation10 + $0x1708] sm:$0xff]
    %v1119 = vld [vmem:[#allocation10 + $0x1710] sm:$0xff]
    %v1120 = vld [vmem:[#allocation10 + $0x1718] sm:$0xff]
    %v1121 = vld [vmem:[#allocation10 + $0x1720] sm:$0xff]
    %v1122 = vld [vmem:[#allocation10 + $0x1728] sm:$0xff]
    %v1123 = vld [vmem:[#allocation10 + $0x1730] sm:$0xff]
    %v1124 = vld [vmem:[#allocation10 + $0x1738] sm:$0xff]
    %v1125 = vld [vmem:[#allocation10 + $0x1740] sm:$0xff]
    %v1126 = vld [vmem:[#allocation10 + $0x1748] sm:$0xff]
    %v1127 = vld [vmem:[#allocation10 + $0x1750] sm:$0xff]
    %v1128 = vld [vmem:[#allocation10 + $0x1758] sm:$0xff]
    %v1129 = vld [vmem:[#allocation10 + $0x1760] sm:$0xff]
    %v1130 = vld [vmem:[#allocation10 + $0x1768] sm:$0xff]
    %v1131 = vld [vmem:[#allocation10 + $0x1770] sm:$0xff]
    %v1132 = vld [vmem:[#allocation10 + $0x1778] sm:$0xff]
    %v1133 = vld [vmem:[#allocation10 + $0x1780] sm:$0xff]
    %v1134 = vld [vmem:[#allocation10 + $0x1788] sm:$0xff]
    %v1135 = vld [vmem:[#allocation10 + $0x1790] sm:$0xff]
    %v1136 = vld [vmem:[#allocation10 + $0x1798] sm:$0xff]
    %v1137 = vld [vmem:[#allocation10 + $0x17a0] sm:$0xff]
    %v1138 = vld [vmem:[#allocation10 + $0x17a8] sm:$0xff]
    %v1139 = vld [vmem:[#allocation10 + $0x17b0] sm:$0xff]
    %v1140 = vld [vmem:[#allocation10 + $0x17b8] sm:$0xff]
    %v1141 = vld [vmem:[#allocation10 + $0x17c0] sm:$0xff]
    %v1142 = vld [vmem:[#allocation10 + $0x17c8] sm:$0xff]
    %v1143 = vld [vmem:[#allocation10 + $0x17d0] sm:$0xff]
    %v1144 = vld [vmem:[#allocation10 + $0x17d8] sm:$0xff]
    %v1145 = vld [vmem:[#allocation10 + $0x17e0] sm:$0xff]
    %v1146 = vld [vmem:[#allocation10 + $0x17e8] sm:$0xff]
    %v1147 = vld [vmem:[#allocation10 + $0x17f0] sm:$0xff]
    %v1148 = vld [vmem:[#allocation10 + $0x17f8] sm:$0xff]
    %v1149 = vld [vmem:[#allocation10 + $0x1800] sm:$0xff]
    %v1150 = vld [vmem:[#allocation10 + $0x1808] sm:$0xff]
    %v1151 = vld [vmem:[#allocation10 + $0x1810] sm:$0xff]
    %v1152 = vld [vmem:[#allocation10 + $0x1818] sm:$0xff]
    %v1153 = vld [vmem:[#allocation10 + $0x1820] sm:$0xff]
    %v1154 = vld [vmem:[#allocation10 + $0x1828] sm:$0xff]
    %v1155 = vld [vmem:[#allocation10 + $0x1830] sm:$0xff]
    %v1156 = vld [vmem:[#allocation10 + $0x1838] sm:$0xff]
    %v1157 = vld [vmem:[#allocation10 + $0x1840] sm:$0xff]
    %v1158 = vld [vmem:[#allocation10 + $0x1848] sm:$0xff]
    %v1159 = vld [vmem:[#allocation10 + $0x1850] sm:$0xff]
    %v1160 = vld [vmem:[#allocation10 + $0x1858] sm:$0xff]
    %v1161 = vld [vmem:[#allocation10 + $0x1860] sm:$0xff]
    %v1162 = vld [vmem:[#allocation10 + $0x1868] sm:$0xff]
    %v1163 = vld [vmem:[#allocation10 + $0x1870] sm:$0xff]
    %v1164 = vld [vmem:[#allocation10 + $0x1878] sm:$0xff]
    %v1165 = vld [vmem:[#allocation10 + $0x1880] sm:$0xff]
    %v1166 = vld [vmem:[#allocation10 + $0x1888] sm:$0xff]
    %v1167 = vld [vmem:[#allocation10 + $0x1890] sm:$0xff]
    %v1168 = vld [vmem:[#allocation10 + $0x1898] sm:$0xff]
    %v1169 = vld [vmem:[#allocation10 + $0x18a0] sm:$0xff]
    %v1170 = vld [vmem:[#allocation10 + $0x18a8] sm:$0xff]
    %v1171 = vld [vmem:[#allocation10 + $0x18b0] sm:$0xff]
    %v1172 = vld [vmem:[#allocation10 + $0x18b8] sm:$0xff]
    %v1173 = vld [vmem:[#allocation10 + $0x18c0] sm:$0xff]
    %v1174 = vld [vmem:[#allocation10 + $0x18c8] sm:$0xff]
    %v1175 = vld [vmem:[#allocation10 + $0x18d0] sm:$0xff]
    %v1176 = vld [vmem:[#allocation10 + $0x18d8] sm:$0xff]
    %v1177 = vld [vmem:[#allocation10 + $0x18e0] sm:$0xff]
    %v1178 = vld [vmem:[#allocation10 + $0x18e8] sm:$0xff]
    %v1179 = vld [vmem:[#allocation10 + $0x18f0] sm:$0xff]
    %v1180 = vld [vmem:[#allocation10 + $0x18f8] sm:$0xff]
    %v1181 = vld [vmem:[#allocation10 + $0x1900] sm:$0xff]
    %v1182 = vld [vmem:[#allocation10 + $0x1908] sm:$0xff]
    %v1183 = vld [vmem:[#allocation10 + $0x1910] sm:$0xff]
    %v1184 = vld [vmem:[#allocation10 + $0x1918] sm:$0xff]
    %v1185 = vld [vmem:[#allocation10 + $0x1920] sm:$0xff]
    %v1186 = vld [vmem:[#allocation10 + $0x1928] sm:$0xff]
    %v1187 = vld [vmem:[#allocation10 + $0x1930] sm:$0xff]
    %v1188 = vld [vmem:[#allocation10 + $0x1938] sm:$0xff]
    %v1189 = vld [vmem:[#allocation10 + $0x1940] sm:$0xff]
    %v1190 = vld [vmem:[#allocation10 + $0x1948] sm:$0xff]
    %v1191 = vld [vmem:[#allocation10 + $0x1950] sm:$0xff]
    %v1192 = vld [vmem:[#allocation10 + $0x1958] sm:$0xff]
    %v1193 = vld [vmem:[#allocation10 + $0x1960] sm:$0xff]
    %v1194 = vld [vmem:[#allocation10 + $0x1968] sm:$0xff]
    %v1195 = vld [vmem:[#allocation10 + $0x1970] sm:$0xff]
    %v1196 = vld [vmem:[#allocation10 + $0x1978] sm:$0xff]
    %v1197 = vld [vmem:[#allocation10 + $0x1980] sm:$0xff]
    %v1198 = vld [vmem:[#allocation10 + $0x1988] sm:$0xff]
    %v1199 = vld [vmem:[#allocation10 + $0x1990] sm:$0xff]
    %v1200 = vld [vmem:[#allocation10 + $0x1998] sm:$0xff]
    %v1201 = vld [vmem:[#allocation10 + $0x19a0] sm:$0xff]
    %v1202 = vld [vmem:[#allocation10 + $0x19a8] sm:$0xff]
    %v1203 = vld [vmem:[#allocation10 + $0x19b0] sm:$0xff]
    %v1204 = vld [vmem:[#allocation10 + $0x19b8] sm:$0xff]
    %v1205 = vld [vmem:[#allocation10 + $0x19c0] sm:$0xff]
    %v1206 = vld [vmem:[#allocation10 + $0x19c8] sm:$0xff]
    %v1207 = vld [vmem:[#allocation10 + $0x19d0] sm:$0xff]
    %v1208 = vld [vmem:[#allocation10 + $0x19d8] sm:$0xff]
    %v1209 = vld [vmem:[#allocation10 + $0x19e0] sm:$0xff]
    %v1210 = vld [vmem:[#allocation10 + $0x19e8] sm:$0xff]
    %v1211 = vld [vmem:[#allocation10 + $0x19f0] sm:$0xff]
    %v1212 = vld [vmem:[#allocation10 + $0x19f8] sm:$0xff]
    %v1213 = vld [vmem:[#allocation10 + $0x1a00] sm:$0xff]
    %v1214 = vld [vmem:[#allocation10 + $0x1a08] sm:$0xff]
    %v1215 = vld [vmem:[#allocation10 + $0x1a10] sm:$0xff]
    %v1216 = vld [vmem:[#allocation10 + $0x1a18] sm:$0xff]
    %v1217 = vld [vmem:[#allocation10 + $0x1a20] sm:$0xff]
    %v1218 = vld [vmem:[#allocation10 + $0x1a28] sm:$0xff]
    %v1219 = vld [vmem:[#allocation10 + $0x1a30] sm:$0xff]
    %v1220 = vld [vmem:[#allocation10 + $0x1a38] sm:$0xff]
    %v1221 = vld [vmem:[#allocation10 + $0x1a40] sm:$0xff]
    %v1222 = vld [vmem:[#allocation10 + $0x1a48] sm:$0xff]
    %v1223 = vld [vmem:[#allocation10 + $0x1a50] sm:$0xff]
    %v1224 = vld [vmem:[#allocation10 + $0x1a58] sm:$0xff]
    %v1225 = vld [vmem:[#allocation10 + $0x1a60] sm:$0xff]
    %v1226 = vld [vmem:[#allocation10 + $0x1a68] sm:$0xff]
    %v1227 = vld [vmem:[#allocation10 + $0x1a70] sm:$0xff]
    %v1228 = vld [vmem:[#allocation10 + $0x1a78] sm:$0xff]
    %v1229 = vld [vmem:[#allocation10 + $0x1a80] sm:$0xff]
    %v1230 = vld [vmem:[#allocation10 + $0x1a88] sm:$0xff]
    %v1231 = vld [vmem:[#allocation10 + $0x1a90] sm:$0xff]
    %v1232 = vld [vmem:[#allocation10 + $0x1a98] sm:$0xff]
    %v1233 = vld [vmem:[#allocation10 + $0x1aa0] sm:$0xff]
    %v1234 = vld [vmem:[#allocation10 + $0x1aa8] sm:$0xff]
    %v1235 = vld [vmem:[#allocation10 + $0x1ab0] sm:$0xff]
    %v1236 = vld [vmem:[#allocation10 + $0x1ab8] sm:$0xff]
    %v1237 = vld [vmem:[#allocation10 + $0x1ac0] sm:$0xff]
    %v1238 = vld [vmem:[#allocation10 + $0x1ac8] sm:$0xff]
    %v1239 = vld [vmem:[#allocation10 + $0x1ad0] sm:$0xff]
    %v1240 = vld [vmem:[#allocation10 + $0x1ad8] sm:$0xff]
    %v1241 = vld [vmem:[#allocation10 + $0x1ae0] sm:$0xff]
    %v1242 = vld [vmem:[#allocation10 + $0x1ae8] sm:$0xff]
    %v1243 = vld [vmem:[#allocation10 + $0x1af0] sm:$0xff]
    %v1244 = vld [vmem:[#allocation10 + $0x1af8] sm:$0xff]
    %v1245 = vld [vmem:[#allocation10 + $0x1b00] sm:$0xff]
    %v1246 = vld [vmem:[#allocation10 + $0x1b08] sm:$0xff]
    %v1247 = vld [vmem:[#allocation10 + $0x1b10] sm:$0xff]
    %v1248 = vld [vmem:[#allocation10 + $0x1b18] sm:$0xff]
    %v1249 = vld [vmem:[#allocation10 + $0x1b20] sm:$0xff]
    %v1250 = vld [vmem:[#allocation10 + $0x1b28] sm:$0xff]
    %v1251 = vld [vmem:[#allocation10 + $0x1b30] sm:$0xff]
    %v1252 = vld [vmem:[#allocation10 + $0x1b38] sm:$0xff]
    %v1253 = vld [vmem:[#allocation10 + $0x1b40] sm:$0xff]
    %v1254 = vld [vmem:[#allocation10 + $0x1b48] sm:$0xff]
    %v1255 = vld [vmem:[#allocation10 + $0x1b50] sm:$0xff]
    %v1256 = vld [vmem:[#allocation10 + $0x1b58] sm:$0xff]
    %v1257 = vld [vmem:[#allocation10 + $0x1b60] sm:$0xff]
    %v1258 = vld [vmem:[#allocation10 + $0x1b68] sm:$0xff]
    %v1259 = vld [vmem:[#allocation10 + $0x1b70] sm:$0xff]
    %v1260 = vld [vmem:[#allocation10 + $0x1b78] sm:$0xff]
    %v1261 = vld [vmem:[#allocation10 + $0x1b80] sm:$0xff]
    %v1262 = vld [vmem:[#allocation10 + $0x1b88] sm:$0xff]
    %v1263 = vld [vmem:[#allocation10 + $0x1b90] sm:$0xff]
    %v1264 = vld [vmem:[#allocation10 + $0x1b98] sm:$0xff]
    %v1265 = vld [vmem:[#allocation10 + $0x1ba0] sm:$0xff]
    %v1266 = vld [vmem:[#allocation10 + $0x1ba8] sm:$0xff]
    %v1267 = vld [vmem:[#allocation10 + $0x1bb0] sm:$0xff]
    %v1268 = vld [vmem:[#allocation10 + $0x1bb8] sm:$0xff]
    %v1269 = vld [vmem:[#allocation10 + $0x1bc0] sm:$0xff]
    %v1270 = vld [vmem:[#allocation10 + $0x1bc8] sm:$0xff]
    %v1271 = vld [vmem:[#allocation10 + $0x1bd0] sm:$0xff]
    %v1272 = vld [vmem:[#allocation10 + $0x1bd8] sm:$0xff]
    %v1273 = vld [vmem:[#allocation10 + $0x1be0] sm:$0xff]
    %v1274 = vld [vmem:[#allocation10 + $0x1be8] sm:$0xff]
    %v1275 = vld [vmem:[#allocation10 + $0x1bf0] sm:$0xff]
    %v1276 = vld [vmem:[#allocation10 + $0x1bf8] sm:$0xff]
    %v1277 = vld [vmem:[#allocation10 + $0x1c00] sm:$0xff]
    %v1278 = vld [vmem:[#allocation10 + $0x1c08] sm:$0xff]
    %v1279 = vld [vmem:[#allocation10 + $0x1c10] sm:$0xff]
    %v1280 = vld [vmem:[#allocation10 + $0x1c18] sm:$0xff]
    %v1281 = vld [vmem:[#allocation10 + $0x1c20] sm:$0xff]
    %v1282 = vld [vmem:[#allocation10 + $0x1c28] sm:$0xff]
    %v1283 = vld [vmem:[#allocation10 + $0x1c30] sm:$0xff]
    %v1284 = vld [vmem:[#allocation10 + $0x1c38] sm:$0xff]
    %v1285 = vld [vmem:[#allocation10 + $0x1c40] sm:$0xff]
    %v1286 = vld [vmem:[#allocation10 + $0x1c48] sm:$0xff]
    %v1287 = vld [vmem:[#allocation10 + $0x1c50] sm:$0xff]
    %v1288 = vld [vmem:[#allocation10 + $0x1c58] sm:$0xff]
    %v1289 = vld [vmem:[#allocation10 + $0x1c60] sm:$0xff]
    %v1290 = vld [vmem:[#allocation10 + $0x1c68] sm:$0xff]
    %v1291 = vld [vmem:[#allocation10 + $0x1c70] sm:$0xff]
    %v1292 = vld [vmem:[#allocation10 + $0x1c78] sm:$0xff]
    %v1293 = vld [vmem:[#allocation10 + $0x1c80] sm:$0xff]
    %v1294 = vld [vmem:[#allocation10 + $0x1c88] sm:$0xff]
    %v1295 = vld [vmem:[#allocation10 + $0x1c90] sm:$0xff]
    %v1296 = vld [vmem:[#allocation10 + $0x1c98] sm:$0xff]
    %v1297 = vld [vmem:[#allocation10 + $0x1ca0] sm:$0xff]
    %v1298 = vld [vmem:[#allocation10 + $0x1ca8] sm:$0xff]
    %v1299 = vld [vmem:[#allocation10 + $0x1cb0] sm:$0xff]
    %v1300 = vld [vmem:[#allocation10 + $0x1cb8] sm:$0xff]
    %v1301 = vld [vmem:[#allocation10 + $0x1cc0] sm:$0xff]
    %v1302 = vld [vmem:[#allocation10 + $0x1cc8] sm:$0xff]
    %v1303 = vld [vmem:[#allocation10 + $0x1cd0] sm:$0xff]
    %v1304 = vld [vmem:[#allocation10 + $0x1cd8] sm:$0xff]
    %v1305 = vld [vmem:[#allocation10 + $0x1ce0] sm:$0xff]
    %v1306 = vld [vmem:[#allocation10 + $0x1ce8] sm:$0xff]
    %v1307 = vld [vmem:[#allocation10 + $0x1cf0] sm:$0xff]
    %v1308 = vld [vmem:[#allocation10 + $0x1cf8] sm:$0xff]
    %v1309 = vld [vmem:[#allocation10 + $0x1d00] sm:$0xff]
    %v1310 = vld [vmem:[#allocation10 + $0x1d08] sm:$0xff]
    %v1311 = vld [vmem:[#allocation10 + $0x1d10] sm:$0xff]
    %v1312 = vld [vmem:[#allocation10 + $0x1d18] sm:$0xff]
    %v1313 = vld [vmem:[#allocation10 + $0x1d20] sm:$0xff]
    %v1314 = vld [vmem:[#allocation10 + $0x1d28] sm:$0xff]
    %v1315 = vld [vmem:[#allocation10 + $0x1d30] sm:$0xff]
    %v1316 = vld [vmem:[#allocation10 + $0x1d38] sm:$0xff]
    %v1317 = vld [vmem:[#allocation10 + $0x1d40] sm:$0xff]
    %v1318 = vld [vmem:[#allocation10 + $0x1d48] sm:$0xff]
    %v1319 = vld [vmem:[#allocation10 + $0x1d50] sm:$0xff]
    %v1320 = vld [vmem:[#allocation10 + $0x1d58] sm:$0xff]
    %v1321 = vld [vmem:[#allocation10 + $0x1d60] sm:$0xff]
    %v1322 = vld [vmem:[#allocation10 + $0x1d68] sm:$0xff]
    %v1323 = vld [vmem:[#allocation10 + $0x1d70] sm:$0xff]
    %v1324 = vld [vmem:[#allocation10 + $0x1d78] sm:$0xff]
    %v1325 = vld [vmem:[#allocation10 + $0x1d80] sm:$0xff]
    %v1326 = vld [vmem:[#allocation10 + $0x1d88] sm:$0xff]
    %v1327 = vld [vmem:[#allocation10 + $0x1d90] sm:$0xff]
    %v1328 = vld [vmem:[#allocation10 + $0x1d98] sm:$0xff]
    %v1329 = vld [vmem:[#allocation10 + $0x1da0] sm:$0xff]
    %v1330 = vld [vmem:[#allocation10 + $0x1da8] sm:$0xff]
    %v1331 = vld [vmem:[#allocation10 + $0x1db0] sm:$0xff]
    %v1332 = vld [vmem:[#allocation10 + $0x1db8] sm:$0xff]
    %v1333 = vld [vmem:[#allocation10 + $0x1dc0] sm:$0xff]
    %v1334 = vld [vmem:[#allocation10 + $0x1dc8] sm:$0xff]
    %v1335 = vld [vmem:[#allocation10 + $0x1dd0] sm:$0xff]
    %v1336 = vld [vmem:[#allocation10 + $0x1dd8] sm:$0xff]
    %v1337 = vld [vmem:[#allocation10 + $0x1de0] sm:$0xff]
    %v1338 = vld [vmem:[#allocation10 + $0x1de8] sm:$0xff]
    %v1339 = vld [vmem:[#allocation10 + $0x1df0] sm:$0xff]
    %v1340 = vld [vmem:[#allocation10 + $0x1df8] sm:$0xff]
    %v1341 = vld [vmem:[#allocation10 + $0x1e00] sm:$0xff]
    %v1342 = vld [vmem:[#allocation10 + $0x1e08] sm:$0xff]
    %v1343 = vld [vmem:[#allocation10 + $0x1e10] sm:$0xff]
    %v1344 = vld [vmem:[#allocation10 + $0x1e18] sm:$0xff]
    %v1345 = vld [vmem:[#allocation10 + $0x1e20] sm:$0xff]
    %v1346 = vld [vmem:[#allocation10 + $0x1e28] sm:$0xff]
    %v1347 = vld [vmem:[#allocation10 + $0x1e30] sm:$0xff]
    %v1348 = vld [vmem:[#allocation10 + $0x1e38] sm:$0xff]
    %v1349 = vld [vmem:[#allocation10 + $0x1e40] sm:$0xff]
    %v1350 = vld [vmem:[#allocation10 + $0x1e48] sm:$0xff]
    %v1351 = vld [vmem:[#allocation10 + $0x1e50] sm:$0xff]
    %v1352 = vld [vmem:[#allocation10 + $0x1e58] sm:$0xff]
    %v1353 = vld [vmem:[#allocation10 + $0x1e60] sm:$0xff]
    %v1354 = vld [vmem:[#allocation10 + $0x1e68] sm:$0xff]
    %v1355 = vld [vmem:[#allocation10 + $0x1e70] sm:$0xff]
    %v1356 = vld [vmem:[#allocation10 + $0x1e78] sm:$0xff]
    %v1357 = vld [vmem:[#allocation10 + $0x1e80] sm:$0xff]
    %v1358 = vld [vmem:[#allocation10 + $0x1e88] sm:$0xff]
    %v1359 = vld [vmem:[#allocation10 + $0x1e90] sm:$0xff]
    %v1360 = vld [vmem:[#allocation10 + $0x1e98] sm:$0xff]
    %v1361 = vld [vmem:[#allocation10 + $0x1ea0] sm:$0xff]
    %v1362 = vld [vmem:[#allocation10 + $0x1ea8] sm:$0xff]
    %v1363 = vld [vmem:[#allocation10 + $0x1eb0] sm:$0xff]
    %v1364 = vld [vmem:[#allocation10 + $0x1eb8] sm:$0xff]
    %v1365 = vld [vmem:[#allocation10 + $0x1ec0] sm:$0xff]
    %v1366 = vld [vmem:[#allocation10 + $0x1ec8] sm:$0xff]
    %v1367 = vld [vmem:[#allocation10 + $0x1ed0] sm:$0xff]
    %v1368 = vld [vmem:[#allocation10 + $0x1ed8] sm:$0xff]
    %v1369 = vld [vmem:[#allocation10 + $0x1ee0] sm:$0xff]
    %v1370 = vld [vmem:[#allocation10 + $0x1ee8] sm:$0xff]
    %v1371 = vld [vmem:[#allocation10 + $0x1ef0] sm:$0xff]
    %v1372 = vld [vmem:[#allocation10 + $0x1ef8] sm:$0xff]
    %v1373 = vld [vmem:[#allocation10 + $0x1f00] sm:$0xff]
    %v1374 = vld [vmem:[#allocation10 + $0x1f08] sm:$0xff]
    %v1375 = vld [vmem:[#allocation10 + $0x1f10] sm:$0xff]
    %v1376 = vld [vmem:[#allocation10 + $0x1f18] sm:$0xff]
    %v1377 = vld [vmem:[#allocation10 + $0x1f20] sm:$0xff]
    %v1378 = vld [vmem:[#allocation10 + $0x1f28] sm:$0xff]
    %v1379 = vld [vmem:[#allocation10 + $0x1f30] sm:$0xff]
    %v1380 = vld [vmem:[#allocation10 + $0x1f38] sm:$0xff]
    %v1381 = vld [vmem:[#allocation10 + $0x1f40] sm:$0xff]
    %v1382 = vld [vmem:[#allocation10 + $0x1f48] sm:$0xff]
    %v1383 = vld [vmem:[#allocation10 + $0x1f50] sm:$0xff]
    %v1384 = vld [vmem:[#allocation10 + $0x1f58] sm:$0xff]
    %v1385 = vld [vmem:[#allocation10 + $0x1f60] sm:$0xff]
    %v1386 = vld [vmem:[#allocation10 + $0x1f68] sm:$0xff]
    %v1387 = vld [vmem:[#allocation10 + $0x1f70] sm:$0xff]
    %v1388 = vld [vmem:[#allocation10 + $0x1f78] sm:$0xff]
    %v1389 = vld [vmem:[#allocation10 + $0x1f80] sm:$0xff]
    %v1390 = vld [vmem:[#allocation10 + $0x1f88] sm:$0xff]
    %v1391 = vld [vmem:[#allocation10 + $0x1f90] sm:$0xff]
    %v1392 = vld [vmem:[#allocation10 + $0x1f98] sm:$0xff]
    %v1393 = vld [vmem:[#allocation10 + $0x1fa0] sm:$0xff]
    %v1394 = vld [vmem:[#allocation10 + $0x1fa8] sm:$0xff]
    %v1395 = vld [vmem:[#allocation10 + $0x1fb0] sm:$0xff]
    %v1396 = vld [vmem:[#allocation10 + $0x1fb8] sm:$0xff]
    %v1397 = vld [vmem:[#allocation10 + $0x1fc0] sm:$0xff]
    %v1398 = vld [vmem:[#allocation10 + $0x1fc8] sm:$0xff]
    %v1399 = vld [vmem:[#allocation10 + $0x1fd0] sm:$0xff]
    %v1400 = vld [vmem:[#allocation10 + $0x1fd8] sm:$0xff]
    %v1401 = vld [vmem:[#allocation10 + $0x1fe0] sm:$0xff]
    %v1402 = vld [vmem:[#allocation10 + $0x1fe8] sm:$0xff]
    %v1403 = vld [vmem:[#allocation10 + $0x1ff0] sm:$0xff]
    %v1404 = vld [vmem:[#allocation10 + $0x1ff8] sm:$0xff]
    %v1405 = vld [vmem:[#allocation12] sm:$0xff]
    %v1406 = vld [vmem:[#allocation12 + $0x8] sm:$0xff]
    %v1409 = vlaneseq
    %v1410 = vshrl.u32 %v1409, 7
    %v1411 = vsub.s32 0, %v1410
    %v1412 = vrot.slane %v1405, %v1411
    %v1413 = vlaneseq
    %v1414 = vshrl.u32 %v1413, 7
    %v1415 = vsub.s32 1, %v1414
    %v1416 = vrot.slane %v1405, %v1415
    %v1417 = vlaneseq
    %v1418 = vshrl.u32 %v1417, 7
    %v1419 = vsub.s32 2, %v1418
    %v1420 = vrot.slane %v1405, %v1419
    %v1421 = vlaneseq
    %v1422 = vshrl.u32 %v1421, 7
    %v1423 = vsub.s32 3, %v1422
    %v1424 = vrot.slane %v1405, %v1423
    %v1425 = vlaneseq
    %v1426 = vshrl.u32 %v1425, 7
    %v1427 = vsub.s32 4, %v1426
    %v1428 = vrot.slane %v1405, %v1427
    %v1429 = vlaneseq
    %v1430 = vshrl.u32 %v1429, 7
    %v1431 = vsub.s32 5, %v1430
    %v1432 = vrot.slane %v1405, %v1431
    %v1433 = vlaneseq
    %v1434 = vshrl.u32 %v1433, 7
    %v1435 = vsub.s32 6, %v1434
    %v1436 = vrot.slane %v1405, %v1435
    %v1437 = vlaneseq
    %v1438 = vshrl.u32 %v1437, 7
    %v1439 = vsub.s32 7, %v1438
    %v1440 = vrot.slane %v1405, %v1439
    %v1441 = vlaneseq
    %v1442 = vshrl.u32 %v1441, 7
    %v1443 = vsub.s32 0, %v1442
    %v1444 = vrot.slane %v1406, %v1443
    %v1445 = vlaneseq
    %v1446 = vshrl.u32 %v1445, 7
    %v1447 = vsub.s32 1, %v1446
    %v1448 = vrot.slane %v1406, %v1447
    %v1449 = vlaneseq
    %v1450 = vshrl.u32 %v1449, 7
    %v1451 = vsub.s32 2, %v1450
    %v1452 = vrot.slane %v1406, %v1451
    %v1453 = vlaneseq
    %v1454 = vshrl.u32 %v1453, 7
    %v1455 = vsub.s32 3, %v1454
    %v1456 = vrot.slane %v1406, %v1455
    %v1457 = vlaneseq
    %v1458 = vshrl.u32 %v1457, 7
    %v1459 = vsub.s32 4, %v1458
    %v1460 = vrot.slane %v1406, %v1459
    %v1461 = vlaneseq
    %v1462 = vshrl.u32 %v1461, 7
    %v1463 = vsub.s32 5, %v1462
    %v1464 = vrot.slane %v1406, %v1463
    %v1465 = vlaneseq
    %v1466 = vshrl.u32 %v1465, 7
    %v1467 = vsub.s32 6, %v1466
    %v1468 = vrot.slane %v1406, %v1467
    %v1469 = vlaneseq
    %v1470 = vshrl.u32 %v1469, 7
    %v1471 = vsub.s32 7, %v1470
    %v1472 = vrot.slane %v1406, %v1471
    %1489 = vmatprep.subr.mxu0 %v382
    %1490 = vmatpush1.msra.mxu0 %v381
    %1491 = vmatprep.subr.mxu0 %v398
    %1492 = vmatpush1.msra.mxu0 %v397
    %1493 = vmatprep.subr.mxu0 %v414
    %1494 = vmatpush1.msra.mxu0 %v413
    %1495 = vmatprep.subr.mxu0 %v430
    %1496 = vmatpush1.msra.mxu0 %v429
    %1497 = vmatprep.subr.mxu0 %v446
    %1498 = vmatpush1.msra.mxu0 %v445
    %1499 = vmatprep.subr.mxu0 %v462
    %1500 = vmatpush1.msra.mxu0 %v461
    %1501 = vmatprep.subr.mxu0 %v478
    %1502 = vmatpush1.msra.mxu0 %v477
    %1503 = vmatprep.subr.mxu0 %v494
    %1504 = vmatpush1.msra.mxu0 %v493
    %1505 = vmatprep.subr.mxu0 %v510
    %1506 = vmatpush1.msra.mxu0 %v509
    %1507 = vmatprep.subr.mxu0 %v526
    %1508 = vmatpush1.msra.mxu0 %v525
    %1509 = vmatprep.subr.mxu0 %v542
    %1510 = vmatpush1.msra.mxu0 %v541
    %1511 = vmatprep.subr.mxu0 %v558
    %1512 = vmatpush1.msra.mxu0 %v557
    %1513 = vmatprep.subr.mxu0 %v574
    %1514 = vmatpush1.msra.mxu0 %v573
    %1515 = vmatprep.subr.mxu0 %v590
    %1516 = vmatpush1.msra.mxu0 %v589
    %1517 = vmatprep.subr.mxu0 %v606
    %1518 = vmatpush1.msra.mxu0 %v605
    %1519 = vmatprep.subr.mxu0 %v622
    %1520 = vmatpush1.msra.mxu0 %v621
    %1521 = vmatprep.subr.mxu0 %v638
    %1522 = vmatpush1.msra.mxu0 %v637
    %1523 = vmatprep.subr.mxu0 %v654
    %1524 = vmatpush1.msra.mxu0 %v653
    %1525 = vmatprep.subr.mxu0 %v670
    %1526 = vmatpush1.msra.mxu0 %v669
    %1527 = vmatprep.subr.mxu0 %v686
    %1528 = vmatpush1.msra.mxu0 %v685
    %1529 = vmatprep.subr.mxu0 %v702
    %1530 = vmatpush1.msra.mxu0 %v701
    %1531 = vmatprep.subr.mxu0 %v718
    %1532 = vmatpush1.msra.mxu0 %v717
    %1533 = vmatprep.subr.mxu0 %v734
    %1534 = vmatpush1.msra.mxu0 %v733
    %1535 = vmatprep.subr.mxu0 %v750
    %1536 = vmatpush1.msra.mxu0 %v749
    %1537 = vmatprep.subr.mxu0 %v766
    %1538 = vmatpush1.msra.mxu0 %v765
    %1539 = vmatprep.subr.mxu0 %v782
    %1540 = vmatpush1.msra.mxu0 %v781
    %1541 = vmatprep.subr.mxu0 %v798
    %1542 = vmatpush1.msra.mxu0 %v797
    %1543 = vmatprep.subr.mxu0 %v814
    %1544 = vmatpush1.msra.mxu0 %v813
    %1545 = vmatprep.subr.mxu0 %v830
    %1546 = vmatpush1.msra.mxu0 %v829
    %1547 = vmatprep.subr.mxu0 %v846
    %1548 = vmatpush1.msra.mxu0 %v845
    %1549 = vmatprep.subr.mxu0 %v862
    %1550 = vmatpush1.msra.mxu0 %v861
    %1551 = vmatprep.subr.mxu0 %v878
    %1552 = vmatpush1.msra.mxu0 %v877
    %1553 = vmatprep.mubr.f32.mxu0 %v378
    %1554 = vmatmul.mubr.f32.gmra.mrb[0].mxu0 %v377
    %v1555 = vpop.f32.mrb[0].mxu0
    %v1556 = vadd.f32 %v1412, %v1555
    %v1557 = vpop.f32.mrb[0].mxu0
    %v1558 = vadd.f32 %v1416, %v1557
    %1559 = vdwg.mxu0
    %1560 = vmatprep.subr.mxu0 %v894
    %1561 = vmatpush1.msra.mxu0 %v893
    %1562 = vmatprep.subr.mxu0 %v910
    %1563 = vmatpush1.msra.mxu0 %v909
    %1564 = vmatprep.subr.mxu0 %v926
    %1565 = vmatpush1.msra.mxu0 %v925
    %1566 = vmatprep.subr.mxu0 %v942
    %1567 = vmatpush1.msra.mxu0 %v941
    %1568 = vmatprep.subr.mxu0 %v958
    %1569 = vmatpush1.msra.mxu0 %v957
    %1570 = vmatprep.subr.mxu0 %v974
    %1571 = vmatpush1.msra.mxu0 %v973
    %1572 = vmatprep.subr.mxu0 %v990
    %1573 = vmatpush1.msra.mxu0 %v989
    %1574 = vmatprep.subr.mxu0 %v1006
    %1575 = vmatpush1.msra.mxu0 %v1005
    %1576 = vmatprep.subr.mxu0 %v1022
    %1577 = vmatpush1.msra.mxu0 %v1021
    %1578 = vmatprep.subr.mxu0 %v1038
    %1579 = vmatpush1.msra.mxu0 %v1037
    %1580 = vmatprep.subr.mxu0 %v1054
    %1581 = vmatpush1.msra.mxu0 %v1053
    %1582 = vmatprep.subr.mxu0 %v1070
    %1583 = vmatpush1.msra.mxu0 %v1069
    %1584 = vmatprep.subr.mxu0 %v1086
    %1585 = vmatpush1.msra.mxu0 %v1085
    %1586 = vmatprep.subr.mxu0 %v1102
    %1587 = vmatpush1.msra.mxu0 %v1101
    %1588 = vmatprep.subr.mxu0 %v1118
    %1589 = vmatpush1.msra.mxu0 %v1117
    %1590 = vmatprep.subr.mxu0 %v1134
    %1591 = vmatpush1.msra.mxu0 %v1133
    %1592 = vmatprep.subr.mxu0 %v1150
    %1593 = vmatpush1.msra.mxu0 %v1149
    %1594 = vmatprep.subr.mxu0 %v1166
    %1595 = vmatpush1.msra.mxu0 %v1165
    %1596 = vmatprep.subr.mxu0 %v1182
    %1597 = vmatpush1.msra.mxu0 %v1181
    %1598 = vmatprep.subr.mxu0 %v1198
    %1599 = vmatpush1.msra.mxu0 %v1197
    %1600 = vmatprep.subr.mxu0 %v1214
    %1601 = vmatpush1.msra.mxu0 %v1213
    %1602 = vmatprep.subr.mxu0 %v1230
    %1603 = vmatpush1.msra.mxu0 %v1229
    %1604 = vmatprep.subr.mxu0 %v1246
    %1605 = vmatpush1.msra.mxu0 %v1245
    %1606 = vmatprep.subr.mxu0 %v1262
    %1607 = vmatpush1.msra.mxu0 %v1261
    %1608 = vmatprep.subr.mxu0 %v1278
    %1609 = vmatpush1.msra.mxu0 %v1277
    %1610 = vmatprep.subr.mxu0 %v1294
    %1611 = vmatpush1.msra.mxu0 %v1293
    %1612 = vmatprep.subr.mxu0 %v1310
    %1613 = vmatpush1.msra.mxu0 %v1309
    %1614 = vmatprep.subr.mxu0 %v1326
    %1615 = vmatpush1.msra.mxu0 %v1325
    %1616 = vmatprep.subr.mxu0 %v1342
    %1617 = vmatpush1.msra.mxu0 %v1341
    %1618 = vmatprep.subr.mxu0 %v1358
    %1619 = vmatpush1.msra.mxu0 %v1357
    %1620 = vmatprep.subr.mxu0 %v1374
    %1621 = vmatpush1.msra.mxu0 %v1373
    %1622 = vmatprep.subr.mxu0 %v1390
    %1623 = vmatpush1.msra.mxu0 %v1389
    %1624 = vmatprep.mubr.f32.mxu0 %v380
    %1625 = vmatmul.mubr.f32.gmra.mrb[0].mxu0 %v379
    %v1626 = vpop.f32.mrb[0].mxu0
    %v1627 = vadd.f32 %v1556, %v1626
    %v1628 = vpop.f32.mrb[0].mxu0
    %v1629 = vadd.f32 %v1558, %v1628
    %1630 = vdwg.mxu0
    %1631 = vmatprep.subr.mxu0 %v384
    %1632 = vmatpush1.msra.mxu0 %v383
    %1633 = vmatprep.subr.mxu0 %v400
    %1634 = vmatpush1.msra.mxu0 %v399
    %1635 = vmatprep.subr.mxu0 %v416
    %1636 = vmatpush1.msra.mxu0 %v415
    %1637 = vmatprep.subr.mxu0 %v432
    %1638 = vmatpush1.msra.mxu0 %v431
    %1639 = vmatprep.subr.mxu0 %v448
    %1640 = vmatpush1.msra.mxu0 %v447
    %1641 = vmatprep.subr.mxu0 %v464
    %1642 = vmatpush1.msra.mxu0 %v463
    %1643 = vmatprep.subr.mxu0 %v480
    %1644 = vmatpush1.msra.mxu0 %v479
    %1645 = vmatprep.subr.mxu0 %v496
    %1646 = vmatpush1.msra.mxu0 %v495
    %1647 = vmatprep.subr.mxu0 %v512
    %1648 = vmatpush1.msra.mxu0 %v511
    %1649 = vmatprep.subr.mxu0 %v528
    %1650 = vmatpush1.msra.mxu0 %v527
    %1651 = vmatprep.subr.mxu0 %v544
    %1652 = vmatpush1.msra.mxu0 %v543
    %1653 = vmatprep.subr.mxu0 %v560
    %1654 = vmatpush1.msra.mxu0 %v559
    %1655 = vmatprep.subr.mxu0 %v576
    %1656 = vmatpush1.msra.mxu0 %v575
    %1657 = vmatprep.subr.mxu0 %v592
    %1658 = vmatpush1.msra.mxu0 %v591
    %1659 = vmatprep.subr.mxu0 %v608
    %1660 = vmatpush1.msra.mxu0 %v607
    %1661 = vmatprep.subr.mxu0 %v624
    %1662 = vmatpush1.msra.mxu0 %v623
    %1663 = vmatprep.subr.mxu0 %v640
    %1664 = vmatpush1.msra.mxu0 %v639
    %1665 = vmatprep.subr.mxu0 %v656
    %1666 = vmatpush1.msra.mxu0 %v655
    %1667 = vmatprep.subr.mxu0 %v672
    %1668 = vmatpush1.msra.mxu0 %v671
    %1669 = vmatprep.subr.mxu0 %v688
    %1670 = vmatpush1.msra.mxu0 %v687
    %1671 = vmatprep.subr.mxu0 %v704
    %1672 = vmatpush1.msra.mxu0 %v703
    %1673 = vmatprep.subr.mxu0 %v720
    %1674 = vmatpush1.msra.mxu0 %v719
    %1675 = vmatprep.subr.mxu0 %v736
    %1676 = vmatpush1.msra.mxu0 %v735
    %1677 = vmatprep.subr.mxu0 %v752
    %1678 = vmatpush1.msra.mxu0 %v751
    %1679 = vmatprep.subr.mxu0 %v768
    %1680 = vmatpush1.msra.mxu0 %v767
    %1681 = vmatprep.subr.mxu0 %v784
    %1682 = vmatpush1.msra.mxu0 %v783
    %1683 = vmatprep.subr.mxu0 %v800
    %1684 = vmatpush1.msra.mxu0 %v799
    %1685 = vmatprep.subr.mxu0 %v816
    %1686 = vmatpush1.msra.mxu0 %v815
    %1687 = vmatprep.subr.mxu0 %v832
    %1688 = vmatpush1.msra.mxu0 %v831
    %1689 = vmatprep.subr.mxu0 %v848
    %1690 = vmatpush1.msra.mxu0 %v847
    %1691 = vmatprep.subr.mxu0 %v864
    %1692 = vmatpush1.msra.mxu0 %v863
    %1693 = vmatprep.subr.mxu0 %v880
    %1694 = vmatpush1.msra.mxu0 %v879
    %1695 = vmatprep.mubr.f32.mxu0 %v378
    %1696 = vmatmul.mubr.f32.gmra.mrb[0].mxu0 %v377
    %v1697 = vpop.f32.mrb[0].mxu0
    %v1698 = vadd.f32 %v1420, %v1697
    %v1699 = vpop.f32.mrb[0].mxu0
    %v1700 = vadd.f32 %v1424, %v1699
    %1701 = vdwg.mxu0
    %1702 = vmatprep.subr.mxu0 %v896
    %1703 = vmatpush1.msra.mxu0 %v895
    %1704 = vmatprep.subr.mxu0 %v912
    %1705 = vmatpush1.msra.mxu0 %v911
    %1706 = vmatprep.subr.mxu0 %v928
    %1707 = vmatpush1.msra.mxu0 %v927
    %1708 = vmatprep.subr.mxu0 %v944
    %1709 = vmatpush1.msra.mxu0 %v943
    %1710 = vmatprep.subr.mxu0 %v960
    %1711 = vmatpush1.msra.mxu0 %v959
    %1712 = vmatprep.subr.mxu0 %v976
    %1713 = vmatpush1.msra.mxu0 %v975
    %1714 = vmatprep.subr.mxu0 %v992
    %1715 = vmatpush1.msra.mxu0 %v991
    %1716 = vmatprep.subr.mxu0 %v1008
    %1717 = vmatpush1.msra.mxu0 %v1007
    %1718 = vmatprep.subr.mxu0 %v1024
    %1719 = vmatpush1.msra.mxu0 %v1023
    %1720 = vmatprep.subr.mxu0 %v1040
    %1721 = vmatpush1.msra.mxu0 %v1039
    %1722 = vmatprep.subr.mxu0 %v1056
    %1723 = vmatpush1.msra.mxu0 %v1055
    %1724 = vmatprep.subr.mxu0 %v1072
    %1725 = vmatpush1.msra.mxu0 %v1071
    %1726 = vmatprep.subr.mxu0 %v1088
    %1727 = vmatpush1.msra.mxu0 %v1087
    %1728 = vmatprep.subr.mxu0 %v1104
    %1729 = vmatpush1.msra.mxu0 %v1103
    %1730 = vmatprep.subr.mxu0 %v1120
    %1731 = vmatpush1.msra.mxu0 %v1119
    %1732 = vmatprep.subr.mxu0 %v1136
    %1733 = vmatpush1.msra.mxu0 %v1135
    %1734 = vmatprep.subr.mxu0 %v1152
    %1735 = vmatpush1.msra.mxu0 %v1151
    %1736 = vmatprep.subr.mxu0 %v1168
    %1737 = vmatpush1.msra.mxu0 %v1167
    %1738 = vmatprep.subr.mxu0 %v1184
    %1739 = vmatpush1.msra.mxu0 %v1183
    %1740 = vmatprep.subr.mxu0 %v1200
    %1741 = vmatpush1.msra.mxu0 %v1199
    %1742 = vmatprep.subr.mxu0 %v1216
    %1743 = vmatpush1.msra.mxu0 %v1215
    %1744 = vmatprep.subr.mxu0 %v1232
    %1745 = vmatpush1.msra.mxu0 %v1231
    %1746 = vmatprep.subr.mxu0 %v1248
    %1747 = vmatpush1.msra.mxu0 %v1247
    %1748 = vmatprep.subr.mxu0 %v1264
    %1749 = vmatpush1.msra.mxu0 %v1263
    %1750 = vmatprep.subr.mxu0 %v1280
    %1751 = vmatpush1.msra.mxu0 %v1279
    %1752 = vmatprep.subr.mxu0 %v1296
    %1753 = vmatpush1.msra.mxu0 %v1295
    %1754 = vmatprep.subr.mxu0 %v1312
    %1755 = vmatpush1.msra.mxu0 %v1311
    %1756 = vmatprep.subr.mxu0 %v1328
    %1757 = vmatpush1.msra.mxu0 %v1327
    %1758 = vmatprep.subr.mxu0 %v1344
    %1759 = vmatpush1.msra.mxu0 %v1343
    %1760 = vmatprep.subr.mxu0 %v1360
    %1761 = vmatpush1.msra.mxu0 %v1359
    %1762 = vmatprep.subr.mxu0 %v1376
    %1763 = vmatpush1.msra.mxu0 %v1375
    %1764 = vmatprep.subr.mxu0 %v1392
    %1765 = vmatpush1.msra.mxu0 %v1391
    %1766 = vmatprep.mubr.f32.mxu0 %v380
    %1767 = vmatmul.mubr.f32.gmra.mrb[0].mxu0 %v379
    %v1768 = vpop.f32.mrb[0].mxu0
    %v1769 = vadd.f32 %v1698, %v1768
    %v1770 = vpop.f32.mrb[0].mxu0
    %v1771 = vadd.f32 %v1700, %v1770
    %1772 = vdwg.mxu0
    %1773 = vmatprep.subr.mxu0 %v386
    %1774 = vmatpush1.msra.mxu0 %v385
    %1775 = vmatprep.subr.mxu0 %v402
    %1776 = vmatpush1.msra.mxu0 %v401
    %1777 = vmatprep.subr.mxu0 %v418
    %1778 = vmatpush1.msra.mxu0 %v417
    %1779 = vmatprep.subr.mxu0 %v434
    %1780 = vmatpush1.msra.mxu0 %v433
    %1781 = vmatprep.subr.mxu0 %v450
    %1782 = vmatpush1.msra.mxu0 %v449
    %1783 = vmatprep.subr.mxu0 %v466
    %1784 = vmatpush1.msra.mxu0 %v465
    %1785 = vmatprep.subr.mxu0 %v482
    %1786 = vmatpush1.msra.mxu0 %v481
    %1787 = vmatprep.subr.mxu0 %v498
    %1788 = vmatpush1.msra.mxu0 %v497
    %1789 = vmatprep.subr.mxu0 %v514
    %1790 = vmatpush1.msra.mxu0 %v513
    %1791 = vmatprep.subr.mxu0 %v530
    %1792 = vmatpush1.msra.mxu0 %v529
    %1793 = vmatprep.subr.mxu0 %v546
    %1794 = vmatpush1.msra.mxu0 %v545
    %1795 = vmatprep.subr.mxu0 %v562
    %1796 = vmatpush1.msra.mxu0 %v561
    %1797 = vmatprep.subr.mxu0 %v578
    %1798 = vmatpush1.msra.mxu0 %v577
    %1799 = vmatprep.subr.mxu0 %v594
    %1800 = vmatpush1.msra.mxu0 %v593
    %1801 = vmatprep.subr.mxu0 %v610
    %1802 = vmatpush1.msra.mxu0 %v609
    %1803 = vmatprep.subr.mxu0 %v626
    %1804 = vmatpush1.msra.mxu0 %v625
    %1805 = vmatprep.subr.mxu0 %v642
    %1806 = vmatpush1.msra.mxu0 %v641
    %1807 = vmatprep.subr.mxu0 %v658
    %1808 = vmatpush1.msra.mxu0 %v657
    %1809 = vmatprep.subr.mxu0 %v674
    %1810 = vmatpush1.msra.mxu0 %v673
    %1811 = vmatprep.subr.mxu0 %v690
    %1812 = vmatpush1.msra.mxu0 %v689
    %1813 = vmatprep.subr.mxu0 %v706
    %1814 = vmatpush1.msra.mxu0 %v705
    %1815 = vmatprep.subr.mxu0 %v722
    %1816 = vmatpush1.msra.mxu0 %v721
    %1817 = vmatprep.subr.mxu0 %v738
    %1818 = vmatpush1.msra.mxu0 %v737
    %1819 = vmatprep.subr.mxu0 %v754
    %1820 = vmatpush1.msra.mxu0 %v753
    %1821 = vmatprep.subr.mxu0 %v770
    %1822 = vmatpush1.msra.mxu0 %v769
    %1823 = vmatprep.subr.mxu0 %v786
    %1824 = vmatpush1.msra.mxu0 %v785
    %1825 = vmatprep.subr.mxu0 %v802
    %1826 = vmatpush1.msra.mxu0 %v801
    %1827 = vmatprep.subr.mxu0 %v818
    %1828 = vmatpush1.msra.mxu0 %v817
    %1829 = vmatprep.subr.mxu0 %v834
    %1830 = vmatpush1.msra.mxu0 %v833
    %1831 = vmatprep.subr.mxu0 %v850
    %1832 = vmatpush1.msra.mxu0 %v849
    %1833 = vmatprep.subr.mxu0 %v866
    %1834 = vmatpush1.msra.mxu0 %v865
    %1835 = vmatprep.subr.mxu0 %v882
    %1836 = vmatpush1.msra.mxu0 %v881
    %1837 = vmatprep.mubr.f32.mxu0 %v378
    %1838 = vmatmul.mubr.f32.gmra.mrb[0].mxu0 %v377
    %v1839 = vpop.f32.mrb[0].mxu0
    %v1840 = vadd.f32 %v1428, %v1839
    %v1841 = vpop.f32.mrb[0].mxu0
    %v1842 = vadd.f32 %v1432, %v1841
    %1843 = vdwg.mxu0
    %1844 = vmatprep.subr.mxu0 %v898
    %1845 = vmatpush1.msra.mxu0 %v897
    %1846 = vmatprep.subr.mxu0 %v914
    %1847 = vmatpush1.msra.mxu0 %v913
    %1848 = vmatprep.subr.mxu0 %v930
    %1849 = vmatpush1.msra.mxu0 %v929
    %1850 = vmatprep.subr.mxu0 %v946
    %1851 = vmatpush1.msra.mxu0 %v945
    %1852 = vmatprep.subr.mxu0 %v962
    %1853 = vmatpush1.msra.mxu0 %v961
    %1854 = vmatprep.subr.mxu0 %v978
    %1855 = vmatpush1.msra.mxu0 %v977
    %1856 = vmatprep.subr.mxu0 %v994
    %1857 = vmatpush1.msra.mxu0 %v993
    %1858 = vmatprep.subr.mxu0 %v1010
    %1859 = vmatpush1.msra.mxu0 %v1009
    %1860 = vmatprep.subr.mxu0 %v1026
    %1861 = vmatpush1.msra.mxu0 %v1025
    %1862 = vmatprep.subr.mxu0 %v1042
    %1863 = vmatpush1.msra.mxu0 %v1041
    %1864 = vmatprep.subr.mxu0 %v1058
    %1865 = vmatpush1.msra.mxu0 %v1057
    %1866 = vmatprep.subr.mxu0 %v1074
    %1867 = vmatpush1.msra.mxu0 %v1073
    %1868 = vmatprep.subr.mxu0 %v1090
    %1869 = vmatpush1.msra.mxu0 %v1089
    %1870 = vmatprep.subr.mxu0 %v1106
    %1871 = vmatpush1.msra.mxu0 %v1105
    %1872 = vmatprep.subr.mxu0 %v1122
    %1873 = vmatpush1.msra.mxu0 %v1121
    %1874 = vmatprep.subr.mxu0 %v1138
    %1875 = vmatpush1.msra.mxu0 %v1137
    %1876 = vmatprep.subr.mxu0 %v1154
    %1877 = vmatpush1.msra.mxu0 %v1153
    %1878 = vmatprep.subr.mxu0 %v1170
    %1879 = vmatpush1.msra.mxu0 %v1169
    %1880 = vmatprep.subr.mxu0 %v1186
    %1881 = vmatpush1.msra.mxu0 %v1185
    %1882 = vmatprep.subr.mxu0 %v1202
    %1883 = vmatpush1.msra.mxu0 %v1201
    %1884 = vmatprep.subr.mxu0 %v1218
    %1885 = vmatpush1.msra.mxu0 %v1217
    %1886 = vmatprep.subr.mxu0 %v1234
    %1887 = vmatpush1.msra.mxu0 %v1233
    %1888 = vmatprep.subr.mxu0 %v1250
    %1889 = vmatpush1.msra.mxu0 %v1249
    %1890 = vmatprep.subr.mxu0 %v1266
    %1891 = vmatpush1.msra.mxu0 %v1265
    %1892 = vmatprep.subr.mxu0 %v1282
    %1893 = vmatpush1.msra.mxu0 %v1281
    %1894 = vmatprep.subr.mxu0 %v1298
    %1895 = vmatpush1.msra.mxu0 %v1297
    %1896 = vmatprep.subr.mxu0 %v1314
    %1897 = vmatpush1.msra.mxu0 %v1313
    %1898 = vmatprep.subr.mxu0 %v1330
    %1899 = vmatpush1.msra.mxu0 %v1329
    %1900 = vmatprep.subr.mxu0 %v1346
    %1901 = vmatpush1.msra.mxu0 %v1345
    %1902 = vmatprep.subr.mxu0 %v1362
    %1903 = vmatpush1.msra.mxu0 %v1361
    %1904 = vmatprep.subr.mxu0 %v1378
    %1905 = vmatpush1.msra.mxu0 %v1377
    %1906 = vmatprep.subr.mxu0 %v1394
    %1907 = vmatpush1.msra.mxu0 %v1393
    %1908 = vmatprep.mubr.f32.mxu0 %v380
    %1909 = vmatmul.mubr.f32.gmra.mrb[0].mxu0 %v379
    %v1910 = vpop.f32.mrb[0].mxu0
    %v1911 = vadd.f32 %v1840, %v1910
    %v1912 = vpop.f32.mrb[0].mxu0
    %v1913 = vadd.f32 %v1842, %v1912
    %1914 = vdwg.mxu0
    %1915 = vmatprep.subr.mxu0 %v388
    %1916 = vmatpush1.msra.mxu0 %v387
    %1917 = vmatprep.subr.mxu0 %v404
    %1918 = vmatpush1.msra.mxu0 %v403
    %1919 = vmatprep.subr.mxu0 %v420
    %1920 = vmatpush1.msra.mxu0 %v419
    %1921 = vmatprep.subr.mxu0 %v436
    %1922 = vmatpush1.msra.mxu0 %v435
    %1923 = vmatprep.subr.mxu0 %v452
    %1924 = vmatpush1.msra.mxu0 %v451
    %1925 = vmatprep.subr.mxu0 %v468
    %1926 = vmatpush1.msra.mxu0 %v467
    %1927 = vmatprep.subr.mxu0 %v484
    %1928 = vmatpush1.msra.mxu0 %v483
    %1929 = vmatprep.subr.mxu0 %v500
    %1930 = vmatpush1.msra.mxu0 %v499
    %1931 = vmatprep.subr.mxu0 %v516
    %1932 = vmatpush1.msra.mxu0 %v515
    %1933 = vmatprep.subr.mxu0 %v532
    %1934 = vmatpush1.msra.mxu0 %v531
    %1935 = vmatprep.subr.mxu0 %v548
    %1936 = vmatpush1.msra.mxu0 %v547
    %1937 = vmatprep.subr.mxu0 %v564
    %1938 = vmatpush1.msra.mxu0 %v563
    %1939 = vmatprep.subr.mxu0 %v580
    %1940 = vmatpush1.msra.mxu0 %v579
    %1941 = vmatprep.subr.mxu0 %v596
    %1942 = vmatpush1.msra.mxu0 %v595
    %1943 = vmatprep.subr.mxu0 %v612
    %1944 = vmatpush1.msra.mxu0 %v611
    %1945 = vmatprep.subr.mxu0 %v628
    %1946 = vmatpush1.msra.mxu0 %v627
    %1947 = vmatprep.subr.mxu0 %v644
    %1948 = vmatpush1.msra.mxu0 %v643
    %1949 = vmatprep.subr.mxu0 %v660
    %1950 = vmatpush1.msra.mxu0 %v659
    %1951 = vmatprep.subr.mxu0 %v676
    %1952 = vmatpush1.msra.mxu0 %v675
    %1953 = vmatprep.subr.mxu0 %v692
    %1954 = vmatpush1.msra.mxu0 %v691
    %1955 = vmatprep.subr.mxu0 %v708
    %1956 = vmatpush1.msra.mxu0 %v707
    %1957 = vmatprep.subr.mxu0 %v724
    %1958 = vmatpush1.msra.mxu0 %v723
    %1959 = vmatprep.subr.mxu0 %v740
    %1960 = vmatpush1.msra.mxu0 %v739
    %1961 = vmatprep.subr.mxu0 %v756
    %1962 = vmatpush1.msra.mxu0 %v755
    %1963 = vmatprep.subr.mxu0 %v772
    %1964 = vmatpush1.msra.mxu0 %v771
    %1965 = vmatprep.subr.mxu0 %v788
    %1966 = vmatpush1.msra.mxu0 %v787
    %1967 = vmatprep.subr.mxu0 %v804
    %1968 = vmatpush1.msra.mxu0 %v803
    %1969 = vmatprep.subr.mxu0 %v820
    %1970 = vmatpush1.msra.mxu0 %v819
    %1971 = vmatprep.subr.mxu0 %v836
    %1972 = vmatpush1.msra.mxu0 %v835
    %1973 = vmatprep.subr.mxu0 %v852
    %1974 = vmatpush1.msra.mxu0 %v851
    %1975 = vmatprep.subr.mxu0 %v868
    %1976 = vmatpush1.msra.mxu0 %v867
    %1977 = vmatprep.subr.mxu0 %v884
    %1978 = vmatpush1.msra.mxu0 %v883
    %1979 = vmatprep.mubr.f32.mxu0 %v378
    %1980 = vmatmul.mubr.f32.gmra.mrb[0].mxu0 %v377
    %v1981 = vpop.f32.mrb[0].mxu0
    %v1982 = vadd.f32 %v1436, %v1981
    %v1983 = vpop.f32.mrb[0].mxu0
    %v1984 = vadd.f32 %v1440, %v1983
    %1985 = vdwg.mxu0
    %1986 = vmatprep.subr.mxu0 %v900
    %1987 = vmatpush1.msra.mxu0 %v899
    %1988 = vmatprep.subr.mxu0 %v916
    %1989 = vmatpush1.msra.mxu0 %v915
    %1990 = vmatprep.subr.mxu0 %v932
    %1991 = vmatpush1.msra.mxu0 %v931
    %1992 = vmatprep.subr.mxu0 %v948
    %1993 = vmatpush1.msra.mxu0 %v947
    %1994 = vmatprep.subr.mxu0 %v964
    %1995 = vmatpush1.msra.mxu0 %v963
    %1996 = vmatprep.subr.mxu0 %v980
    %1997 = vmatpush1.msra.mxu0 %v979
    %1998 = vmatprep.subr.mxu0 %v996
    %1999 = vmatpush1.msra.mxu0 %v995
    %2000 = vmatprep.subr.mxu0 %v1012
    %2001 = vmatpush1.msra.mxu0 %v1011
    %2002 = vmatprep.subr.mxu0 %v1028
    %2003 = vmatpush1.msra.mxu0 %v1027
    %2004 = vmatprep.subr.mxu0 %v1044
    %2005 = vmatpush1.msra.mxu0 %v1043
    %2006 = vmatprep.subr.mxu0 %v1060
    %2007 = vmatpush1.msra.mxu0 %v1059
    %2008 = vmatprep.subr.mxu0 %v1076
    %2009 = vmatpush1.msra.mxu0 %v1075
    %2010 = vmatprep.subr.mxu0 %v1092
    %2011 = vmatpush1.msra.mxu0 %v1091
    %2012 = vmatprep.subr.mxu0 %v1108
    %2013 = vmatpush1.msra.mxu0 %v1107
    %2014 = vmatprep.subr.mxu0 %v1124
    %2015 = vmatpush1.msra.mxu0 %v1123
    %2016 = vmatprep.subr.mxu0 %v1140
    %2017 = vmatpush1.msra.mxu0 %v1139
    %2018 = vmatprep.subr.mxu0 %v1156
    %2019 = vmatpush1.msra.mxu0 %v1155
    %2020 = vmatprep.subr.mxu0 %v1172
    %2021 = vmatpush1.msra.mxu0 %v1171
    %2022 = vmatprep.subr.mxu0 %v1188
    %2023 = vmatpush1.msra.mxu0 %v1187
    %2024 = vmatprep.subr.mxu0 %v1204
    %2025 = vmatpush1.msra.mxu0 %v1203
    %2026 = vmatprep.subr.mxu0 %v1220
    %2027 = vmatpush1.msra.mxu0 %v1219
    %2028 = vmatprep.subr.mxu0 %v1236
    %2029 = vmatpush1.msra.mxu0 %v1235
    %2030 = vmatprep.subr.mxu0 %v1252
    %2031 = vmatpush1.msra.mxu0 %v1251
    %2032 = vmatprep.subr.mxu0 %v1268
    %2033 = vmatpush1.msra.mxu0 %v1267
    %2034 = vmatprep.subr.mxu0 %v1284
    %2035 = vmatpush1.msra.mxu0 %v1283
    %2036 = vmatprep.subr.mxu0 %v1300
    %2037 = vmatpush1.msra.mxu0 %v1299
    %2038 = vmatprep.subr.mxu0 %v1316
    %2039 = vmatpush1.msra.mxu0 %v1315
    %2040 = vmatprep.subr.mxu0 %v1332
    %2041 = vmatpush1.msra.mxu0 %v1331
    %2042 = vmatprep.subr.mxu0 %v1348
    %2043 = vmatpush1.msra.mxu0 %v1347
    %2044 = vmatprep.subr.mxu0 %v1364
    %2045 = vmatpush1.msra.mxu0 %v1363
    %2046 = vmatprep.subr.mxu0 %v1380
    %2047 = vmatpush1.msra.mxu0 %v1379
    %2048 = vmatprep.subr.mxu0 %v1396
    %2049 = vmatpush1.msra.mxu0 %v1395
    %2050 = vmatprep.mubr.f32.mxu0 %v380
    %2051 = vmatmul.mubr.f32.gmra.mrb[0].mxu0 %v379
    %v2052 = vpop.f32.mrb[0].mxu0
    %v2053 = vadd.f32 %v1982, %v2052
    %v2054 = vpop.f32.mrb[0].mxu0
    %v2055 = vadd.f32 %v1984, %v2054
    %2056 = vdwg.mxu0
    %2057 = vmatprep.subr.mxu0 %v390
    %2058 = vmatpush1.msra.mxu0 %v389
    %2059 = vmatprep.subr.mxu0 %v406
    %2060 = vmatpush1.msra.mxu0 %v405
    %2061 = vmatprep.subr.mxu0 %v422
    %2062 = vmatpush1.msra.mxu0 %v421
    %2063 = vmatprep.subr.mxu0 %v438
    %2064 = vmatpush1.msra.mxu0 %v437
    %2065 = vmatprep.subr.mxu0 %v454
    %2066 = vmatpush1.msra.mxu0 %v453
    %2067 = vmatprep.subr.mxu0 %v470
    %2068 = vmatpush1.msra.mxu0 %v469
    %2069 = vmatprep.subr.mxu0 %v486
    %2070 = vmatpush1.msra.mxu0 %v485
    %2071 = vmatprep.subr.mxu0 %v502
    %2072 = vmatpush1.msra.mxu0 %v501
    %2073 = vmatprep.subr.mxu0 %v518
    %2074 = vmatpush1.msra.mxu0 %v517
    %2075 = vmatprep.subr.mxu0 %v534
    %2076 = vmatpush1.msra.mxu0 %v533
    %2077 = vmatprep.subr.mxu0 %v550
    %2078 = vmatpush1.msra.mxu0 %v549
    %2079 = vmatprep.subr.mxu0 %v566
    %2080 = vmatpush1.msra.mxu0 %v565
    %2081 = vmatprep.subr.mxu0 %v582
    %2082 = vmatpush1.msra.mxu0 %v581
    %2083 = vmatprep.subr.mxu0 %v598
    %2084 = vmatpush1.msra.mxu0 %v597
    %2085 = vmatprep.subr.mxu0 %v614
    %2086 = vmatpush1.msra.mxu0 %v613
    %2087 = vmatprep.subr.mxu0 %v630
    %2088 = vmatpush1.msra.mxu0 %v629
    %2089 = vmatprep.subr.mxu0 %v646
    %2090 = vmatpush1.msra.mxu0 %v645
    %2091 = vmatprep.subr.mxu0 %v662
    %2092 = vmatpush1.msra.mxu0 %v661
    %2093 = vmatprep.subr.mxu0 %v678
    %2094 = vmatpush1.msra.mxu0 %v677
    %2095 = vmatprep.subr.mxu0 %v694
    %2096 = vmatpush1.msra.mxu0 %v693
    %2097 = vmatprep.subr.mxu0 %v710
    %2098 = vmatpush1.msra.mxu0 %v709
    %2099 = vmatprep.subr.mxu0 %v726
    %2100 = vmatpush1.msra.mxu0 %v725
    %2101 = vmatprep.subr.mxu0 %v742
    %2102 = vmatpush1.msra.mxu0 %v741
    %2103 = vmatprep.subr.mxu0 %v758
    %2104 = vmatpush1.msra.mxu0 %v757
    %2105 = vmatprep.subr.mxu0 %v774
    %2106 = vmatpush1.msra.mxu0 %v773
    %2107 = vmatprep.subr.mxu0 %v790
    %2108 = vmatpush1.msra.mxu0 %v789
    %2109 = vmatprep.subr.mxu0 %v806
    %2110 = vmatpush1.msra.mxu0 %v805
    %2111 = vmatprep.subr.mxu0 %v822
    %2112 = vmatpush1.msra.mxu0 %v821
    %2113 = vmatprep.subr.mxu0 %v838
    %2114 = vmatpush1.msra.mxu0 %v837
    %2115 = vmatprep.subr.mxu0 %v854
    %2116 = vmatpush1.msra.mxu0 %v853
    %2117 = vmatprep.subr.mxu0 %v870
    %2118 = vmatpush1.msra.mxu0 %v869
    %2119 = vmatprep.subr.mxu0 %v886
    %2120 = vmatpush1.msra.mxu0 %v885
    %2121 = vmatprep.mubr.f32.mxu0 %v378
    %2122 = vmatmul.mubr.f32.gmra.mrb[0].mxu0 %v377
    %v2123 = vpop.f32.mrb[0].mxu0
    %v2124 = vadd.f32 %v1444, %v2123
    %v2125 = vpop.f32.mrb[0].mxu0
    %v2126 = vadd.f32 %v1448, %v2125
    %2127 = vdwg.mxu0
    %2128 = vmatprep.subr.mxu0 %v902
    %2129 = vmatpush1.msra.mxu0 %v901
    %2130 = vmatprep.subr.mxu0 %v918
    %2131 = vmatpush1.msra.mxu0 %v917
    %2132 = vmatprep.subr.mxu0 %v934
    %2133 = vmatpush1.msra.mxu0 %v933
    %2134 = vmatprep.subr.mxu0 %v950
    %2135 = vmatpush1.msra.mxu0 %v949
    %2136 = vmatprep.subr.mxu0 %v966
    %2137 = vmatpush1.msra.mxu0 %v965
    %2138 = vmatprep.subr.mxu0 %v982
    %2139 = vmatpush1.msra.mxu0 %v981
    %2140 = vmatprep.subr.mxu0 %v998
    %2141 = vmatpush1.msra.mxu0 %v997
    %2142 = vmatprep.subr.mxu0 %v1014
    %2143 = vmatpush1.msra.mxu0 %v1013
    %2144 = vmatprep.subr.mxu0 %v1030
    %2145 = vmatpush1.msra.mxu0 %v1029
    %2146 = vmatprep.subr.mxu0 %v1046
    %2147 = vmatpush1.msra.mxu0 %v1045
    %2148 = vmatprep.subr.mxu0 %v1062
    %2149 = vmatpush1.msra.mxu0 %v1061
    %2150 = vmatprep.subr.mxu0 %v1078
    %2151 = vmatpush1.msra.mxu0 %v1077
    %2152 = vmatprep.subr.mxu0 %v1094
    %2153 = vmatpush1.msra.mxu0 %v1093
    %2154 = vmatprep.subr.mxu0 %v1110
    %2155 = vmatpush1.msra.mxu0 %v1109
    %2156 = vmatprep.subr.mxu0 %v1126
    %2157 = vmatpush1.msra.mxu0 %v1125
    %2158 = vmatprep.subr.mxu0 %v1142
    %2159 = vmatpush1.msra.mxu0 %v1141
    %2160 = vmatprep.subr.mxu0 %v1158
    %2161 = vmatpush1.msra.mxu0 %v1157
    %2162 = vmatprep.subr.mxu0 %v1174
    %2163 = vmatpush1.msra.mxu0 %v1173
    %2164 = vmatprep.subr.mxu0 %v1190
    %2165 = vmatpush1.msra.mxu0 %v1189
    %2166 = vmatprep.subr.mxu0 %v1206
    %2167 = vmatpush1.msra.mxu0 %v1205
    %2168 = vmatprep.subr.mxu0 %v1222
    %2169 = vmatpush1.msra.mxu0 %v1221
    %2170 = vmatprep.subr.mxu0 %v1238
    %2171 = vmatpush1.msra.mxu0 %v1237
    %2172 = vmatprep.subr.mxu0 %v1254
    %2173 = vmatpush1.msra.mxu0 %v1253
    %2174 = vmatprep.subr.mxu0 %v1270
    %2175 = vmatpush1.msra.mxu0 %v1269
    %2176 = vmatprep.subr.mxu0 %v1286
    %2177 = vmatpush1.msra.mxu0 %v1285
    %2178 = vmatprep.subr.mxu0 %v1302
    %2179 = vmatpush1.msra.mxu0 %v1301
    %2180 = vmatprep.subr.mxu0 %v1318
    %2181 = vmatpush1.msra.mxu0 %v1317
    %2182 = vmatprep.subr.mxu0 %v1334
    %2183 = vmatpush1.msra.mxu0 %v1333
    %2184 = vmatprep.subr.mxu0 %v1350
    %2185 = vmatpush1.msra.mxu0 %v1349
    %2186 = vmatprep.subr.mxu0 %v1366
    %2187 = vmatpush1.msra.mxu0 %v1365
    %2188 = vmatprep.subr.mxu0 %v1382
    %2189 = vmatpush1.msra.mxu0 %v1381
    %2190 = vmatprep.subr.mxu0 %v1398
    %2191 = vmatpush1.msra.mxu0 %v1397
    %2192 = vmatprep.mubr.f32.mxu0 %v380
    %2193 = vmatmul.mubr.f32.gmra.mrb[0].mxu0 %v379
    %v2194 = vpop.f32.mrb[0].mxu0
    %v2195 = vadd.f32 %v2124, %v2194
    %v2196 = vpop.f32.mrb[0].mxu0
    %v2197 = vadd.f32 %v2126, %v2196
    %2198 = vdwg.mxu0
    %2199 = vmatprep.subr.mxu0 %v392
    %2200 = vmatpush1.msra.mxu0 %v391
    %2201 = vmatprep.subr.mxu0 %v408
    %2202 = vmatpush1.msra.mxu0 %v407
    %2203 = vmatprep.subr.mxu0 %v424
    %2204 = vmatpush1.msra.mxu0 %v423
    %2205 = vmatprep.subr.mxu0 %v440
    %2206 = vmatpush1.msra.mxu0 %v439
    %2207 = vmatprep.subr.mxu0 %v456
    %2208 = vmatpush1.msra.mxu0 %v455
    %2209 = vmatprep.subr.mxu0 %v472
    %2210 = vmatpush1.msra.mxu0 %v471
    %2211 = vmatprep.subr.mxu0 %v488
    %2212 = vmatpush1.msra.mxu0 %v487
    %2213 = vmatprep.subr.mxu0 %v504
    %2214 = vmatpush1.msra.mxu0 %v503
    %2215 = vmatprep.subr.mxu0 %v520
    %2216 = vmatpush1.msra.mxu0 %v519
    %2217 = vmatprep.subr.mxu0 %v536
    %2218 = vmatpush1.msra.mxu0 %v535
    %2219 = vmatprep.subr.mxu0 %v552
    %2220 = vmatpush1.msra.mxu0 %v551
    %2221 = vmatprep.subr.mxu0 %v568
    %2222 = vmatpush1.msra.mxu0 %v567
    %2223 = vmatprep.subr.mxu0 %v584
    %2224 = vmatpush1.msra.mxu0 %v583
    %2225 = vmatprep.subr.mxu0 %v600
    %2226 = vmatpush1.msra.mxu0 %v599
    %2227 = vmatprep.subr.mxu0 %v616
    %2228 = vmatpush1.msra.mxu0 %v615
    %2229 = vmatprep.subr.mxu0 %v632
    %2230 = vmatpush1.msra.mxu0 %v631
    %2231 = vmatprep.subr.mxu0 %v648
    %2232 = vmatpush1.msra.mxu0 %v647
    %2233 = vmatprep.subr.mxu0 %v664
    %2234 = vmatpush1.msra.mxu0 %v663
    %2235 = vmatprep.subr.mxu0 %v680
    %2236 = vmatpush1.msra.mxu0 %v679
    %2237 = vmatprep.subr.mxu0 %v696
    %2238 = vmatpush1.msra.mxu0 %v695
    %2239 = vmatprep.subr.mxu0 %v712
    %2240 = vmatpush1.msra.mxu0 %v711
    %2241 = vmatprep.subr.mxu0 %v728
    %2242 = vmatpush1.msra.mxu0 %v727
    %2243 = vmatprep.subr.mxu0 %v744
    %2244 = vmatpush1.msra.mxu0 %v743
    %2245 = vmatprep.subr.mxu0 %v760
    %2246 = vmatpush1.msra.mxu0 %v759
    %2247 = vmatprep.subr.mxu0 %v776
    %2248 = vmatpush1.msra.mxu0 %v775
    %2249 = vmatprep.subr.mxu0 %v792
    %2250 = vmatpush1.msra.mxu0 %v791
    %2251 = vmatprep.subr.mxu0 %v808
    %2252 = vmatpush1.msra.mxu0 %v807
    %2253 = vmatprep.subr.mxu0 %v824
    %2254 = vmatpush1.msra.mxu0 %v823
    %2255 = vmatprep.subr.mxu0 %v840
    %2256 = vmatpush1.msra.mxu0 %v839
    %2257 = vmatprep.subr.mxu0 %v856
    %2258 = vmatpush1.msra.mxu0 %v855
    %2259 = vmatprep.subr.mxu0 %v872
    %2260 = vmatpush1.msra.mxu0 %v871
    %2261 = vmatprep.subr.mxu0 %v888
    %2262 = vmatpush1.msra.mxu0 %v887
    %2263 = vmatprep.mubr.f32.mxu0 %v378
    %2264 = vmatmul.mubr.f32.gmra.mrb[0].mxu0 %v377
    %v2265 = vpop.f32.mrb[0].mxu0
    %v2266 = vadd.f32 %v1452, %v2265
    %v2267 = vpop.f32.mrb[0].mxu0
    %v2268 = vadd.f32 %v1456, %v2267
    %2269 = vdwg.mxu0
    %2270 = vmatprep.subr.mxu0 %v904
    %2271 = vmatpush1.msra.mxu0 %v903
    %2272 = vmatprep.subr.mxu0 %v920
    %2273 = vmatpush1.msra.mxu0 %v919
    %2274 = vmatprep.subr.mxu0 %v936
    %2275 = vmatpush1.msra.mxu0 %v935
    %2276 = vmatprep.subr.mxu0 %v952
    %2277 = vmatpush1.msra.mxu0 %v951
    %2278 = vmatprep.subr.mxu0 %v968
    %2279 = vmatpush1.msra.mxu0 %v967
    %2280 = vmatprep.subr.mxu0 %v984
    %2281 = vmatpush1.msra.mxu0 %v983
    %2282 = vmatprep.subr.mxu0 %v1000
    %2283 = vmatpush1.msra.mxu0 %v999
    %2284 = vmatprep.subr.mxu0 %v1016
    %2285 = vmatpush1.msra.mxu0 %v1015
    %2286 = vmatprep.subr.mxu0 %v1032
    %2287 = vmatpush1.msra.mxu0 %v1031
    %2288 = vmatprep.subr.mxu0 %v1048
    %2289 = vmatpush1.msra.mxu0 %v1047
    %2290 = vmatprep.subr.mxu0 %v1064
    %2291 = vmatpush1.msra.mxu0 %v1063
    %2292 = vmatprep.subr.mxu0 %v1080
    %2293 = vmatpush1.msra.mxu0 %v1079
    %2294 = vmatprep.subr.mxu0 %v1096
    %2295 = vmatpush1.msra.mxu0 %v1095
    %2296 = vmatprep.subr.mxu0 %v1112
    %2297 = vmatpush1.msra.mxu0 %v1111
    %2298 = vmatprep.subr.mxu0 %v1128
    %2299 = vmatpush1.msra.mxu0 %v1127
    %2300 = vmatprep.subr.mxu0 %v1144
    %2301 = vmatpush1.msra.mxu0 %v1143
    %2302 = vmatprep.subr.mxu0 %v1160
    %2303 = vmatpush1.msra.mxu0 %v1159
    %2304 = vmatprep.subr.mxu0 %v1176
    %2305 = vmatpush1.msra.mxu0 %v1175
    %2306 = vmatprep.subr.mxu0 %v1192
    %2307 = vmatpush1.msra.mxu0 %v1191
    %2308 = vmatprep.subr.mxu0 %v1208
    %2309 = vmatpush1.msra.mxu0 %v1207
    %2310 = vmatprep.subr.mxu0 %v1224
    %2311 = vmatpush1.msra.mxu0 %v1223
    %2312 = vmatprep.subr.mxu0 %v1240
    %2313 = vmatpush1.msra.mxu0 %v1239
    %2314 = vmatprep.subr.mxu0 %v1256
    %2315 = vmatpush1.msra.mxu0 %v1255
    %2316 = vmatprep.subr.mxu0 %v1272
    %2317 = vmatpush1.msra.mxu0 %v1271
    %2318 = vmatprep.subr.mxu0 %v1288
    %2319 = vmatpush1.msra.mxu0 %v1287
    %2320 = vmatprep.subr.mxu0 %v1304
    %2321 = vmatpush1.msra.mxu0 %v1303
    %2322 = vmatprep.subr.mxu0 %v1320
    %2323 = vmatpush1.msra.mxu0 %v1319
    %2324 = vmatprep.subr.mxu0 %v1336
    %2325 = vmatpush1.msra.mxu0 %v1335
    %2326 = vmatprep.subr.mxu0 %v1352
    %2327 = vmatpush1.msra.mxu0 %v1351
    %2328 = vmatprep.subr.mxu0 %v1368
    %2329 = vmatpush1.msra.mxu0 %v1367
    %2330 = vmatprep.subr.mxu0 %v1384
    %2331 = vmatpush1.msra.mxu0 %v1383
    %2332 = vmatprep.subr.mxu0 %v1400
    %2333 = vmatpush1.msra.mxu0 %v1399
    %2334 = vmatprep.mubr.f32.mxu0 %v380
    %2335 = vmatmul.mubr.f32.gmra.mrb[0].mxu0 %v379
    %v2336 = vpop.f32.mrb[0].mxu0
    %v2337 = vadd.f32 %v2266, %v2336
    %v2338 = vpop.f32.mrb[0].mxu0
    %v2339 = vadd.f32 %v2268, %v2338
    %2340 = vdwg.mxu0
    %2341 = vmatprep.subr.mxu0 %v394
    %2342 = vmatpush1.msra.mxu0 %v393
    %2343 = vmatprep.subr.mxu0 %v410
    %2344 = vmatpush1.msra.mxu0 %v409
    %2345 = vmatprep.subr.mxu0 %v426
    %2346 = vmatpush1.msra.mxu0 %v425
    %2347 = vmatprep.subr.mxu0 %v442
    %2348 = vmatpush1.msra.mxu0 %v441
    %2349 = vmatprep.subr.mxu0 %v458
    %2350 = vmatpush1.msra.mxu0 %v457
    %2351 = vmatprep.subr.mxu0 %v474
    %2352 = vmatpush1.msra.mxu0 %v473
    %2353 = vmatprep.subr.mxu0 %v490
    %2354 = vmatpush1.msra.mxu0 %v489
    %2355 = vmatprep.subr.mxu0 %v506
    %2356 = vmatpush1.msra.mxu0 %v505
    %2357 = vmatprep.subr.mxu0 %v522
    %2358 = vmatpush1.msra.mxu0 %v521
    %2359 = vmatprep.subr.mxu0 %v538
    %2360 = vmatpush1.msra.mxu0 %v537
    %2361 = vmatprep.subr.mxu0 %v554
    %2362 = vmatpush1.msra.mxu0 %v553
    %2363 = vmatprep.subr.mxu0 %v570
    %2364 = vmatpush1.msra.mxu0 %v569
    %2365 = vmatprep.subr.mxu0 %v586
    %2366 = vmatpush1.msra.mxu0 %v585
    %2367 = vmatprep.subr.mxu0 %v602
    %2368 = vmatpush1.msra.mxu0 %v601
    %2369 = vmatprep.subr.mxu0 %v618
    %2370 = vmatpush1.msra.mxu0 %v617
    %2371 = vmatprep.subr.mxu0 %v634
    %2372 = vmatpush1.msra.mxu0 %v633
    %2373 = vmatprep.subr.mxu0 %v650
    %2374 = vmatpush1.msra.mxu0 %v649
    %2375 = vmatprep.subr.mxu0 %v666
    %2376 = vmatpush1.msra.mxu0 %v665
    %2377 = vmatprep.subr.mxu0 %v682
    %2378 = vmatpush1.msra.mxu0 %v681
    %2379 = vmatprep.subr.mxu0 %v698
    %2380 = vmatpush1.msra.mxu0 %v697
    %2381 = vmatprep.subr.mxu0 %v714
    %2382 = vmatpush1.msra.mxu0 %v713
    %2383 = vmatprep.subr.mxu0 %v730
    %2384 = vmatpush1.msra.mxu0 %v729
    %2385 = vmatprep.subr.mxu0 %v746
    %2386 = vmatpush1.msra.mxu0 %v745
    %2387 = vmatprep.subr.mxu0 %v762
    %2388 = vmatpush1.msra.mxu0 %v761
    %2389 = vmatprep.subr.mxu0 %v778
    %2390 = vmatpush1.msra.mxu0 %v777
    %2391 = vmatprep.subr.mxu0 %v794
    %2392 = vmatpush1.msra.mxu0 %v793
    %2393 = vmatprep.subr.mxu0 %v810
    %2394 = vmatpush1.msra.mxu0 %v809
    %2395 = vmatprep.subr.mxu0 %v826
    %2396 = vmatpush1.msra.mxu0 %v825
    %2397 = vmatprep.subr.mxu0 %v842
    %2398 = vmatpush1.msra.mxu0 %v841
    %2399 = vmatprep.subr.mxu0 %v858
    %2400 = vmatpush1.msra.mxu0 %v857
    %2401 = vmatprep.subr.mxu0 %v874
    %2402 = vmatpush1.msra.mxu0 %v873
    %2403 = vmatprep.subr.mxu0 %v890
    %2404 = vmatpush1.msra.mxu0 %v889
    %2405 = vmatprep.mubr.f32.mxu0 %v378
    %2406 = vmatmul.mubr.f32.gmra.mrb[0].mxu0 %v377
    %v2407 = vpop.f32.mrb[0].mxu0
    %v2408 = vadd.f32 %v1460, %v2407
    %v2409 = vpop.f32.mrb[0].mxu0
    %v2410 = vadd.f32 %v1464, %v2409
    %2411 = vdwg.mxu0
    %2412 = vmatprep.subr.mxu0 %v906
    %2413 = vmatpush1.msra.mxu0 %v905
    %2414 = vmatprep.subr.mxu0 %v922
    %2415 = vmatpush1.msra.mxu0 %v921
    %2416 = vmatprep.subr.mxu0 %v938
    %2417 = vmatpush1.msra.mxu0 %v937
    %2418 = vmatprep.subr.mxu0 %v954
    %2419 = vmatpush1.msra.mxu0 %v953
    %2420 = vmatprep.subr.mxu0 %v970
    %2421 = vmatpush1.msra.mxu0 %v969
    %2422 = vmatprep.subr.mxu0 %v986
    %2423 = vmatpush1.msra.mxu0 %v985
    %2424 = vmatprep.subr.mxu0 %v1002
    %2425 = vmatpush1.msra.mxu0 %v1001
    %2426 = vmatprep.subr.mxu0 %v1018
    %2427 = vmatpush1.msra.mxu0 %v1017
    %2428 = vmatprep.subr.mxu0 %v1034
    %2429 = vmatpush1.msra.mxu0 %v1033
    %2430 = vmatprep.subr.mxu0 %v1050
    %2431 = vmatpush1.msra.mxu0 %v1049
    %2432 = vmatprep.subr.mxu0 %v1066
    %2433 = vmatpush1.msra.mxu0 %v1065
    %2434 = vmatprep.subr.mxu0 %v1082
    %2435 = vmatpush1.msra.mxu0 %v1081
    %2436 = vmatprep.subr.mxu0 %v1098
    %2437 = vmatpush1.msra.mxu0 %v1097
    %2438 = vmatprep.subr.mxu0 %v1114
    %2439 = vmatpush1.msra.mxu0 %v1113
    %2440 = vmatprep.subr.mxu0 %v1130
    %2441 = vmatpush1.msra.mxu0 %v1129
    %2442 = vmatprep.subr.mxu0 %v1146
    %2443 = vmatpush1.msra.mxu0 %v1145
    %2444 = vmatprep.subr.mxu0 %v1162
    %2445 = vmatpush1.msra.mxu0 %v1161
    %2446 = vmatprep.subr.mxu0 %v1178
    %2447 = vmatpush1.msra.mxu0 %v1177
    %2448 = vmatprep.subr.mxu0 %v1194
    %2449 = vmatpush1.msra.mxu0 %v1193
    %2450 = vmatprep.subr.mxu0 %v1210
    %2451 = vmatpush1.msra.mxu0 %v1209
    %2452 = vmatprep.subr.mxu0 %v1226
    %2453 = vmatpush1.msra.mxu0 %v1225
    %2454 = vmatprep.subr.mxu0 %v1242
    %2455 = vmatpush1.msra.mxu0 %v1241
    %2456 = vmatprep.subr.mxu0 %v1258
    %2457 = vmatpush1.msra.mxu0 %v1257
    %2458 = vmatprep.subr.mxu0 %v1274
    %2459 = vmatpush1.msra.mxu0 %v1273
    %2460 = vmatprep.subr.mxu0 %v1290
    %2461 = vmatpush1.msra.mxu0 %v1289
    %2462 = vmatprep.subr.mxu0 %v1306
    %2463 = vmatpush1.msra.mxu0 %v1305
    %2464 = vmatprep.subr.mxu0 %v1322
    %2465 = vmatpush1.msra.mxu0 %v1321
    %2466 = vmatprep.subr.mxu0 %v1338
    %2467 = vmatpush1.msra.mxu0 %v1337
    %2468 = vmatprep.subr.mxu0 %v1354
    %2469 = vmatpush1.msra.mxu0 %v1353
    %2470 = vmatprep.subr.mxu0 %v1370
    %2471 = vmatpush1.msra.mxu0 %v1369
    %2472 = vmatprep.subr.mxu0 %v1386
    %2473 = vmatpush1.msra.mxu0 %v1385
    %2474 = vmatprep.subr.mxu0 %v1402
    %2475 = vmatpush1.msra.mxu0 %v1401
    %2476 = vmatprep.mubr.f32.mxu0 %v380
    %2477 = vmatmul.mubr.f32.gmra.mrb[0].mxu0 %v379
    %v2478 = vpop.f32.mrb[0].mxu0
    %v2479 = vadd.f32 %v2408, %v2478
    %v2480 = vpop.f32.mrb[0].mxu0
    %v2481 = vadd.f32 %v2410, %v2480
    %2482 = vdwg.mxu0
    %2483 = vmatprep.subr.mxu0 %v396
    %2484 = vmatpush1.msra.mxu0 %v395
    %2485 = vmatprep.subr.mxu0 %v412
    %2486 = vmatpush1.msra.mxu0 %v411
    %2487 = vmatprep.subr.mxu0 %v428
    %2488 = vmatpush1.msra.mxu0 %v427
    %2489 = vmatprep.subr.mxu0 %v444
    %2490 = vmatpush1.msra.mxu0 %v443
    %2491 = vmatprep.subr.mxu0 %v460
    %2492 = vmatpush1.msra.mxu0 %v459
    %2493 = vmatprep.subr.mxu0 %v476
    %2494 = vmatpush1.msra.mxu0 %v475
    %2495 = vmatprep.subr.mxu0 %v492
    %2496 = vmatpush1.msra.mxu0 %v491
    %2497 = vmatprep.subr.mxu0 %v508
    %2498 = vmatpush1.msra.mxu0 %v507
    %2499 = vmatprep.subr.mxu0 %v524
    %2500 = vmatpush1.msra.mxu0 %v523
    %2501 = vmatprep.subr.mxu0 %v540
    %2502 = vmatpush1.msra.mxu0 %v539
    %2503 = vmatprep.subr.mxu0 %v556
    %2504 = vmatpush1.msra.mxu0 %v555
    %2505 = vmatprep.subr.mxu0 %v572
    %2506 = vmatpush1.msra.mxu0 %v571
    %2507 = vmatprep.subr.mxu0 %v588
    %2508 = vmatpush1.msra.mxu0 %v587
    %2509 = vmatprep.subr.mxu0 %v604
    %2510 = vmatpush1.msra.mxu0 %v603
    %2511 = vmatprep.subr.mxu0 %v620
    %2512 = vmatpush1.msra.mxu0 %v619
    %2513 = vmatprep.subr.mxu0 %v636
    %2514 = vmatpush1.msra.mxu0 %v635
    %2515 = vmatprep.subr.mxu0 %v652
    %2516 = vmatpush1.msra.mxu0 %v651
    %2517 = vmatprep.subr.mxu0 %v668
    %2518 = vmatpush1.msra.mxu0 %v667
    %2519 = vmatprep.subr.mxu0 %v684
    %2520 = vmatpush1.msra.mxu0 %v683
    %2521 = vmatprep.subr.mxu0 %v700
    %2522 = vmatpush1.msra.mxu0 %v699
    %2523 = vmatprep.subr.mxu0 %v716
    %2524 = vmatpush1.msra.mxu0 %v715
    %2525 = vmatprep.subr.mxu0 %v732
    %2526 = vmatpush1.msra.mxu0 %v731
    %2527 = vmatprep.subr.mxu0 %v748
    %2528 = vmatpush1.msra.mxu0 %v747
    %2529 = vmatprep.subr.mxu0 %v764
    %2530 = vmatpush1.msra.mxu0 %v763
    %2531 = vmatprep.subr.mxu0 %v780
    %2532 = vmatpush1.msra.mxu0 %v779
    %2533 = vmatprep.subr.mxu0 %v796
    %2534 = vmatpush1.msra.mxu0 %v795
    %2535 = vmatprep.subr.mxu0 %v812
    %2536 = vmatpush1.msra.mxu0 %v811
    %2537 = vmatprep.subr.mxu0 %v828
    %2538 = vmatpush1.msra.mxu0 %v827
    %2539 = vmatprep.subr.mxu0 %v844
    %2540 = vmatpush1.msra.mxu0 %v843
    %2541 = vmatprep.subr.mxu0 %v860
    %2542 = vmatpush1.msra.mxu0 %v859
    %2543 = vmatprep.subr.mxu0 %v876
    %2544 = vmatpush1.msra.mxu0 %v875
    %2545 = vmatprep.subr.mxu0 %v892
    %2546 = vmatpush1.msra.mxu0 %v891
    %2547 = vmatprep.mubr.f32.mxu0 %v378
    %2548 = vmatmul.mubr.f32.gmra.mrb[0].mxu0 %v377
    %v2549 = vpop.f32.mrb[0].mxu0
    %v2550 = vadd.f32 %v1468, %v2549
    %v2551 = vpop.f32.mrb[0].mxu0
    %v2552 = vadd.f32 %v1472, %v2551
    %2553 = vdwg.mxu0
    %2554 = vmatprep.subr.mxu0 %v908
    %2555 = vmatpush1.msra.mxu0 %v907
    %2556 = vmatprep.subr.mxu0 %v924
    %2557 = vmatpush1.msra.mxu0 %v923
    %2558 = vmatprep.subr.mxu0 %v940
    %2559 = vmatpush1.msra.mxu0 %v939
    %2560 = vmatprep.subr.mxu0 %v956
    %2561 = vmatpush1.msra.mxu0 %v955
    %2562 = vmatprep.subr.mxu0 %v972
    %2563 = vmatpush1.msra.mxu0 %v971
    %2564 = vmatprep.subr.mxu0 %v988
    %2565 = vmatpush1.msra.mxu0 %v987
    %2566 = vmatprep.subr.mxu0 %v1004
    %2567 = vmatpush1.msra.mxu0 %v1003
    %2568 = vmatprep.subr.mxu0 %v1020
    %2569 = vmatpush1.msra.mxu0 %v1019
    %2570 = vmatprep.subr.mxu0 %v1036
    %2571 = vmatpush1.msra.mxu0 %v1035
    %2572 = vmatprep.subr.mxu0 %v1052
    %2573 = vmatpush1.msra.mxu0 %v1051
    %2574 = vmatprep.subr.mxu0 %v1068
    %2575 = vmatpush1.msra.mxu0 %v1067
    %2576 = vmatprep.subr.mxu0 %v1084
    %2577 = vmatpush1.msra.mxu0 %v1083
    %2578 = vmatprep.subr.mxu0 %v1100
    %2579 = vmatpush1.msra.mxu0 %v1099
    %2580 = vmatprep.subr.mxu0 %v1116
    %2581 = vmatpush1.msra.mxu0 %v1115
    %2582 = vmatprep.subr.mxu0 %v1132
    %2583 = vmatpush1.msra.mxu0 %v1131
    %2584 = vmatprep.subr.mxu0 %v1148
    %2585 = vmatpush1.msra.mxu0 %v1147
    %2586 = vmatprep.subr.mxu0 %v1164
    %2587 = vmatpush1.msra.mxu0 %v1163
    %2588 = vmatprep.subr.mxu0 %v1180
    %2589 = vmatpush1.msra.mxu0 %v1179
    %2590 = vmatprep.subr.mxu0 %v1196
    %2591 = vmatpush1.msra.mxu0 %v1195
    %2592 = vmatprep.subr.mxu0 %v1212
    %2593 = vmatpush1.msra.mxu0 %v1211
    %2594 = vmatprep.subr.mxu0 %v1228
    %2595 = vmatpush1.msra.mxu0 %v1227
    %2596 = vmatprep.subr.mxu0 %v1244
    %2597 = vmatpush1.msra.mxu0 %v1243
    %2598 = vmatprep.subr.mxu0 %v1260
    %2599 = vmatpush1.msra.mxu0 %v1259
    %2600 = vmatprep.subr.mxu0 %v1276
    %2601 = vmatpush1.msra.mxu0 %v1275
    %2602 = vmatprep.subr.mxu0 %v1292
    %2603 = vmatpush1.msra.mxu0 %v1291
    %2604 = vmatprep.subr.mxu0 %v1308
    %2605 = vmatpush1.msra.mxu0 %v1307
    %2606 = vmatprep.subr.mxu0 %v1324
    %2607 = vmatpush1.msra.mxu0 %v1323
    %2608 = vmatprep.subr.mxu0 %v1340
    %2609 = vmatpush1.msra.mxu0 %v1339
    %2610 = vmatprep.subr.mxu0 %v1356
    %2611 = vmatpush1.msra.mxu0 %v1355
    %2612 = vmatprep.subr.mxu0 %v1372
    %2613 = vmatpush1.msra.mxu0 %v1371
    %2614 = vmatprep.subr.mxu0 %v1388
    %2615 = vmatpush1.msra.mxu0 %v1387
    %2616 = vmatprep.subr.mxu0 %v1404
    %2617 = vmatpush1.msra.mxu0 %v1403
    %2618 = vmatprep.mubr.f32.mxu0 %v380
    %2619 = vmatmul.mubr.f32.gmra.mrb[0].mxu0 %v379
    %v2620 = vpop.f32.mrb[0].mxu0
    %v2621 = vadd.f32 %v2550, %v2620
    %v2622 = vpop.f32.mrb[0].mxu0
    %v2623 = vadd.f32 %v2552, %v2622
    %2624 = vdwg.mxu0
    %v2625 = vld [vmem:[#allocation13] sm:$0xff]
    %v2626 = vld [vmem:[#allocation13 + $0x8] sm:$0xff]
    %v2627 = vld [vmem:[#allocation13 + $0x10] sm:$0xff]
    %v2628 = vld [vmem:[#allocation13 + $0x18] sm:$0xff]
    %v2629 = vld [vmem:[#allocation13 + $0x20] sm:$0xff]
    %v2630 = vld [vmem:[#allocation13 + $0x28] sm:$0xff]
    %v2631 = vld [vmem:[#allocation13 + $0x30] sm:$0xff]
    %v2632 = vld [vmem:[#allocation13 + $0x38] sm:$0xff]
    %v2633 = vld [vmem:[#allocation13 + $0x40] sm:$0xff]
    %v2634 = vld [vmem:[#allocation13 + $0x48] sm:$0xff]
    %v2635 = vld [vmem:[#allocation13 + $0x50] sm:$0xff]
    %v2636 = vld [vmem:[#allocation13 + $0x58] sm:$0xff]
    %v2637 = vld [vmem:[#allocation13 + $0x60] sm:$0xff]
    %v2638 = vld [vmem:[#allocation13 + $0x68] sm:$0xff]
    %v2639 = vld [vmem:[#allocation13 + $0x70] sm:$0xff]
    %v2640 = vld [vmem:[#allocation13 + $0x78] sm:$0xff]
    %v2641 = vxor.u32 %v1627, 2147483648
    %v2642 = vmul.f32 %v2641, 1.442695
    %v2643 = vpow.pop %v2642
    %v2644 = vadd.f32 %v2643, 1.0
    %v2645 = vrcp.pop %v2644
    %v2646 = vmul.f32 1.0, %v2645
    %v2647 = vtanh.pop %v1627
    %v2648 = vxor.u32 %v2623, 2147483648
    %v2649 = vmul.f32 %v2648, 1.442695
    %v2650 = vpow.pop %v2649
    %v2651 = vadd.f32 %v2650, 1.0
    %v2652 = vrcp.pop %v2651
    %v2653 = vmul.f32 1.0, %v2652
    %v2654 = vtanh.pop %v2623
    %v2655 = vmul.f32 %v2646, 0.0
    %2657 = vrot.lane.b32.xlu0 %v2647, 64
    %v2658 = vpop.permute.xlu0 %2657
    %v2660 = vmul.f32 %v2646, %v2658
    %2662 = vrot.lane.b32.xlu0 %v2660, 32
    %v2663 = vpop.permute.xlu0 %2662
    %v2665 = vadd.f32 %v2655, %v2663
    %v2666 = vtanh.pop %v2665
    %2668 = vrot.lane.b32.xlu0 %v2666, 64
    %v2669 = vpop.permute.xlu0 %2668
    %v2671 = vmul.f32 %v2646, %v2669
    %v2672 = vmul.f32 %v2653, 0.0
    %2674 = vrot.lane.b32.xlu0 %v2654, 64
    %v2675 = vpop.permute.xlu0 %2674
    %v2677 = vmul.f32 %v2653, %v2675
    %2679 = vrot.lane.b32.xlu0 %v2677, 32
    %v2680 = vpop.permute.xlu0 %2679
    %v2682 = vadd.f32 %v2672, %v2680
    %v2683 = vtanh.pop %v2682
    %2685 = vrot.lane.b32.xlu0 %v2683, 64
    %v2686 = vpop.permute.xlu0 %2685
    %v2688 = vmul.f32 %v2653, %v2686
    %v2689 = vld [vmem:[%s0] sm:$0x3]
    %2691 = vset.pattern.permute.xlu0 0
    %2692 = vperm.xlu0 %2691, %v2689
    %v2693 = vpop.permute.xlu0 %2692
    %vm2695 = vcmp.gt.f32.partialorder %v2693, 0.5
    %s2696 = scalar_lea.vmem %s0, 14
    %v2697 = vld [vmem:[%s2696] sm:$0x3]
    %2699 = vset.pattern.permute.xlu0 0
    %2700 = vperm.xlu0 %2699, %v2697
    %v2701 = vpop.permute.xlu0 %2700
    %vm2703 = vcmp.gt.f32.partialorder %v2701, 0.5
    %v2704 = vsel %vm2695, %v2671, 0.0
    %v2705 = vsel %vm2695, %v2665, 0.0
    %v2706 = vsel %vm2703, %v2688, 0.0
    %v2707 = vsel %vm2703, %v2682, 0.0
    %2709 = vrot.lane.b32.xlu0 %v2704, 32
    %v2710 = vpop.permute.xlu0 %2709
    %2713 = vrot.lane.b32.xlu0 %v2706, 64
    %v2714 = vpop.permute.xlu0 %2713
    %vm2716 = vcmask 261120
    %v2717 = vsel %vm2716, %v2710, %v2714
    %vm2718 = vcmask 254976
    %2719 = vst.msk [vmem:[#allocation2] sm:$0x3] %vm2718, %v2710
    %2720 = vrot.lane.b32.xlu0 %v2706, 32
    %v2721 = vpop.permute.xlu0 %2720
    %s2723 = scalar_lea.vmem [#allocation3], 14
    %2724 = vst.msk [vmem:[%s2723] sm:$0x3] %vm2718, %v2721
    %vm2725 = vcmask 523264
    %v2727 = vsel %vm2725, %v2717, 0
    %2729 = vmatprep.subr.mxu0 %v2626
    %2730 = vmatpush1.msra.mxu0 %v2625
    %2731 = vmatprep.subr.mxu0 %v2628
    %2732 = vmatpush1.msra.mxu0 %v2627
    %2733 = vmatprep.subr.mxu0 %v2630
    %2734 = vmatpush1.msra.mxu0 %v2629
    %2735 = vmatprep.subr.mxu0 %v2632
    %2736 = vmatpush1.msra.mxu0 %v2631
    %2737 = vmatprep.subr.mxu0 %v2634
    %2738 = vmatpush1.msra.mxu0 %v2633
    %2739 = vmatprep.subr.mxu0 %v2636
    %2740 = vmatpush1.msra.mxu0 %v2635
    %2741 = vmatprep.subr.mxu0 %v2638
    %2742 = vmatpush1.msra.mxu0 %v2637
    %2743 = vmatprep.subr.mxu0 %v2640
    %2744 = vmatpush1.msra.mxu0 %v2639
    %2745 = vmatprep.subr.mxu0 0.0
    %2746 = vmatpush1.msra.mxu0 0.0
    %2747 = vmatprep.subr.mxu0 0.0
    %2748 = vmatpush1.msra.mxu0 0.0
    %2749 = vmatprep.subr.mxu0 0.0
    %2750 = vmatpush1.msra.mxu0 0.0
    %2751 = vmatprep.subr.mxu0 0.0
    %2752 = vmatpush1.msra.mxu0 0.0
    %2753 = vmatprep.subr.mxu0 0.0
    %2754 = vmatpush1.msra.mxu0 0.0
    %2755 = vmatprep.subr.mxu0 0.0
    %2756 = vmatpush1.msra.mxu0 0.0
    %2757 = vmatprep.subr.mxu0 0.0
    %2758 = vmatpush1.msra.mxu0 0.0
    %2759 = vmatprep.subr.mxu0 0.0
    %2760 = vmatpush1.msra.mxu0 0.0
    %2761 = vmatprep.subr.mxu0 0.0
    %2762 = vmatpush1.msra.mxu0 0.0
    %2763 = vmatprep.subr.mxu0 0.0
    %2764 = vmatpush1.msra.mxu0 0.0
    %2765 = vmatprep.subr.mxu0 0.0
    %2766 = vmatpush1.msra.mxu0 0.0
    %2767 = vmatprep.subr.mxu0 0.0
    %2768 = vmatpush1.msra.mxu0 0.0
    %2769 = vmatprep.subr.mxu0 0.0
    %2770 = vmatpush1.msra.mxu0 0.0
    %2771 = vmatprep.subr.mxu0 0.0
    %2772 = vmatpush1.msra.mxu0 0.0
    %2773 = vmatprep.subr.mxu0 0.0
    %2774 = vmatpush1.msra.mxu0 0.0
    %2775 = vmatprep.subr.mxu0 0.0
    %2776 = vmatpush1.msra.mxu0 0.0
    %2777 = vmatprep.subr.mxu0 0.0
    %2778 = vmatpush1.msra.mxu0 0.0
    %2779 = vmatprep.subr.mxu0 0.0
    %2780 = vmatpush1.msra.mxu0 0.0
    %2781 = vmatprep.subr.mxu0 0.0
    %2782 = vmatpush1.msra.mxu0 0.0
    %2783 = vmatprep.subr.mxu0 0.0
    %2784 = vmatpush1.msra.mxu0 0.0
    %2785 = vmatprep.subr.mxu0 0.0
    %2786 = vmatpush1.msra.mxu0 0.0
    %2787 = vmatprep.subr.mxu0 0.0
    %2788 = vmatpush1.msra.mxu0 0.0
    %2789 = vmatprep.subr.mxu0 0.0
    %2790 = vmatpush1.msra.mxu0 0.0
    %2791 = vmatprep.subr.mxu0 0.0
    %2792 = vmatpush1.msra.mxu0 0.0
    %2793 = vmatprep.mubr.f32.mxu0 0.0
    %2794 = vmatmul.mubr.f32.gmra.mrb[0].mxu0 %v2727
    %v2795 = vpop.f32.mrb[0].mxu0
    %v2796 = vadd.f32 0.0, %v2795
    %v2797 = vpop.f32.mrb[0].mxu0
    %v2798 = vadd.f32 0.0, %v2797
    %2799 = vdwg.mxu0
    %v2800 = vadd.f32 %v1769, %v2796
    %v2801 = vadd.f32 %v2481, %v2798
    %v2802 = vxor.u32 %v2800, 2147483648
    %v2803 = vmul.f32 %v2802, 1.442695
    %v2804 = vpow.pop %v2803
    %v2805 = vadd.f32 %v2804, 1.0
    %v2806 = vrcp.pop %v2805
    %v2807 = vmul.f32 1.0, %v2806
    %v2808 = vtanh.pop %v2800
    %v2809 = vxor.u32 %v2801, 2147483648
    %v2810 = vmul.f32 %v2809, 1.442695
    %v2811 = vpow.pop %v2810
    %v2812 = vadd.f32 %v2811, 1.0
    %v2813 = vrcp.pop %v2812
    %v2814 = vmul.f32 1.0, %v2813
    %v2815 = vtanh.pop %v2801
    %v2816 = vmul.f32 %v2807, %v2705
    %2818 = vrot.lane.b32.xlu0 %v2808, 64
    %v2819 = vpop.permute.xlu0 %2818
    %v2821 = vmul.f32 %v2807, %v2819
    %2823 = vrot.lane.b32.xlu0 %v2821, 32
    %v2824 = vpop.permute.xlu0 %2823
    %v2826 = vadd.f32 %v2816, %v2824
    %v2827 = vtanh.pop %v2826
    %2829 = vrot.lane.b32.xlu0 %v2827, 64
    %v2830 = vpop.permute.xlu0 %2829
    %v2832 = vmul.f32 %v2807, %v2830
    %v2833 = vmul.f32 %v2814, %v2707
    %2835 = vrot.lane.b32.xlu0 %v2815, 64
    %v2836 = vpop.permute.xlu0 %2835
    %v2838 = vmul.f32 %v2814, %v2836
    %2840 = vrot.lane.b32.xlu0 %v2838, 32
    %v2841 = vpop.permute.xlu0 %2840
    %v2843 = vadd.f32 %v2833, %v2841
    %v2844 = vtanh.pop %v2843
    %2846 = vrot.lane.b32.xlu0 %v2844, 64
    %v2847 = vpop.permute.xlu0 %2846
    %v2849 = vmul.f32 %v2814, %v2847
    %s2850 = scalar_lea.vmem %s0, 2
    %v2851 = vld [vmem:[%s2850] sm:$0x3]
    %2853 = vset.pattern.permute.xlu0 0
    %2854 = vperm.xlu0 %2853, %v2851
    %v2855 = vpop.permute.xlu0 %2854
    %vm2857 = vcmp.gt.f32.partialorder %v2855, 0.5
    %s2858 = scalar_lea.vmem %s0, 12
    %v2859 = vld [vmem:[%s2858] sm:$0x3]
    %2861 = vset.pattern.permute.xlu0 0
    %2862 = vperm.xlu0 %2861, %v2859
    %v2863 = vpop.permute.xlu0 %2862
    %vm2865 = vcmp.gt.f32.partialorder %v2863, 0.5
    %v2866 = vsel %vm2857, %v2832, %v2704
    %v2867 = vsel %vm2857, %v2826, %v2705
    %v2868 = vsel %vm2865, %v2849, %v2706
    %v2869 = vsel %vm2865, %v2843, %v2707
    %2871 = vrot.lane.b32.xlu0 %v2866, 32
    %v2872 = vpop.permute.xlu0 %2871
    %2875 = vrot.lane.b32.xlu0 %v2868, 64
    %v2876 = vpop.permute.xlu0 %2875
    %v2878 = vsel %vm2716, %v2872, %v2876
    %v2879 = vsel %vm2857, %v2832, 0.0
    %2881 = vrot.lane.b32.xlu0 %v2879, 32
    %v2882 = vpop.permute.xlu0 %2881
    %s2884 = scalar_lea.vmem [#allocation2], 2
    %2885 = vst.msk [vmem:[%s2884] sm:$0x3] %vm2718, %v2882
    %v2886 = vsel %vm2865, %v2849, 0.0
    %2888 = vrot.lane.b32.xlu0 %v2886, 32
    %v2889 = vpop.permute.xlu0 %2888
    %s2891 = scalar_lea.vmem [#allocation3], 12
    %2892 = vst.msk [vmem:[%s2891] sm:$0x3] %vm2718, %v2889
    %v2894 = vsel %vm2725, %v2878, 0
    %2896 = vmatprep.subr.mxu0 %v2626
    %2897 = vmatpush1.msra.mxu0 %v2625
    %2898 = vmatprep.subr.mxu0 %v2628
    %2899 = vmatpush1.msra.mxu0 %v2627
    %2900 = vmatprep.subr.mxu0 %v2630
    %2901 = vmatpush1.msra.mxu0 %v2629
    %2902 = vmatprep.subr.mxu0 %v2632
    %2903 = vmatpush1.msra.mxu0 %v2631
    %2904 = vmatprep.subr.mxu0 %v2634
    %2905 = vmatpush1.msra.mxu0 %v2633
    %2906 = vmatprep.subr.mxu0 %v2636
    %2907 = vmatpush1.msra.mxu0 %v2635
    %2908 = vmatprep.subr.mxu0 %v2638
    %2909 = vmatpush1.msra.mxu0 %v2637
    %2910 = vmatprep.subr.mxu0 %v2640
    %2911 = vmatpush1.msra.mxu0 %v2639
    %2912 = vmatprep.subr.mxu0 0.0
    %2913 = vmatpush1.msra.mxu0 0.0
    %2914 = vmatprep.subr.mxu0 0.0
    %2915 = vmatpush1.msra.mxu0 0.0
    %2916 = vmatprep.subr.mxu0 0.0
    %2917 = vmatpush1.msra.mxu0 0.0
    %2918 = vmatprep.subr.mxu0 0.0
    %2919 = vmatpush1.msra.mxu0 0.0
    %2920 = vmatprep.subr.mxu0 0.0
    %2921 = vmatpush1.msra.mxu0 0.0
    %2922 = vmatprep.subr.mxu0 0.0
    %2923 = vmatpush1.msra.mxu0 0.0
    %2924 = vmatprep.subr.mxu0 0.0
    %2925 = vmatpush1.msra.mxu0 0.0
    %2926 = vmatprep.subr.mxu0 0.0
    %2927 = vmatpush1.msra.mxu0 0.0
    %2928 = vmatprep.subr.mxu0 0.0
    %2929 = vmatpush1.msra.mxu0 0.0
    %2930 = vmatprep.subr.mxu0 0.0
    %2931 = vmatpush1.msra.mxu0 0.0
    %2932 = vmatprep.subr.mxu0 0.0
    %2933 = vmatpush1.msra.mxu0 0.0
    %2934 = vmatprep.subr.mxu0 0.0
    %2935 = vmatpush1.msra.mxu0 0.0
    %2936 = vmatprep.subr.mxu0 0.0
    %2937 = vmatpush1.msra.mxu0 0.0
    %2938 = vmatprep.subr.mxu0 0.0
    %2939 = vmatpush1.msra.mxu0 0.0
    %2940 = vmatprep.subr.mxu0 0.0
    %2941 = vmatpush1.msra.mxu0 0.0
    %2942 = vmatprep.subr.mxu0 0.0
    %2943 = vmatpush1.msra.mxu0 0.0
    %2944 = vmatprep.subr.mxu0 0.0
    %2945 = vmatpush1.msra.mxu0 0.0
    %2946 = vmatprep.subr.mxu0 0.0
    %2947 = vmatpush1.msra.mxu0 0.0
    %2948 = vmatprep.subr.mxu0 0.0
    %2949 = vmatpush1.msra.mxu0 0.0
    %2950 = vmatprep.subr.mxu0 0.0
    %2951 = vmatpush1.msra.mxu0 0.0
    %2952 = vmatprep.subr.mxu0 0.0
    %2953 = vmatpush1.msra.mxu0 0.0
    %2954 = vmatprep.subr.mxu0 0.0
    %2955 = vmatpush1.msra.mxu0 0.0
    %2956 = vmatprep.subr.mxu0 0.0
    %2957 = vmatpush1.msra.mxu0 0.0
    %2958 = vmatprep.subr.mxu0 0.0
    %2959 = vmatpush1.msra.mxu0 0.0
    %2960 = vmatprep.mubr.f32.mxu0 0.0
    %2961 = vmatmul.mubr.f32.gmra.mrb[0].mxu0 %v2894
    %v2962 = vpop.f32.mrb[0].mxu0
    %v2963 = vadd.f32 0.0, %v2962
    %v2964 = vpop.f32.mrb[0].mxu0
    %v2965 = vadd.f32 0.0, %v2964
    %2966 = vdwg.mxu0
    %v2967 = vadd.f32 %v1911, %v2963
    %v2968 = vadd.f32 %v2339, %v2965
    %v2969 = vxor.u32 %v2967, 2147483648
    %v2970 = vmul.f32 %v2969, 1.442695
    %v2971 = vpow.pop %v2970
    %v2972 = vadd.f32 %v2971, 1.0
    %v2973 = vrcp.pop %v2972
    %v2974 = vmul.f32 1.0, %v2973
    %v2975 = vtanh.pop %v2967
    %v2976 = vxor.u32 %v2968, 2147483648
    %v2977 = vmul.f32 %v2976, 1.442695
    %v2978 = vpow.pop %v2977
    %v2979 = vadd.f32 %v2978, 1.0
    %v2980 = vrcp.pop %v2979
    %v2981 = vmul.f32 1.0, %v2980
    %v2982 = vtanh.pop %v2968
    %v2983 = vmul.f32 %v2974, %v2867
    %2985 = vrot.lane.b32.xlu0 %v2975, 64
    %v2986 = vpop.permute.xlu0 %2985
    %v2988 = vmul.f32 %v2974, %v2986
    %2990 = vrot.lane.b32.xlu0 %v2988, 32
    %v2991 = vpop.permute.xlu0 %2990
    %v2993 = vadd.f32 %v2983, %v2991
    %v2994 = vtanh.pop %v2993
    %2996 = vrot.lane.b32.xlu0 %v2994, 64
    %v2997 = vpop.permute.xlu0 %2996
    %v2999 = vmul.f32 %v2974, %v2997
    %v3000 = vmul.f32 %v2981, %v2869
    %3002 = vrot.lane.b32.xlu0 %v2982, 64
    %v3003 = vpop.permute.xlu0 %3002
    %v3005 = vmul.f32 %v2981, %v3003
    %3007 = vrot.lane.b32.xlu0 %v3005, 32
    %v3008 = vpop.permute.xlu0 %3007
    %v3010 = vadd.f32 %v3000, %v3008
    %v3011 = vtanh.pop %v3010
    %3013 = vrot.lane.b32.xlu0 %v3011, 64
    %v3014 = vpop.permute.xlu0 %3013
    %v3016 = vmul.f32 %v2981, %v3014
    %s3017 = scalar_lea.vmem %s0, 4
    %v3018 = vld [vmem:[%s3017] sm:$0x3]
    %3020 = vset.pattern.permute.xlu0 0
    %3021 = vperm.xlu0 %3020, %v3018
    %v3022 = vpop.permute.xlu0 %3021
    %vm3024 = vcmp.gt.f32.partialorder %v3022, 0.5
    %s3025 = scalar_lea.vmem %s0, 10
    %v3026 = vld [vmem:[%s3025] sm:$0x3]
    %3028 = vset.pattern.permute.xlu0 0
    %3029 = vperm.xlu0 %3028, %v3026
    %v3030 = vpop.permute.xlu0 %3029
    %vm3032 = vcmp.gt.f32.partialorder %v3030, 0.5
    %v3033 = vsel %vm3024, %v2999, %v2866
    %v3034 = vsel %vm3024, %v2993, %v2867
    %v3035 = vsel %vm3032, %v3016, %v2868
    %v3036 = vsel %vm3032, %v3010, %v2869
    %3038 = vrot.lane.b32.xlu0 %v3033, 32
    %v3039 = vpop.permute.xlu0 %3038
    %3042 = vrot.lane.b32.xlu0 %v3035, 64
    %v3043 = vpop.permute.xlu0 %3042
    %v3045 = vsel %vm2716, %v3039, %v3043
    %v3046 = vsel %vm3024, %v2999, 0.0
    %3048 = vrot.lane.b32.xlu0 %v3046, 32
    %v3049 = vpop.permute.xlu0 %3048
    %s3051 = scalar_lea.vmem [#allocation2], 4
    %3052 = vst.msk [vmem:[%s3051] sm:$0x3] %vm2718, %v3049
    %v3053 = vsel %vm3032, %v3016, 0.0
    %3055 = vrot.lane.b32.xlu0 %v3053, 32
    %v3056 = vpop.permute.xlu0 %3055
    %s3058 = scalar_lea.vmem [#allocation3], 10
    %3059 = vst.msk [vmem:[%s3058] sm:$0x3] %vm2718, %v3056
    %v3061 = vsel %vm2725, %v3045, 0
    %3063 = vmatprep.subr.mxu0 %v2626
    %3064 = vmatpush1.msra.mxu0 %v2625
    %3065 = vmatprep.subr.mxu0 %v2628
    %3066 = vmatpush1.msra.mxu0 %v2627
    %3067 = vmatprep.subr.mxu0 %v2630
    %3068 = vmatpush1.msra.mxu0 %v2629
    %3069 = vmatprep.subr.mxu0 %v2632
    %3070 = vmatpush1.msra.mxu0 %v2631
    %3071 = vmatprep.subr.mxu0 %v2634
    %3072 = vmatpush1.msra.mxu0 %v2633
    %3073 = vmatprep.subr.mxu0 %v2636
    %3074 = vmatpush1.msra.mxu0 %v2635
    %3075 = vmatprep.subr.mxu0 %v2638
    %3076 = vmatpush1.msra.mxu0 %v2637
    %3077 = vmatprep.subr.mxu0 %v2640
    %3078 = vmatpush1.msra.mxu0 %v2639
    %3079 = vmatprep.subr.mxu0 0.0
    %3080 = vmatpush1.msra.mxu0 0.0
    %3081 = vmatprep.subr.mxu0 0.0
    %3082 = vmatpush1.msra.mxu0 0.0
    %3083 = vmatprep.subr.mxu0 0.0
    %3084 = vmatpush1.msra.mxu0 0.0
    %3085 = vmatprep.subr.mxu0 0.0
    %3086 = vmatpush1.msra.mxu0 0.0
    %3087 = vmatprep.subr.mxu0 0.0
    %3088 = vmatpush1.msra.mxu0 0.0
    %3089 = vmatprep.subr.mxu0 0.0
    %3090 = vmatpush1.msra.mxu0 0.0
    %3091 = vmatprep.subr.mxu0 0.0
    %3092 = vmatpush1.msra.mxu0 0.0
    %3093 = vmatprep.subr.mxu0 0.0
    %3094 = vmatpush1.msra.mxu0 0.0
    %3095 = vmatprep.subr.mxu0 0.0
    %3096 = vmatpush1.msra.mxu0 0.0
    %3097 = vmatprep.subr.mxu0 0.0
    %3098 = vmatpush1.msra.mxu0 0.0
    %3099 = vmatprep.subr.mxu0 0.0
    %3100 = vmatpush1.msra.mxu0 0.0
    %3101 = vmatprep.subr.mxu0 0.0
    %3102 = vmatpush1.msra.mxu0 0.0
    %3103 = vmatprep.subr.mxu0 0.0
    %3104 = vmatpush1.msra.mxu0 0.0
    %3105 = vmatprep.subr.mxu0 0.0
    %3106 = vmatpush1.msra.mxu0 0.0
    %3107 = vmatprep.subr.mxu0 0.0
    %3108 = vmatpush1.msra.mxu0 0.0
    %3109 = vmatprep.subr.mxu0 0.0
    %3110 = vmatpush1.msra.mxu0 0.0
    %3111 = vmatprep.subr.mxu0 0.0
    %3112 = vmatpush1.msra.mxu0 0.0
    %3113 = vmatprep.subr.mxu0 0.0
    %3114 = vmatpush1.msra.mxu0 0.0
    %3115 = vmatprep.subr.mxu0 0.0
    %3116 = vmatpush1.msra.mxu0 0.0
    %3117 = vmatprep.subr.mxu0 0.0
    %3118 = vmatpush1.msra.mxu0 0.0
    %3119 = vmatprep.subr.mxu0 0.0
    %3120 = vmatpush1.msra.mxu0 0.0
    %3121 = vmatprep.subr.mxu0 0.0
    %3122 = vmatpush1.msra.mxu0 0.0
    %3123 = vmatprep.subr.mxu0 0.0
    %3124 = vmatpush1.msra.mxu0 0.0
    %3125 = vmatprep.subr.mxu0 0.0
    %3126 = vmatpush1.msra.mxu0 0.0
    %3127 = vmatprep.mubr.f32.mxu0 0.0
    %3128 = vmatmul.mubr.f32.gmra.mrb[0].mxu0 %v3061
    %v3129 = vpop.f32.mrb[0].mxu0
    %v3130 = vadd.f32 0.0, %v3129
    %v3131 = vpop.f32.mrb[0].mxu0
    %v3132 = vadd.f32 0.0, %v3131
    %3133 = vdwg.mxu0
    %v3134 = vadd.f32 %v2053, %v3130
    %v3135 = vadd.f32 %v2197, %v3132
    %v3136 = vxor.u32 %v3134, 2147483648
    %v3137 = vmul.f32 %v3136, 1.442695
    %v3138 = vpow.pop %v3137
    %v3139 = vadd.f32 %v3138, 1.0
    %v3140 = vrcp.pop %v3139
    %v3141 = vmul.f32 1.0, %v3140
    %v3142 = vtanh.pop %v3134
    %v3143 = vxor.u32 %v3135, 2147483648
    %v3144 = vmul.f32 %v3143, 1.442695
    %v3145 = vpow.pop %v3144
    %v3146 = vadd.f32 %v3145, 1.0
    %v3147 = vrcp.pop %v3146
    %v3148 = vmul.f32 1.0, %v3147
    %v3149 = vtanh.pop %v3135
    %v3150 = vmul.f32 %v3141, %v3034
    %3152 = vrot.lane.b32.xlu0 %v3142, 64
    %v3153 = vpop.permute.xlu0 %3152
    %v3155 = vmul.f32 %v3141, %v3153
    %3157 = vrot.lane.b32.xlu0 %v3155, 32
    %v3158 = vpop.permute.xlu0 %3157
    %v3160 = vadd.f32 %v3150, %v3158
    %v3161 = vtanh.pop %v3160
    %3163 = vrot.lane.b32.xlu0 %v3161, 64
    %v3164 = vpop.permute.xlu0 %3163
    %v3166 = vmul.f32 %v3141, %v3164
    %v3167 = vmul.f32 %v3148, %v3036
    %3169 = vrot.lane.b32.xlu0 %v3149, 64
    %v3170 = vpop.permute.xlu0 %3169
    %v3172 = vmul.f32 %v3148, %v3170
    %3174 = vrot.lane.b32.xlu0 %v3172, 32
    %v3175 = vpop.permute.xlu0 %3174
    %v3177 = vadd.f32 %v3167, %v3175
    %v3178 = vtanh.pop %v3177
    %3180 = vrot.lane.b32.xlu0 %v3178, 64
    %v3181 = vpop.permute.xlu0 %3180
    %v3183 = vmul.f32 %v3148, %v3181
    %s3184 = scalar_lea.vmem %s0, 6
    %v3185 = vld [vmem:[%s3184] sm:$0x3]
    %3187 = vset.pattern.permute.xlu0 0
    %3188 = vperm.xlu0 %3187, %v3185
    %v3189 = vpop.permute.xlu0 %3188
    %vm3191 = vcmp.gt.f32.partialorder %v3189, 0.5
    %s3192 = scalar_lea.vmem %s0, 8
    %v3193 = vld [vmem:[%s3192] sm:$0x3]
    %3195 = vset.pattern.permute.xlu0 0
    %3196 = vperm.xlu0 %3195, %v3193
    %v3197 = vpop.permute.xlu0 %3196
    %vm3199 = vcmp.gt.f32.partialorder %v3197, 0.5
    %v3200 = vsel %vm3191, %v3166, %v3033
    %v3201 = vsel %vm3191, %v3160, %v3034
    %v3202 = vsel %vm3199, %v3183, %v3035
    %v3203 = vsel %vm3199, %v3177, %v3036
    %3205 = vrot.lane.b32.xlu0 %v3200, 32
    %v3206 = vpop.permute.xlu0 %3205
    %3209 = vrot.lane.b32.xlu0 %v3202, 64
    %v3210 = vpop.permute.xlu0 %3209
    %v3212 = vsel %vm2716, %v3206, %v3210
    %v3213 = vsel %vm3191, %v3166, 0.0
    %3215 = vrot.lane.b32.xlu0 %v3213, 32
    %v3216 = vpop.permute.xlu0 %3215
    %s3218 = scalar_lea.vmem [#allocation2], 6
    %3219 = vst.msk [vmem:[%s3218] sm:$0x3] %vm2718, %v3216
    %v3220 = vsel %vm3199, %v3183, 0.0
    %3222 = vrot.lane.b32.xlu0 %v3220, 32
    %v3223 = vpop.permute.xlu0 %3222
    %s3225 = scalar_lea.vmem [#allocation3], 8
    %3226 = vst.msk [vmem:[%s3225] sm:$0x3] %vm2718, %v3223
    %v3228 = vsel %vm2725, %v3212, 0
    %3230 = vmatprep.subr.mxu0 %v2626
    %3231 = vmatpush1.msra.mxu0 %v2625
    %3232 = vmatprep.subr.mxu0 %v2628
    %3233 = vmatpush1.msra.mxu0 %v2627
    %3234 = vmatprep.subr.mxu0 %v2630
    %3235 = vmatpush1.msra.mxu0 %v2629
    %3236 = vmatprep.subr.mxu0 %v2632
    %3237 = vmatpush1.msra.mxu0 %v2631
    %3238 = vmatprep.subr.mxu0 %v2634
    %3239 = vmatpush1.msra.mxu0 %v2633
    %3240 = vmatprep.subr.mxu0 %v2636
    %3241 = vmatpush1.msra.mxu0 %v2635
    %3242 = vmatprep.subr.mxu0 %v2638
    %3243 = vmatpush1.msra.mxu0 %v2637
    %3244 = vmatprep.subr.mxu0 %v2640
    %3245 = vmatpush1.msra.mxu0 %v2639
    %3246 = vmatprep.subr.mxu0 0.0
    %3247 = vmatpush1.msra.mxu0 0.0
    %3248 = vmatprep.subr.mxu0 0.0
    %3249 = vmatpush1.msra.mxu0 0.0
    %3250 = vmatprep.subr.mxu0 0.0
    %3251 = vmatpush1.msra.mxu0 0.0
    %3252 = vmatprep.subr.mxu0 0.0
    %3253 = vmatpush1.msra.mxu0 0.0
    %3254 = vmatprep.subr.mxu0 0.0
    %3255 = vmatpush1.msra.mxu0 0.0
    %3256 = vmatprep.subr.mxu0 0.0
    %3257 = vmatpush1.msra.mxu0 0.0
    %3258 = vmatprep.subr.mxu0 0.0
    %3259 = vmatpush1.msra.mxu0 0.0
    %3260 = vmatprep.subr.mxu0 0.0
    %3261 = vmatpush1.msra.mxu0 0.0
    %3262 = vmatprep.subr.mxu0 0.0
    %3263 = vmatpush1.msra.mxu0 0.0
    %3264 = vmatprep.subr.mxu0 0.0
    %3265 = vmatpush1.msra.mxu0 0.0
    %3266 = vmatprep.subr.mxu0 0.0
    %3267 = vmatpush1.msra.mxu0 0.0
    %3268 = vmatprep.subr.mxu0 0.0
    %3269 = vmatpush1.msra.mxu0 0.0
    %3270 = vmatprep.subr.mxu0 0.0
    %3271 = vmatpush1.msra.mxu0 0.0
    %3272 = vmatprep.subr.mxu0 0.0
    %3273 = vmatpush1.msra.mxu0 0.0
    %3274 = vmatprep.subr.mxu0 0.0
    %3275 = vmatpush1.msra.mxu0 0.0
    %3276 = vmatprep.subr.mxu0 0.0
    %3277 = vmatpush1.msra.mxu0 0.0
    %3278 = vmatprep.subr.mxu0 0.0
    %3279 = vmatpush1.msra.mxu0 0.0
    %3280 = vmatprep.subr.mxu0 0.0
    %3281 = vmatpush1.msra.mxu0 0.0
    %3282 = vmatprep.subr.mxu0 0.0
    %3283 = vmatpush1.msra.mxu0 0.0
    %3284 = vmatprep.subr.mxu0 0.0
    %3285 = vmatpush1.msra.mxu0 0.0
    %3286 = vmatprep.subr.mxu0 0.0
    %3287 = vmatpush1.msra.mxu0 0.0
    %3288 = vmatprep.subr.mxu0 0.0
    %3289 = vmatpush1.msra.mxu0 0.0
    %3290 = vmatprep.subr.mxu0 0.0
    %3291 = vmatpush1.msra.mxu0 0.0
    %3292 = vmatprep.subr.mxu0 0.0
    %3293 = vmatpush1.msra.mxu0 0.0
    %3294 = vmatprep.mubr.f32.mxu0 0.0
    %3295 = vmatmul.mubr.f32.gmra.mrb[0].mxu0 %v3228
    %v3296 = vpop.f32.mrb[0].mxu0
    %v3297 = vadd.f32 0.0, %v3296
    %v3298 = vpop.f32.mrb[0].mxu0
    %v3299 = vadd.f32 0.0, %v3298
    %3300 = vdwg.mxu0
    %v3301 = vadd.f32 %v2195, %v3297
    %v3302 = vadd.f32 %v2055, %v3299
    %v3303 = vxor.u32 %v3301, 2147483648
    %v3304 = vmul.f32 %v3303, 1.442695
    %v3305 = vpow.pop %v3304
    %v3306 = vadd.f32 %v3305, 1.0
    %v3307 = vrcp.pop %v3306
    %v3308 = vmul.f32 1.0, %v3307
    %v3309 = vtanh.pop %v3301
    %v3310 = vxor.u32 %v3302, 2147483648
    %v3311 = vmul.f32 %v3310, 1.442695
    %v3312 = vpow.pop %v3311
    %v3313 = vadd.f32 %v3312, 1.0
    %v3314 = vrcp.pop %v3313
    %v3315 = vmul.f32 1.0, %v3314
    %v3316 = vtanh.pop %v3302
    %v3317 = vmul.f32 %v3308, %v3201
    %3319 = vrot.lane.b32.xlu0 %v3309, 64
    %v3320 = vpop.permute.xlu0 %3319
    %v3322 = vmul.f32 %v3308, %v3320
    %3324 = vrot.lane.b32.xlu0 %v3322, 32
    %v3325 = vpop.permute.xlu0 %3324
    %v3327 = vadd.f32 %v3317, %v3325
    %v3328 = vtanh.pop %v3327
    %3330 = vrot.lane.b32.xlu0 %v3328, 64
    %v3331 = vpop.permute.xlu0 %3330
    %v3333 = vmul.f32 %v3308, %v3331
    %v3334 = vmul.f32 %v3315, %v3203
    %3336 = vrot.lane.b32.xlu0 %v3316, 64
    %v3337 = vpop.permute.xlu0 %3336
    %v3339 = vmul.f32 %v3315, %v3337
    %3341 = vrot.lane.b32.xlu0 %v3339, 32
    %v3342 = vpop.permute.xlu0 %3341
    %v3344 = vadd.f32 %v3334, %v3342
    %v3345 = vtanh.pop %v3344
    %3347 = vrot.lane.b32.xlu0 %v3345, 64
    %v3348 = vpop.permute.xlu0 %3347
    %v3350 = vmul.f32 %v3315, %v3348
    %v3351 = vld [vmem:[%s3192] sm:$0x3]
    %3353 = vset.pattern.permute.xlu0 0
    %3354 = vperm.xlu0 %3353, %v3351
    %v3355 = vpop.permute.xlu0 %3354
    %vm3357 = vcmp.gt.f32.partialorder %v3355, 0.5
    %v3358 = vld [vmem:[%s3184] sm:$0x3]
    %3360 = vset.pattern.permute.xlu0 0
    %3361 = vperm.xlu0 %3360, %v3358
    %v3362 = vpop.permute.xlu0 %3361
    %vm3364 = vcmp.gt.f32.partialorder %v3362, 0.5
    %v3365 = vsel %vm3357, %v3333, %v3200
    %v3366 = vsel %vm3357, %v3327, %v3201
    %v3367 = vsel %vm3364, %v3350, %v3202
    %v3368 = vsel %vm3364, %v3344, %v3203
    %3370 = vrot.lane.b32.xlu0 %v3365, 32
    %v3371 = vpop.permute.xlu0 %3370
    %3374 = vrot.lane.b32.xlu0 %v3367, 64
    %v3375 = vpop.permute.xlu0 %3374
    %v3377 = vsel %vm2716, %v3371, %v3375
    %v3378 = vsel %vm3357, %v3333, 0.0
    %3380 = vrot.lane.b32.xlu0 %v3378, 32
    %v3381 = vpop.permute.xlu0 %3380
    %s3383 = scalar_lea.vmem [#allocation2], 8
    %3384 = vst.msk [vmem:[%s3383] sm:$0x3] %vm2718, %v3381
    %v3385 = vsel %vm3364, %v3350, 0.0
    %3387 = vrot.lane.b32.xlu0 %v3385, 32
    %v3388 = vpop.permute.xlu0 %3387
    %s3390 = scalar_lea.vmem [#allocation3], 6
    %3391 = vst.msk [vmem:[%s3390] sm:$0x3] %vm2718, %v3388
    %v3393 = vsel %vm2725, %v3377, 0
    %3395 = vmatprep.subr.mxu0 %v2626
    %3396 = vmatpush1.msra.mxu0 %v2625
    %3397 = vmatprep.subr.mxu0 %v2628
    %3398 = vmatpush1.msra.mxu0 %v2627
    %3399 = vmatprep.subr.mxu0 %v2630
    %3400 = vmatpush1.msra.mxu0 %v2629
    %3401 = vmatprep.subr.mxu0 %v2632
    %3402 = vmatpush1.msra.mxu0 %v2631
    %3403 = vmatprep.subr.mxu0 %v2634
    %3404 = vmatpush1.msra.mxu0 %v2633
    %3405 = vmatprep.subr.mxu0 %v2636
    %3406 = vmatpush1.msra.mxu0 %v2635
    %3407 = vmatprep.subr.mxu0 %v2638
    %3408 = vmatpush1.msra.mxu0 %v2637
    %3409 = vmatprep.subr.mxu0 %v2640
    %3410 = vmatpush1.msra.mxu0 %v2639
    %3411 = vmatprep.subr.mxu0 0.0
    %3412 = vmatpush1.msra.mxu0 0.0
    %3413 = vmatprep.subr.mxu0 0.0
    %3414 = vmatpush1.msra.mxu0 0.0
    %3415 = vmatprep.subr.mxu0 0.0
    %3416 = vmatpush1.msra.mxu0 0.0
    %3417 = vmatprep.subr.mxu0 0.0
    %3418 = vmatpush1.msra.mxu0 0.0
    %3419 = vmatprep.subr.mxu0 0.0
    %3420 = vmatpush1.msra.mxu0 0.0
    %3421 = vmatprep.subr.mxu0 0.0
    %3422 = vmatpush1.msra.mxu0 0.0
    %3423 = vmatprep.subr.mxu0 0.0
    %3424 = vmatpush1.msra.mxu0 0.0
    %3425 = vmatprep.subr.mxu0 0.0
    %3426 = vmatpush1.msra.mxu0 0.0
    %3427 = vmatprep.subr.mxu0 0.0
    %3428 = vmatpush1.msra.mxu0 0.0
    %3429 = vmatprep.subr.mxu0 0.0
    %3430 = vmatpush1.msra.mxu0 0.0
    %3431 = vmatprep.subr.mxu0 0.0
    %3432 = vmatpush1.msra.mxu0 0.0
    %3433 = vmatprep.subr.mxu0 0.0
    %3434 = vmatpush1.msra.mxu0 0.0
    %3435 = vmatprep.subr.mxu0 0.0
    %3436 = vmatpush1.msra.mxu0 0.0
    %3437 = vmatprep.subr.mxu0 0.0
    %3438 = vmatpush1.msra.mxu0 0.0
    %3439 = vmatprep.subr.mxu0 0.0
    %3440 = vmatpush1.msra.mxu0 0.0
    %3441 = vmatprep.subr.mxu0 0.0
    %3442 = vmatpush1.msra.mxu0 0.0
    %3443 = vmatprep.subr.mxu0 0.0
    %3444 = vmatpush1.msra.mxu0 0.0
    %3445 = vmatprep.subr.mxu0 0.0
    %3446 = vmatpush1.msra.mxu0 0.0
    %3447 = vmatprep.subr.mxu0 0.0
    %3448 = vmatpush1.msra.mxu0 0.0
    %3449 = vmatprep.subr.mxu0 0.0
    %3450 = vmatpush1.msra.mxu0 0.0
    %3451 = vmatprep.subr.mxu0 0.0
    %3452 = vmatpush1.msra.mxu0 0.0
    %3453 = vmatprep.subr.mxu0 0.0
    %3454 = vmatpush1.msra.mxu0 0.0
    %3455 = vmatprep.subr.mxu0 0.0
    %3456 = vmatpush1.msra.mxu0 0.0
    %3457 = vmatprep.subr.mxu0 0.0
    %3458 = vmatpush1.msra.mxu0 0.0
    %3459 = vmatprep.mubr.f32.mxu0 0.0
    %3460 = vmatmul.mubr.f32.gmra.mrb[0].mxu0 %v3393
    %v3461 = vpop.f32.mrb[0].mxu0
    %v3462 = vadd.f32 0.0, %v3461
    %v3463 = vpop.f32.mrb[0].mxu0
    %v3464 = vadd.f32 0.0, %v3463
    %3465 = vdwg.mxu0
    %v3466 = vadd.f32 %v2337, %v3462
    %v3467 = vadd.f32 %v1913, %v3464
    %v3468 = vxor.u32 %v3466, 2147483648
    %v3469 = vmul.f32 %v3468, 1.442695
    %v3470 = vpow.pop %v3469
    %v3471 = vadd.f32 %v3470, 1.0
    %v3472 = vrcp.pop %v3471
    %v3473 = vmul.f32 1.0, %v3472
    %v3474 = vtanh.pop %v3466
    %v3475 = vxor.u32 %v3467, 2147483648
    %v3476 = vmul.f32 %v3475, 1.442695
    %v3477 = vpow.pop %v3476
    %v3478 = vadd.f32 %v3477, 1.0
    %v3479 = vrcp.pop %v3478
    %v3480 = vmul.f32 1.0, %v3479
    %v3481 = vtanh.pop %v3467
    %v3482 = vmul.f32 %v3473, %v3366
    %3484 = vrot.lane.b32.xlu0 %v3474, 64
    %v3485 = vpop.permute.xlu0 %3484
    %v3487 = vmul.f32 %v3473, %v3485
    %3489 = vrot.lane.b32.xlu0 %v3487, 32
    %v3490 = vpop.permute.xlu0 %3489
    %v3492 = vadd.f32 %v3482, %v3490
    %v3493 = vtanh.pop %v3492
    %3495 = vrot.lane.b32.xlu0 %v3493, 64
    %v3496 = vpop.permute.xlu0 %3495
    %v3498 = vmul.f32 %v3473, %v3496
    %v3499 = vmul.f32 %v3480, %v3368
    %3501 = vrot.lane.b32.xlu0 %v3481, 64
    %v3502 = vpop.permute.xlu0 %3501
    %v3504 = vmul.f32 %v3480, %v3502
    %3506 = vrot.lane.b32.xlu0 %v3504, 32
    %v3507 = vpop.permute.xlu0 %3506
    %v3509 = vadd.f32 %v3499, %v3507
    %v3510 = vtanh.pop %v3509
    %3512 = vrot.lane.b32.xlu0 %v3510, 64
    %v3513 = vpop.permute.xlu0 %3512
    %v3515 = vmul.f32 %v3480, %v3513
    %v3516 = vld [vmem:[%s3025] sm:$0x3]
    %3518 = vset.pattern.permute.xlu0 0
    %3519 = vperm.xlu0 %3518, %v3516
    %v3520 = vpop.permute.xlu0 %3519
    %vm3522 = vcmp.gt.f32.partialorder %v3520, 0.5
    %v3523 = vld [vmem:[%s3017] sm:$0x3]
    %3525 = vset.pattern.permute.xlu0 0
    %3526 = vperm.xlu0 %3525, %v3523
    %v3527 = vpop.permute.xlu0 %3526
    %vm3529 = vcmp.gt.f32.partialorder %v3527, 0.5
    %v3530 = vsel %vm3522, %v3498, %v3365
    %v3531 = vsel %vm3522, %v3492, %v3366
    %v3532 = vsel %vm3529, %v3515, %v3367
    %v3533 = vsel %vm3529, %v3509, %v3368
    %3535 = vrot.lane.b32.xlu0 %v3530, 32
    %v3536 = vpop.permute.xlu0 %3535
    %3539 = vrot.lane.b32.xlu0 %v3532, 64
    %v3540 = vpop.permute.xlu0 %3539
    %v3542 = vsel %vm2716, %v3536, %v3540
    %v3543 = vsel %vm3522, %v3498, 0.0
    %3545 = vrot.lane.b32.xlu0 %v3543, 32
    %v3546 = vpop.permute.xlu0 %3545
    %s3548 = scalar_lea.vmem [#allocation2], 10
    %3549 = vst.msk [vmem:[%s3548] sm:$0x3] %vm2718, %v3546
    %v3550 = vsel %vm3529, %v3515, 0.0
    %3552 = vrot.lane.b32.xlu0 %v3550, 32
    %v3553 = vpop.permute.xlu0 %3552
    %s3555 = scalar_lea.vmem [#allocation3], 4
    %3556 = vst.msk [vmem:[%s3555] sm:$0x3] %vm2718, %v3553
    %v3558 = vsel %vm2725, %v3542, 0
    %3560 = vmatprep.subr.mxu0 %v2626
    %3561 = vmatpush1.msra.mxu0 %v2625
    %3562 = vmatprep.subr.mxu0 %v2628
    %3563 = vmatpush1.msra.mxu0 %v2627
    %3564 = vmatprep.subr.mxu0 %v2630
    %3565 = vmatpush1.msra.mxu0 %v2629
    %3566 = vmatprep.subr.mxu0 %v2632
    %3567 = vmatpush1.msra.mxu0 %v2631
    %3568 = vmatprep.subr.mxu0 %v2634
    %3569 = vmatpush1.msra.mxu0 %v2633
    %3570 = vmatprep.subr.mxu0 %v2636
    %3571 = vmatpush1.msra.mxu0 %v2635
    %3572 = vmatprep.subr.mxu0 %v2638
    %3573 = vmatpush1.msra.mxu0 %v2637
    %3574 = vmatprep.subr.mxu0 %v2640
    %3575 = vmatpush1.msra.mxu0 %v2639
    %3576 = vmatprep.subr.mxu0 0.0
    %3577 = vmatpush1.msra.mxu0 0.0
    %3578 = vmatprep.subr.mxu0 0.0
    %3579 = vmatpush1.msra.mxu0 0.0
    %3580 = vmatprep.subr.mxu0 0.0
    %3581 = vmatpush1.msra.mxu0 0.0
    %3582 = vmatprep.subr.mxu0 0.0
    %3583 = vmatpush1.msra.mxu0 0.0
    %3584 = vmatprep.subr.mxu0 0.0
    %3585 = vmatpush1.msra.mxu0 0.0
    %3586 = vmatprep.subr.mxu0 0.0
    %3587 = vmatpush1.msra.mxu0 0.0
    %3588 = vmatprep.subr.mxu0 0.0
    %3589 = vmatpush1.msra.mxu0 0.0
    %3590 = vmatprep.subr.mxu0 0.0
    %3591 = vmatpush1.msra.mxu0 0.0
    %3592 = vmatprep.subr.mxu0 0.0
    %3593 = vmatpush1.msra.mxu0 0.0
    %3594 = vmatprep.subr.mxu0 0.0
    %3595 = vmatpush1.msra.mxu0 0.0
    %3596 = vmatprep.subr.mxu0 0.0
    %3597 = vmatpush1.msra.mxu0 0.0
    %3598 = vmatprep.subr.mxu0 0.0
    %3599 = vmatpush1.msra.mxu0 0.0
    %3600 = vmatprep.subr.mxu0 0.0
    %3601 = vmatpush1.msra.mxu0 0.0
    %3602 = vmatprep.subr.mxu0 0.0
    %3603 = vmatpush1.msra.mxu0 0.0
    %3604 = vmatprep.subr.mxu0 0.0
    %3605 = vmatpush1.msra.mxu0 0.0
    %3606 = vmatprep.subr.mxu0 0.0
    %3607 = vmatpush1.msra.mxu0 0.0
    %3608 = vmatprep.subr.mxu0 0.0
    %3609 = vmatpush1.msra.mxu0 0.0
    %3610 = vmatprep.subr.mxu0 0.0
    %3611 = vmatpush1.msra.mxu0 0.0
    %3612 = vmatprep.subr.mxu0 0.0
    %3613 = vmatpush1.msra.mxu0 0.0
    %3614 = vmatprep.subr.mxu0 0.0
    %3615 = vmatpush1.msra.mxu0 0.0
    %3616 = vmatprep.subr.mxu0 0.0
    %3617 = vmatpush1.msra.mxu0 0.0
    %3618 = vmatprep.subr.mxu0 0.0
    %3619 = vmatpush1.msra.mxu0 0.0
    %3620 = vmatprep.subr.mxu0 0.0
    %3621 = vmatpush1.msra.mxu0 0.0
    %3622 = vmatprep.subr.mxu0 0.0
    %3623 = vmatpush1.msra.mxu0 0.0
    %3624 = vmatprep.mubr.f32.mxu0 0.0
    %3625 = vmatmul.mubr.f32.gmra.mrb[0].mxu0 %v3558
    %v3626 = vpop.f32.mrb[0].mxu0
    %v3627 = vadd.f32 0.0, %v3626
    %v3628 = vpop.f32.mrb[0].mxu0
    %v3629 = vadd.f32 0.0, %v3628
    %3630 = vdwg.mxu0
    %v3631 = vadd.f32 %v2479, %v3627
    %v3632 = vadd.f32 %v1771, %v3629
    %v3633 = vxor.u32 %v3631, 2147483648
    %v3634 = vmul.f32 %v3633, 1.442695
    %v3635 = vpow.pop %v3634
    %v3636 = vadd.f32 %v3635, 1.0
    %v3637 = vrcp.pop %v3636
    %v3638 = vmul.f32 1.0, %v3637
    %v3639 = vtanh.pop %v3631
    %v3640 = vxor.u32 %v3632, 2147483648
    %v3641 = vmul.f32 %v3640, 1.442695
    %v3642 = vpow.pop %v3641
    %v3643 = vadd.f32 %v3642, 1.0
    %v3644 = vrcp.pop %v3643
    %v3645 = vmul.f32 1.0, %v3644
    %v3646 = vtanh.pop %v3632
    %v3647 = vmul.f32 %v3638, %v3531
    %3649 = vrot.lane.b32.xlu0 %v3639, 64
    %v3650 = vpop.permute.xlu0 %3649
    %v3652 = vmul.f32 %v3638, %v3650
    %3654 = vrot.lane.b32.xlu0 %v3652, 32
    %v3655 = vpop.permute.xlu0 %3654
    %v3657 = vadd.f32 %v3647, %v3655
    %v3658 = vtanh.pop %v3657
    %3660 = vrot.lane.b32.xlu0 %v3658, 64
    %v3661 = vpop.permute.xlu0 %3660
    %v3663 = vmul.f32 %v3638, %v3661
    %v3664 = vmul.f32 %v3645, %v3533
    %3666 = vrot.lane.b32.xlu0 %v3646, 64
    %v3667 = vpop.permute.xlu0 %3666
    %v3669 = vmul.f32 %v3645, %v3667
    %3671 = vrot.lane.b32.xlu0 %v3669, 32
    %v3672 = vpop.permute.xlu0 %3671
    %v3674 = vadd.f32 %v3664, %v3672
    %v3675 = vtanh.pop %v3674
    %3677 = vrot.lane.b32.xlu0 %v3675, 64
    %v3678 = vpop.permute.xlu0 %3677
    %v3680 = vmul.f32 %v3645, %v3678
    %v3681 = vld [vmem:[%s2858] sm:$0x3]
    %3683 = vset.pattern.permute.xlu0 0
    %3684 = vperm.xlu0 %3683, %v3681
    %v3685 = vpop.permute.xlu0 %3684
    %vm3687 = vcmp.gt.f32.partialorder %v3685, 0.5
    %v3688 = vld [vmem:[%s2850] sm:$0x3]
    %3690 = vset.pattern.permute.xlu0 0
    %3691 = vperm.xlu0 %3690, %v3688
    %v3692 = vpop.permute.xlu0 %3691
    %vm3694 = vcmp.gt.f32.partialorder %v3692, 0.5
    %v3695 = vsel %vm3687, %v3663, %v3530
    %v3696 = vsel %vm3687, %v3657, %v3531
    %v3697 = vsel %vm3694, %v3680, %v3532
    %v3698 = vsel %vm3694, %v3674, %v3533
    %3700 = vrot.lane.b32.xlu0 %v3695, 32
    %v3701 = vpop.permute.xlu0 %3700
    %3704 = vrot.lane.b32.xlu0 %v3697, 64
    %v3705 = vpop.permute.xlu0 %3704
    %v3707 = vsel %vm2716, %v3701, %v3705
    %v3708 = vsel %vm3687, %v3663, 0.0
    %3710 = vrot.lane.b32.xlu0 %v3708, 32
    %v3711 = vpop.permute.xlu0 %3710
    %s3713 = scalar_lea.vmem [#allocation2], 12
    %3714 = vst.msk [vmem:[%s3713] sm:$0x3] %vm2718, %v3711
    %v3715 = vsel %vm3694, %v3680, 0.0
    %3717 = vrot.lane.b32.xlu0 %v3715, 32
    %v3718 = vpop.permute.xlu0 %3717
    %s3720 = scalar_lea.vmem [#allocation3], 2
    %3721 = vst.msk [vmem:[%s3720] sm:$0x3] %vm2718, %v3718
    %v3723 = vsel %vm2725, %v3707, 0
    %3725 = vmatprep.subr.mxu0 %v2626
    %3726 = vmatpush1.msra.mxu0 %v2625
    %3727 = vmatprep.subr.mxu0 %v2628
    %3728 = vmatpush1.msra.mxu0 %v2627
    %3729 = vmatprep.subr.mxu0 %v2630
    %3730 = vmatpush1.msra.mxu0 %v2629
    %3731 = vmatprep.subr.mxu0 %v2632
    %3732 = vmatpush1.msra.mxu0 %v2631
    %3733 = vmatprep.subr.mxu0 %v2634
    %3734 = vmatpush1.msra.mxu0 %v2633
    %3735 = vmatprep.subr.mxu0 %v2636
    %3736 = vmatpush1.msra.mxu0 %v2635
    %3737 = vmatprep.subr.mxu0 %v2638
    %3738 = vmatpush1.msra.mxu0 %v2637
    %3739 = vmatprep.subr.mxu0 %v2640
    %3740 = vmatpush1.msra.mxu0 %v2639
    %3741 = vmatprep.subr.mxu0 0.0
    %3742 = vmatpush1.msra.mxu0 0.0
    %3743 = vmatprep.subr.mxu0 0.0
    %3744 = vmatpush1.msra.mxu0 0.0
    %3745 = vmatprep.subr.mxu0 0.0
    %3746 = vmatpush1.msra.mxu0 0.0
    %3747 = vmatprep.subr.mxu0 0.0
    %3748 = vmatpush1.msra.mxu0 0.0
    %3749 = vmatprep.subr.mxu0 0.0
    %3750 = vmatpush1.msra.mxu0 0.0
    %3751 = vmatprep.subr.mxu0 0.0
    %3752 = vmatpush1.msra.mxu0 0.0
    %3753 = vmatprep.subr.mxu0 0.0
    %3754 = vmatpush1.msra.mxu0 0.0
    %3755 = vmatprep.subr.mxu0 0.0
    %3756 = vmatpush1.msra.mxu0 0.0
    %3757 = vmatprep.subr.mxu0 0.0
    %3758 = vmatpush1.msra.mxu0 0.0
    %3759 = vmatprep.subr.mxu0 0.0
    %3760 = vmatpush1.msra.mxu0 0.0
    %3761 = vmatprep.subr.mxu0 0.0
    %3762 = vmatpush1.msra.mxu0 0.0
    %3763 = vmatprep.subr.mxu0 0.0
    %3764 = vmatpush1.msra.mxu0 0.0
    %3765 = vmatprep.subr.mxu0 0.0
    %3766 = vmatpush1.msra.mxu0 0.0
    %3767 = vmatprep.subr.mxu0 0.0
    %3768 = vmatpush1.msra.mxu0 0.0
    %3769 = vmatprep.subr.mxu0 0.0
    %3770 = vmatpush1.msra.mxu0 0.0
    %3771 = vmatprep.subr.mxu0 0.0
    %3772 = vmatpush1.msra.mxu0 0.0
    %3773 = vmatprep.subr.mxu0 0.0
    %3774 = vmatpush1.msra.mxu0 0.0
    %3775 = vmatprep.subr.mxu0 0.0
    %3776 = vmatpush1.msra.mxu0 0.0
    %3777 = vmatprep.subr.mxu0 0.0
    %3778 = vmatpush1.msra.mxu0 0.0
    %3779 = vmatprep.subr.mxu0 0.0
    %3780 = vmatpush1.msra.mxu0 0.0
    %3781 = vmatprep.subr.mxu0 0.0
    %3782 = vmatpush1.msra.mxu0 0.0
    %3783 = vmatprep.subr.mxu0 0.0
    %3784 = vmatpush1.msra.mxu0 0.0
    %3785 = vmatprep.subr.mxu0 0.0
    %3786 = vmatpush1.msra.mxu0 0.0
    %3787 = vmatprep.subr.mxu0 0.0
    %3788 = vmatpush1.msra.mxu0 0.0
    %3789 = vmatprep.mubr.f32.mxu0 0.0
    %3790 = vmatmul.mubr.f32.gmra.mrb[0].mxu0 %v3723
    %v3791 = vpop.f32.mrb[0].mxu0
    %v3792 = vadd.f32 0.0, %v3791
    %v3793 = vpop.f32.mrb[0].mxu0
    %v3794 = vadd.f32 0.0, %v3793
    %3795 = vdwg.mxu0
    %v3796 = vadd.f32 %v2621, %v3792
    %v3797 = vadd.f32 %v1629, %v3794
    %v3798 = vxor.u32 %v3796, 2147483648
    %v3799 = vmul.f32 %v3798, 1.442695
    %v3800 = vpow.pop %v3799
    %v3801 = vadd.f32 %v3800, 1.0
    %v3802 = vrcp.pop %v3801
    %v3803 = vmul.f32 1.0, %v3802
    %v3804 = vtanh.pop %v3796
    %v3805 = vxor.u32 %v3797, 2147483648
    %v3806 = vmul.f32 %v3805, 1.442695
    %v3807 = vpow.pop %v3806
    %v3808 = vadd.f32 %v3807, 1.0
    %v3809 = vrcp.pop %v3808
    %v3810 = vmul.f32 1.0, %v3809
    %v3811 = vtanh.pop %v3797
    %v3812 = vmul.f32 %v3803, %v3696
    %3814 = vrot.lane.b32.xlu0 %v3804, 64
    %v3815 = vpop.permute.xlu0 %3814
    %v3817 = vmul.f32 %v3803, %v3815
    %3819 = vrot.lane.b32.xlu0 %v3817, 32
    %v3820 = vpop.permute.xlu0 %3819
    %v3822 = vadd.f32 %v3812, %v3820
    %v3823 = vtanh.pop %v3822
    %3825 = vrot.lane.b32.xlu0 %v3823, 64
    %v3826 = vpop.permute.xlu0 %3825
    %v3828 = vmul.f32 %v3803, %v3826
    %v3829 = vmul.f32 %v3810, %v3698
    %3831 = vrot.lane.b32.xlu0 %v3811, 64
    %v3832 = vpop.permute.xlu0 %3831
    %v3834 = vmul.f32 %v3810, %v3832
    %3836 = vrot.lane.b32.xlu0 %v3834, 32
    %v3837 = vpop.permute.xlu0 %3836
    %v3839 = vadd.f32 %v3829, %v3837
    %v3840 = vtanh.pop %v3839
    %3842 = vrot.lane.b32.xlu0 %v3840, 64
    %v3843 = vpop.permute.xlu0 %3842
    %v3845 = vmul.f32 %v3810, %v3843
    %v3846 = vld [vmem:[%s2696] sm:$0x3]
    %3848 = vset.pattern.permute.xlu0 0
    %3849 = vperm.xlu0 %3848, %v3846
    %v3850 = vpop.permute.xlu0 %3849
    %vm3852 = vcmp.gt.f32.partialorder %v3850, 0.5
    %v3853 = vld [vmem:[%s0] sm:$0x3]
    %3855 = vset.pattern.permute.xlu0 0
    %3856 = vperm.xlu0 %3855, %v3853
    %v3857 = vpop.permute.xlu0 %3856
    %vm3859 = vcmp.gt.f32.partialorder %v3857, 0.5
    %v3860 = vsel %vm3852, %v3828, 0.0
    %3862 = vrot.lane.b32.xlu0 %v3860, 32
    %v3863 = vpop.permute.xlu0 %3862
    %s3865 = scalar_lea.vmem [#allocation2], 14
    %3866 = vst.msk [vmem:[%s3865] sm:$0x3] %vm2718, %v3863
    %v3867 = vsel %vm3859, %v3845, 0.0
    %3869 = vrot.lane.b32.xlu0 %v3867, 32
    %v3870 = vpop.permute.xlu0 %3869
    %3872 = vst.msk [vmem:[#allocation3] sm:$0x3] %vm2718, %v3870
    %v3873 = vld [vmem:[#allocation2] sm:$0x3]
    %v3874 = vld [vmem:[#allocation2 + $0x2] sm:$0x3]
    %v3875 = vld [vmem:[#allocation2 + $0x4] sm:$0x3]
    %v3876 = vld [vmem:[#allocation2 + $0x6] sm:$0x3]
    %v3877 = vld [vmem:[#allocation2 + $0x8] sm:$0x3]
    %v3878 = vld [vmem:[#allocation2 + $0xa] sm:$0x3]
    %v3879 = vld [vmem:[#allocation2 + $0xc] sm:$0x3]
    %v3880 = vld [vmem:[#allocation2 + $0xe] sm:$0x3]
    %v3881 = vld [vmem:[#allocation3] sm:$0x3]
    %v3882 = vld [vmem:[#allocation3 + $0x2] sm:$0x3]
    %v3883 = vld [vmem:[#allocation3 + $0x4] sm:$0x3]
    %v3884 = vld [vmem:[#allocation3 + $0x6] sm:$0x3]
    %v3885 = vld [vmem:[#allocation3 + $0x8] sm:$0x3]
    %v3886 = vld [vmem:[#allocation3 + $0xa] sm:$0x3]
    %v3887 = vld [vmem:[#allocation3 + $0xc] sm:$0x3]
    %v3888 = vld [vmem:[#allocation3 + $0xe] sm:$0x3]
    %3897 = vrot.lane.b32.xlu0 %v3881, 32
    %v3898 = vpop.permute.xlu0 %3897
    %3899 = vrot.lane.b32.xlu0 %v3882, 32
    %v3900 = vpop.permute.xlu0 %3899
    %3901 = vrot.lane.b32.xlu0 %v3883, 32
    %v3902 = vpop.permute.xlu0 %3901
    %3903 = vrot.lane.b32.xlu0 %v3884, 32
    %v3904 = vpop.permute.xlu0 %3903
    %3905 = vrot.lane.b32.xlu0 %v3885, 32
    %v3906 = vpop.permute.xlu0 %3905
    %3907 = vrot.lane.b32.xlu0 %v3886, 32
    %v3908 = vpop.permute.xlu0 %3907
    %3909 = vrot.lane.b32.xlu0 %v3887, 32
    %v3910 = vpop.permute.xlu0 %3909
    %3911 = vrot.lane.b32.xlu0 %v3888, 32
    %v3912 = vpop.permute.xlu0 %3911
    %v3921 = vsel %vm2716, %v3873, %v3898
    %v3922 = vsel %vm2716, %v3874, %v3900
    %v3923 = vsel %vm2716, %v3875, %v3902
    %v3924 = vsel %vm2716, %v3876, %v3904
    %v3925 = vsel %vm2716, %v3877, %v3906
    %v3926 = vsel %vm2716, %v3878, %v3908
    %v3927 = vsel %vm2716, %v3879, %v3910
    %v3928 = vsel %vm2716, %v3880, %v3912
    %v3929 = vld [vmem:[#allocation15] sm:$0xff]
    %v3930 = vld [vmem:[#allocation15 + $0x8] sm:$0xff]
    %v3931 = vld [vmem:[#allocation15 + $0x10] sm:$0xff]
    %v3932 = vld [vmem:[#allocation15 + $0x18] sm:$0xff]
    %v3933 = vld [vmem:[#allocation15 + $0x20] sm:$0xff]
    %v3934 = vld [vmem:[#allocation15 + $0x28] sm:$0xff]
    %v3935 = vld [vmem:[#allocation15 + $0x30] sm:$0xff]
    %v3936 = vld [vmem:[#allocation15 + $0x38] sm:$0xff]
    %v3937 = vld [vmem:[#allocation16] sm:$0x1]
    %v3939 = vlaneseq
    %v3940 = vshrl.u32 %v3939, 7
    %v3941 = vsub.s32 0, %v3940
    %v3942 = vrot.slane %v3937, %v3941
    %v3952 = vcombine.low %v3921, %v3922
    %v3953 = vcombine.low %v3923, %v3924
    %v3955 = vunpack.c.l.s4 1983009808
    %v3956 = vunpack.c.0.s8 %v3955
    %v3957 = vlaneseq
    %v3958 = vshrl.u32 %v3957, 7
    %v3959 = vsub.s32 %v3956, %v3958
    %v3960 = vrot.slane %v3952, %v3959
    %v3962 = vunpack.c.l.s4 1983009808
    %v3963 = vunpack.c.0.s8 %v3962
    %v3964 = vlaneseq
    %v3965 = vshrl.u32 %v3964, 7
    %v3966 = vsub.s32 %v3963, %v3965
    %v3967 = vrot.slane %v3953, %v3966
    %v3968 = vcombine.low %v3960, %v3967
    %v3969 = vcombine.low %v3925, %v3926
    %v3970 = vcombine.low %v3927, %v3928
    %v3972 = vunpack.c.l.s4 1983009808
    %v3973 = vunpack.c.0.s8 %v3972
    %v3974 = vlaneseq
    %v3975 = vshrl.u32 %v3974, 7
    %v3976 = vsub.s32 %v3973, %v3975
    %v3977 = vrot.slane %v3969, %v3976
    %v3979 = vunpack.c.l.s4 1983009808
    %v3980 = vunpack.c.0.s8 %v3979
    %v3981 = vlaneseq
    %v3982 = vshrl.u32 %v3981, 7
    %v3983 = vsub.s32 %v3980, %v3982
    %v3984 = vrot.slane %v3970, %v3983
    %v3985 = vcombine.low %v3977, %v3984
    %v3986 = vsel %vm2725, %v3968, 0
    %v3988 = vsel %vm2725, %v3985, 0
    %3990 = vmatprep.subr.mxu0 0.0
    %3991 = vmatpush1.msra.mxu0 %v3929
    %3992 = vmatprep.subr.mxu0 0.0
    %3993 = vmatpush1.msra.mxu0 %v3930
    %3994 = vmatprep.subr.mxu0 0.0
    %3995 = vmatpush1.msra.mxu0 %v3931
    %3996 = vmatprep.subr.mxu0 0.0
    %3997 = vmatpush1.msra.mxu0 %v3932
    %3998 = vmatprep.subr.mxu0 0.0
    %3999 = vmatpush1.msra.mxu0 %v3933
    %4000 = vmatprep.subr.mxu0 0.0
    %4001 = vmatpush1.msra.mxu0 %v3934
    %4002 = vmatprep.subr.mxu0 0.0
    %4003 = vmatpush1.msra.mxu0 %v3935
    %4004 = vmatprep.subr.mxu0 0.0
    %4005 = vmatpush1.msra.mxu0 %v3936
    %4006 = vmatprep.subr.mxu0 0.0
    %4007 = vmatpush1.msra.mxu0 0.0
    %4008 = vmatprep.subr.mxu0 0.0
    %4009 = vmatpush1.msra.mxu0 0.0
    %4010 = vmatprep.subr.mxu0 0.0
    %4011 = vmatpush1.msra.mxu0 0.0
    %4012 = vmatprep.subr.mxu0 0.0
    %4013 = vmatpush1.msra.mxu0 0.0
    %4014 = vmatprep.subr.mxu0 0.0
    %4015 = vmatpush1.msra.mxu0 0.0
    %4016 = vmatprep.subr.mxu0 0.0
    %4017 = vmatpush1.msra.mxu0 0.0
    %4018 = vmatprep.subr.mxu0 0.0
    %4019 = vmatpush1.msra.mxu0 0.0
    %4020 = vmatprep.subr.mxu0 0.0
    %4021 = vmatpush1.msra.mxu0 0.0
    %4022 = vmatprep.subr.mxu0 0.0
    %4023 = vmatpush1.msra.mxu0 0.0
    %4024 = vmatprep.subr.mxu0 0.0
    %4025 = vmatpush1.msra.mxu0 0.0
    %4026 = vmatprep.subr.mxu0 0.0
    %4027 = vmatpush1.msra.mxu0 0.0
    %4028 = vmatprep.subr.mxu0 0.0
    %4029 = vmatpush1.msra.mxu0 0.0
    %4030 = vmatprep.subr.mxu0 0.0
    %4031 = vmatpush1.msra.mxu0 0.0
    %4032 = vmatprep.subr.mxu0 0.0
    %4033 = vmatpush1.msra.mxu0 0.0
    %4034 = vmatprep.subr.mxu0 0.0
    %4035 = vmatpush1.msra.mxu0 0.0
    %4036 = vmatprep.subr.mxu0 0.0
    %4037 = vmatpush1.msra.mxu0 0.0
    %4038 = vmatprep.subr.mxu0 0.0
    %4039 = vmatpush1.msra.mxu0 0.0
    %4040 = vmatprep.subr.mxu0 0.0
    %4041 = vmatpush1.msra.mxu0 0.0
    %4042 = vmatprep.subr.mxu0 0.0
    %4043 = vmatpush1.msra.mxu0 0.0
    %4044 = vmatprep.subr.mxu0 0.0
    %4045 = vmatpush1.msra.mxu0 0.0
    %4046 = vmatprep.subr.mxu0 0.0
    %4047 = vmatpush1.msra.mxu0 0.0
    %4048 = vmatprep.subr.mxu0 0.0
    %4049 = vmatpush1.msra.mxu0 0.0
    %4050 = vmatprep.subr.mxu0 0.0
    %4051 = vmatpush1.msra.mxu0 0.0
    %4052 = vmatprep.subr.mxu0 0.0
    %4053 = vmatpush1.msra.mxu0 0.0
    %4054 = vmatprep.mubr.f32.mxu0 0.0
    %4055 = vmatmul.mubr.f32.gmra.mrb[0].mxu0 %v3986
    %v4056 = vpop.f32.mrb[0].mxu0
    %v4057 = vadd.f32 %v3942, %v4056
    %v4058 = vpop.f32.mrb[0].mxu0
    %4059 = vmatprep.mubr.f32.mxu0 0.0
    %4060 = vmatmul.mubr.f32.gmra.mrb[0].mxu0 %v3988
    %v4061 = vpop.f32.mrb[0].mxu0
    %v4062 = vadd.f32 %v3942, %v4061
    %v4063 = vpop.f32.mrb[0].mxu0
    %4064 = vdwg.mxu0
    %v4065 = vtanh.pop %v4057
    %v4066 = vtanh.pop %v4062
    %v4067 = vld [vmem:[#allocation18] sm:$0x1]
    %v4069 = vlaneseq
    %v4070 = vshrl.u32 %v4069, 7
    %v4071 = vsub.s32 0, %v4070
    %v4072 = vrot.slane %v4067, %v4071
    %v4074 = vmul.f32 %v4065, %v4072
    %v4075 = vmul.f32 %v4066, %v4072
    %v4076 = vsel %vm2725, %v4074, 0.0
    %4077 = vadd.xlane.f32.xlu0 %v4076
    %v4078 = vpop.xlane.xlu0 %4077
    %v4079 = vsel %vm2725, %v4075, 0.0
    %4080 = vadd.xlane.f32.xlu0 %v4079
    %v4081 = vpop.xlane.xlu0 %4080
    %v4085 = vunpack.c.l.s4 269488144
    %v4086 = vunpack.c.0.s8 %v4085
    %v4087 = vlaneseq
    %v4088 = vshrl.u32 %v4087, 7
    %v4089 = vsub.s32 %v4086, %v4088
    %v4090 = vrot.slane %v4078, %v4089
    %v4092 = vunpack.c.l.s4 842150450
    %v4093 = vunpack.c.0.s8 %v4092
    %v4094 = vlaneseq
    %v4095 = vshrl.u32 %v4094, 7
    %v4096 = vsub.s32 %v4093, %v4095
    %v4097 = vrot.slane %v4078, %v4096
    %v4099 = vunpack.c.l.s4 1414812756
    %v4100 = vunpack.c.0.s8 %v4099
    %v4101 = vlaneseq
    %v4102 = vshrl.u32 %v4101, 7
    %v4103 = vsub.s32 %v4100, %v4102
    %v4104 = vrot.slane %v4078, %v4103
    %v4106 = vunpack.c.l.s4 1987475062
    %v4107 = vunpack.c.0.s8 %v4106
    %v4108 = vlaneseq
    %v4109 = vshrl.u32 %v4108, 7
    %v4110 = vsub.s32 %v4107, %v4109
    %v4111 = vrot.slane %v4078, %v4110
    %v4113 = vunpack.c.l.s4 269488144
    %v4114 = vunpack.c.0.s8 %v4113
    %v4115 = vlaneseq
    %v4116 = vshrl.u32 %v4115, 7
    %v4117 = vsub.s32 %v4114, %v4116
    %v4118 = vrot.slane %v4081, %v4117
    %v4120 = vunpack.c.l.s4 842150450
    %v4121 = vunpack.c.0.s8 %v4120
    %v4122 = vlaneseq
    %v4123 = vshrl.u32 %v4122, 7
    %v4124 = vsub.s32 %v4121, %v4123
    %v4125 = vrot.slane %v4081, %v4124
    %v4127 = vunpack.c.l.s4 1414812756
    %v4128 = vunpack.c.0.s8 %v4127
    %v4129 = vlaneseq
    %v4130 = vshrl.u32 %v4129, 7
    %v4131 = vsub.s32 %v4128, %v4130
    %v4132 = vrot.slane %v4081, %v4131
    %v4134 = vunpack.c.l.s4 1987475062
    %v4135 = vunpack.c.0.s8 %v4134
    %v4136 = vlaneseq
    %v4137 = vshrl.u32 %v4136, 7
    %v4138 = vsub.s32 %v4135, %v4137
    %v4139 = vrot.slane %v4081, %v4138
    %v4148 = vld [vmem:[%s0] sm:$0x3]
    %v4149 = vld [vmem:[%s0 + $0x2] sm:$0x3]
    %v4150 = vld [vmem:[%s0 + $0x4] sm:$0x3]
    %v4151 = vld [vmem:[%s0 + $0x6] sm:$0x3]
    %v4152 = vld [vmem:[%s0 + $0x8] sm:$0x3]
    %v4153 = vld [vmem:[%s0 + $0xa] sm:$0x3]
    %v4154 = vld [vmem:[%s0 + $0xc] sm:$0x3]
    %v4155 = vld [vmem:[%s0 + $0xe] sm:$0x3]
    %vm4156 = vcmp.gt.f32.partialorder %v4148, 0.5
    %vm4157 = vcmp.gt.f32.partialorder %v4149, 0.5
    %vm4158 = vcmp.gt.f32.partialorder %v4150, 0.5
    %vm4159 = vcmp.gt.f32.partialorder %v4151, 0.5
    %vm4160 = vcmp.gt.f32.partialorder %v4152, 0.5
    %vm4161 = vcmp.gt.f32.partialorder %v4153, 0.5
    %vm4162 = vcmp.gt.f32.partialorder %v4154, 0.5
    %vm4163 = vcmp.gt.f32.partialorder %v4155, 0.5
    %v4164 = vsel %vm4156, %v4090, -1e+32
    %v4165 = vsel %vm4157, %v4097, -1e+32
    %v4166 = vsel %vm4158, %v4104, -1e+32
    %v4167 = vsel %vm4159, %v4111, -1e+32
    %v4168 = vsel %vm4160, %v4118, -1e+32
    %v4169 = vsel %vm4161, %v4125, -1e+32
    %v4170 = vsel %vm4162, %v4132, -1e+32
    %v4171 = vsel %vm4163, %v4139, -1e+32
    %vm4172 = vcmask 1024
    %v4173 = vsel %vm4172, %v4164, -inf
    %v4174 = vsel %vm4172, %v4165, -inf
    %v4175 = vsel %vm4172, %v4166, -inf
    %v4176 = vsel %vm4172, %v4167, -inf
    %v4177 = vsel %vm4172, %v4168, -inf
    %v4178 = vmax.f32 %v4173, %v4177
    %v4179 = vsel %vm4172, %v4169, -inf
    %v4180 = vmax.f32 %v4174, %v4179
    %v4181 = vsel %vm4172, %v4170, -inf
    %v4182 = vmax.f32 %v4175, %v4181
    %v4183 = vsel %vm4172, %v4171, -inf
    %v4184 = vmax.f32 %v4176, %v4183
    %v4185 = vmax.f32 %v4178, %v4180
    %v4186 = vmax.f32 %v4182, %v4184
    %v4187 = vmax.f32 %v4185, %v4186
    %v4188 = vsub.f32 %v4164, %v4187
    %v4189 = vsub.f32 %v4165, %v4187
    %v4190 = vsub.f32 %v4166, %v4187
    %v4191 = vsub.f32 %v4167, %v4187
    %v4192 = vsub.f32 %v4168, %v4187
    %v4193 = vsub.f32 %v4169, %v4187
    %v4194 = vsub.f32 %v4170, %v4187
    %v4195 = vsub.f32 %v4171, %v4187
    %v4196 = vmul.f32 %v4188, 1.442695
    %v4197 = vpow.pop %v4196
    %v4198 = vmul.f32 %v4189, 1.442695
    %v4199 = vpow.pop %v4198
    %v4200 = vmul.f32 %v4190, 1.442695
    %v4201 = vpow.pop %v4200
    %v4202 = vmul.f32 %v4191, 1.442695
    %v4203 = vpow.pop %v4202
    %v4204 = vmul.f32 %v4192, 1.442695
    %v4205 = vpow.pop %v4204
    %v4206 = vmul.f32 %v4193, 1.442695
    %v4207 = vpow.pop %v4206
    %v4208 = vmul.f32 %v4194, 1.442695
    %v4209 = vpow.pop %v4208
    %v4210 = vmul.f32 %v4195, 1.442695
    %v4211 = vpow.pop %v4210
    %v4212 = vsel %vm4172, %v4197, 0.0
    %v4213 = vsel %vm4172, %v4199, 0.0
    %v4214 = vadd.f32 %v4212, %v4213
    %v4215 = vsel %vm4172, %v4201, 0.0
    %v4216 = vadd.f32 %v4214, %v4215
    %v4217 = vsel %vm4172, %v4203, 0.0
    %v4218 = vadd.f32 %v4216, %v4217
    %v4219 = vsel %vm4172, %v4205, 0.0
    %v4220 = vadd.f32 %v4218, %v4219
    %v4221 = vsel %vm4172, %v4207, 0.0
    %v4222 = vadd.f32 %v4220, %v4221
    %v4223 = vsel %vm4172, %v4209, 0.0
    %v4224 = vadd.f32 %v4222, %v4223
    %v4225 = vsel %vm4172, %v4211, 0.0
    %v4226 = vadd.f32 %v4224, %v4225
    %v4227 = vrcp.pop %v4226
    %v4228 = vmul.f32 %v4226, %v4227
    %v4229 = vsub.f32 2.0, %v4228
    %v4230 = vmul.f32 %v4227, %v4229
    %v4231 = vmul.f32 %v4197, %v4230
    %v4232 = vmul.f32 %v4199, %v4230
    %v4233 = vmul.f32 %v4201, %v4230
    %v4234 = vmul.f32 %v4203, %v4230
    %v4235 = vmul.f32 %v4205, %v4230
    %v4236 = vmul.f32 %v4207, %v4230
    %v4237 = vmul.f32 %v4209, %v4230
    %v4238 = vmul.f32 %v4211, %v4230
    %4240 = vset.pattern.permute.xlu0 0
    %4241 = vperm.xlu0 %4240, %v4231
    %v4242 = vpop.permute.xlu0 %4241
    %4245 = vset.pattern.permute.xlu0 0
    %4246 = vperm.xlu0 %4245, %v4232
    %v4247 = vpop.permute.xlu0 %4246
    %4250 = vset.pattern.permute.xlu0 0
    %4251 = vperm.xlu0 %4250, %v4233
    %v4252 = vpop.permute.xlu0 %4251
    %4255 = vset.pattern.permute.xlu0 0
    %4256 = vperm.xlu0 %4255, %v4234
    %v4257 = vpop.permute.xlu0 %4256
    %4260 = vset.pattern.permute.xlu0 0
    %4261 = vperm.xlu0 %4260, %v4235
    %v4262 = vpop.permute.xlu0 %4261
    %4265 = vset.pattern.permute.xlu0 0
    %4266 = vperm.xlu0 %4265, %v4236
    %v4267 = vpop.permute.xlu0 %4266
    %4270 = vset.pattern.permute.xlu0 0
    %4271 = vperm.xlu0 %4270, %v4237
    %v4272 = vpop.permute.xlu0 %4271
    %4275 = vset.pattern.permute.xlu0 0
    %4276 = vperm.xlu0 %4275, %v4238
    %v4277 = vpop.permute.xlu0 %4276
    %v4279 = vmul.f32 %v3921, %v4242
    %v4280 = vmul.f32 %v3922, %v4247
    %v4281 = vmul.f32 %v3923, %v4252
    %v4282 = vmul.f32 %v3924, %v4257
    %v4283 = vmul.f32 %v3925, %v4262
    %v4284 = vmul.f32 %v3926, %v4267
    %v4285 = vmul.f32 %v3927, %v4272
    %v4286 = vmul.f32 %v3928, %v4277
    %vm4287 = vcmask 517120
    %v4288 = vsel %vm4287, %v4279, 0.0
    %v4289 = vsel %vm4287, %v4280, 0.0
    %v4290 = vadd.f32 %v4288, %v4289
    %v4291 = vsel %vm4287, %v4281, 0.0
    %v4292 = vadd.f32 %v4290, %v4291
    %v4293 = vsel %vm4287, %v4282, 0.0
    %v4294 = vadd.f32 %v4292, %v4293
    %v4295 = vsel %vm4287, %v4283, 0.0
    %v4296 = vadd.f32 %v4294, %v4295
    %v4297 = vsel %vm4287, %v4284, 0.0
    %v4298 = vadd.f32 %v4296, %v4297
    %v4299 = vsel %vm4287, %v4285, 0.0
    %v4300 = vadd.f32 %v4298, %v4299
    %v4301 = vsel %vm4287, %v4286, 0.0
    %v4302 = vadd.f32 %v4300, %v4301
    %4303 = vst.msk [vmem:[#allocation19] sm:$0x3] %vm4287, %v4302
    // Predicated region
    $region78: #{tpu_custom_call.1} parent=1 // pred_check
      _
    $region79: #{tpu_custom_call.1} parent=1 // pred_check_branch
      %4305 = sbr.rel (0) target = $region81
    $region80: #{tpu_custom_call.1} parent=1 // pred_region
      %s4307 = ssub.s32 32, 32
      %4308 = vsyncadd [#allocation6], %s4307
      %s4310 = sshll.u32 [#allocation19], 4
      %s4311 = int_to_ptr.vmem [resolvable:$true] %s4310
      %4313 = dma.vmem_to_hbm [thread:$0]  %s4311, 32, %s10, [#allocation6]
    $region81: #{tpu_custom_call.1} parent=1 // pred_fallthru
      _
    // Predicated region
    $region82: #{tpu_custom_call.1} parent=1 // pred_check
      _
    $region83: #{tpu_custom_call.1} parent=1 // pred_check_branch
      %4315 = sbr.rel (0) target = $region85
    $region84: #{tpu_custom_call.1} parent=1 // pred_region
      %4316 = dma.done [#allocation6], 32
    $region85: #{tpu_custom_call.1} parent=1 // pred_fallthru
      _
    %4317 = vsyncpa [#allocation5], 1
    %4318 = vsyncpa [#allocation8], 1
    %4319 = vsyncpa [#allocation11], 1
    %4320 = vsyncpa [#allocation14], 1
    %4321 = vsyncpa [#allocation17], 1
    %4322 = vsyncpa [#allocation6], 1

</llo_original>
